<compile_context>
chip_gen: v6e
topology: v6e:2x2x1
jax: 0.10.0
libtpu: 0.0.40
codegen_flags: <defaults>
</compile_context>

<pallas_src>
import jax
import jax.numpy as jnp
from jax.experimental import pallas as pl
from jax.experimental.pallas import tpu as pltpu

EPS = 1e-5


# ----------------------------- Pallas kernels --------------------------------
def _double_conv_kernel(xp_ref, w1_ref, b1_ref, w2_ref, b2_ref,
                        h2_ref, st_ref, pad_ref):
    """Per-batch-tile DoubleConv (two fused im2col matmuls) + partial BN1 stats.

    xp_ref : (1, H+2, W+2, Ci) bf16   pre-padded input tile
    w1/w2  : (9*Ci, Ci)        bf16   flattened 3x3 conv weights (HWIO order)
    b1/b2  : (1, Ci)           f32
    h2_ref : (1, H*W, Ci)      f32    pre-BN activation (out)
    st_ref : (1, 1, 2*Ci)      f32    [sum | sum of squares] over this tile
    pad_ref: (H+2, W+2, Ci)    bf16   zero-padded scratch for conv2's input
    """
    Hp, Wp, Ci = pad_ref.shape
    H, W = Hp - 2, Wp - 2
    HW = H * W

    def im2col(xp):  # xp: (H+2, W+2, Ci) -> (H*W, 9*Ci)
        cols = [xp[dy:dy + H, dx:dx + W, :]
                for dy in range(3) for dx in range(3)]
        return jnp.concatenate(cols, axis=-1).reshape(HW, 9 * Ci)

    # conv1: one MXU matmul (bf16 inputs, f32 accumulation).
    p1 = im2col(xp_ref[0])
    h1 = jnp.dot(p1, w1_ref[...], preferred_element_type=jnp.float32)
    h1 = h1 + b1_ref[...]                                      # (HW, Ci) f32

    # conv2: write h1 into a zeroed padded VMEM scratch, im2col, one matmul.
    pad_ref[...] = jnp.zeros_like(pad_ref)
    pad_ref[1:H + 1, 1:W + 1, :] = h1.astype(jnp.bfloat16).reshape(H, W, Ci)
    p2 = im2col(pad_ref[...])
    h2 = jnp.dot(p2, w2_ref[...], preferred_element_type=jnp.float32)
    h2 = h2 + b2_ref[...]                                      # (HW, Ci) f32
    h2_ref[0] = h2

    # Partial BN1 stats via a ones-row matmul (MXU) rather than an XLU
    # cross-sublane reduction.
    ones = jnp.ones((1, HW), jnp.float32)
    st_ref[0] = jnp.dot(ones, jnp.concatenate([h2, h2 * h2], axis=-1),
                        preferred_element_type=jnp.float32)


def _bn_up_kernel(h2_ref, s1_ref, t1_ref, wt_ref, bt_ref, y_ref, st_ref):
    """BN1 affine + ReLU, fused 4-tap transpose conv, partial BN2 stats.

    h2_ref : (1, H*W, Ci)   f32
    s1/t1  : (1, Ci)        f32   BN1 scale / shift
    wt_ref : (Ci, 4*Co)     bf16  transpose-conv weights, tap-major columns
    bt_ref : (1, 4*Co)      f32   tiled transpose-conv bias
    y_ref  : (1, H*W, 4*Co) f32   pre-BN2 taps (out, lane-dense)
    st_ref : (1, 1, 8*Co)   f32   [sum | sum of squares] over this tile
    """
    HW = h2_ref.shape[1]
    h3 = jnp.maximum(h2_ref[0] * s1_ref[...] + t1_ref[...], 0.0)
    y = jnp.dot(h3.astype(jnp.bfloat16), wt_ref[...],
                preferred_element_type=jnp.float32) + bt_ref[...]
    y_ref[0] = y
    ones = jnp.ones((1, HW), jnp.float32)
    st_ref[0] = jnp.dot(ones, jnp.concatenate([y, y * y], axis=-1),
                        preferred_element_type=jnp.float32)


def _bn_relu_kernel(y_ref, s2_ref, t2_ref, out_ref):
    """BN2 affine + ReLU on the lane-dense (pixels, 4*Co) layout."""
    out_ref[0] = jnp.maximum(y_ref[0] * s2_ref[...] + t2_ref[...], 0.0)


# ----------------------------- wrapper ---------------------------------------
def _bn_affine(sums, count, gamma, beta):
    """Fold pooled [sum | sumsq] into BatchNorm scale/shift (tiny arrays)."""
    C = gamma.shape[-1]
    mean = sums[:C] / count
    var = sums[C:] / count - mean * mean
    # TODO(synk): E[x^2]-E[x]^2 loses precision when |mean| >> std; switch to a
    # two-pass / Welford combine for production-scale inputs.
    inv = jax.lax.rsqrt(var + EPS)
    scale = gamma.reshape(-1) * inv
    shift = beta.reshape(-1) - mean * scale
    return scale.reshape(1, C), shift.reshape(1, C)


def bridge_up_forward(x_nchw, params):
    """NCHW in, NCHW out — mirrors BridgeUP.forward (training-mode BN)."""
    N, Ci, H, W = x_nchw.shape
    Co = params["g2"].shape[-1]
    HW = H * W

    x = jnp.transpose(x_nchw, (0, 2, 3, 1)).astype(jnp.float32)       # NHWC
    xp = jnp.pad(x, ((0, 0), (1, 1), (1, 1), (0, 0))).astype(jnp.bfloat16)

    w1f = params["w1"].reshape(9 * Ci, Ci).astype(jnp.bfloat16)
    w2f = params["w2"].reshape(9 * Ci, Ci).astype(jnp.bfloat16)
    # all 4 transpose-conv taps fused into one weight: (Ci, 4*Co), tap-major.
    wtf = jnp.transpose(params["wt"], (1, 0, 2)).reshape(Ci, 4 * Co)
    wtf = wtf.astype(jnp.bfloat16)
    btf = jnp.tile(params["bt"], (1, 4))                              # (1,4*Co)

    cparams = pltpu.CompilerParams(
        dimension_semantics=("parallel",),
        vmem_limit_bytes=32 * 1024 * 1024,
    )

    # ---- pass 1: DoubleConv + partial BN1 stats ----------------------------
    h2, st1 = pl.pallas_call(
        _double_conv_kernel,
        grid=(N,),
        in_specs=[
            pl.BlockSpec((1, H + 2, W + 2, Ci), lambda n: (n, 0, 0, 0)),
            pl.BlockSpec((9 * Ci, Ci), lambda n: (0, 0)),
            pl.BlockSpec((1, Ci), lambda n: (0, 0)),
            pl.BlockSpec((9 * Ci, Ci), lambda n: (0, 0)),
            pl.BlockSpec((1, Ci), lambda n: (0, 0)),
        ],
        out_specs=[
            pl.BlockSpec((1, HW, Ci), lambda n: (n, 0, 0)),
            pl.BlockSpec((1, 1, 2 * Ci), lambda n: (n, 0, 0)),
        ],
        out_shape=[
            jax.ShapeDtypeStruct((N, HW, Ci), jnp.float32),
            jax.ShapeDtypeStruct((N, 1, 2 * Ci), jnp.float32),
        ],
        scratch_shapes=[pltpu.VMEM((H + 2, W + 2, Ci), jnp.bfloat16)],
        compiler_params=cparams,
    )(xp, w1f, params["b1"], w2f, params["b2"])

    s1, t1 = _bn_affine(jnp.sum(st1[:, 0, :], axis=0), N * HW,
                        params["g1"], params["be1"])

    # ---- pass 2: BN1+ReLU, fused transpose conv, partial BN2 stats ---------
    y, st2 = pl.pallas_call(
        _bn_up_kernel,
        grid=(N,),
        in_specs=[
            pl.BlockSpec((1, HW, Ci), lambda n: (n, 0, 0)),
            pl.BlockSpec((1, Ci), lambda n: (0, 0)),
            pl.BlockSpec((1, Ci), lambda n: (0, 0)),
            pl.BlockSpec((Ci, 4 * Co), lambda n: (0, 0)),
            pl.BlockSpec((1, 4 * Co), lambda n: (0, 0)),
        ],
        out_specs=[
            pl.BlockSpec((1, HW, 4 * Co), lambda n: (n, 0, 0)),
            pl.BlockSpec((1, 1, 8 * Co), lambda n: (n, 0, 0)),
        ],
        out_shape=[
            jax.ShapeDtypeStruct((N, HW, 4 * Co), jnp.float32),
            jax.ShapeDtypeStruct((N, 1, 8 * Co), jnp.float32),
        ],
        compiler_params=cparams,
    )(h2, s1, t1, wtf, btf)

    # BN2 statistics pooled over batch, pixels and the 4 taps (tiny combine).
    st2 = jnp.sum(st2[:, 0, :], axis=0)                       # (8*Co,)
    sum2 = jnp.sum(st2[:4 * Co].reshape(4, Co), axis=0)
    ssq2 = jnp.sum(st2[4 * Co:].reshape(4, Co), axis=0)
    s2, t2 = _bn_affine(jnp.concatenate([sum2, ssq2]), 4 * N * HW,
                        params["g2"], params["be2"])
    s2t = jnp.tile(s2, (1, 4))
    t2t = jnp.tile(t2, (1, 4))

    # ---- pass 3: BN2 + ReLU (lane-dense output) ----------------------------
    z = pl.pallas_call(
        _bn_relu_kernel,
        grid=(N,),
        in_specs=[
            pl.BlockSpec((1, HW, 4 * Co), lambda n: (n, 0, 0)),
            pl.BlockSpec((1, 4 * Co), lambda n: (0, 0)),
            pl.BlockSpec((1, 4 * Co), lambda n: (0, 0)),
        ],
        out_specs=pl.BlockSpec((1, HW, 4 * Co), lambda n: (n, 0, 0)),
        out_shape=jax.ShapeDtypeStruct((N, HW, 4 * Co), jnp.float32),
        compiler_params=cparams,
    )(y, s2t, t2t)

    # glue: interleave the 2x2 stride-2 taps -> (N, 2H, 2W, Co) -> NCHW.
    z = z.reshape(N, H, W, 2, 2, Co)
    z = jnp.transpose(z, (0, 1, 3, 2, 4, 5)).reshape(N, 2 * H, 2 * W, Co)
    return jnp.transpose(z, (0, 3, 1, 2))


# ----------------------------- reference (plain JAX) -------------------------
def bridge_up_reference(x_nchw, params):
    x = jnp.transpose(x_nchw, (0, 2, 3, 1)).astype(jnp.float32)

    def conv(x, w, b):
        y = jax.lax.conv_general_dilated(
            x.astype(jnp.bfloat16), w.astype(jnp.bfloat16),
            window_strides=(1, 1), padding="SAME",
            dimension_numbers=("NHWC", "HWIO", "NHWC"),
            preferred_element_type=jnp.float32)
        return y + b.reshape(1, 1, 1, -1)

    def bn_relu(x, g, be):
        m = jnp.mean(x, axis=(0, 1, 2), keepdims=True)
        v = jnp.mean((x - m) ** 2, axis=(0, 1, 2), keepdims=True)
        y = (x - m) * jax.lax.rsqrt(v + EPS) * g.reshape(1, 1, 1, -1) \
            + be.reshape(1, 1, 1, -1)
        return jnp.maximum(y, 0.0)

    h = conv(x, params["w1"], params["b1"])
    h = conv(h, params["w2"], params["b2"])
    h = bn_relu(h, params["g1"], params["be1"])

    N, H, W, Ci = h.shape
    wt = params["wt"]                                          # (4, Ci, Co)
    Co = wt.shape[-1]
    y = jnp.einsum("nhwc,tcd->nhwtd", h.astype(jnp.bfloat16),
                   wt.astype(jnp.bfloat16),
                   preferred_element_type=jnp.float32)
    y = y + params["bt"].reshape(1, 1, 1, 1, -1)
    y = y.reshape(N, H, W, 2, 2, Co)
    y = jnp.transpose(y, (0, 1, 3, 2, 4, 5)).reshape(N, 2 * H, 2 * W, Co)
    y = bn_relu(y, params["g2"], params["be2"])
    return jnp.transpose(y, (0, 3, 1, 2))


# ----------------------------- parameter init --------------------------------
def init_params(key, in_channels, out_channels):
    ks = jax.random.split(key, 10)
    Ci, Co = in_channels, out_channels
    # PyTorch native shapes, then converted to kernel layout.
    w1_t = 0.1 * jax.random.normal(ks[0], (Ci, Ci, 3, 3), jnp.float32)  # (O,I,kh,kw)
    b1_t = 0.1 * jax.random.normal(ks[1], (Ci,), jnp.float32)
    w2_t = 0.1 * jax.random.normal(ks[2], (Ci, Ci, 3, 3), jnp.float32)
    b2_t = 0.1 * jax.random.normal(ks[3], (Ci,), jnp.float32)
    g1 = 1.0 + 0.1 * jax.random.normal(ks[4], (Ci,), jnp.float32)
    be1 = 0.1 * jax.random.normal(ks[5], (Ci,), jnp.float32)
    wt_t = 0.1 * jax.random.normal(ks[6], (Ci, Co, 2, 2), jnp.float32)  # (I,O,kh,kw)
    bt_t = 0.1 * jax.random.normal(ks[7], (Co,), jnp.float32)
    g2 = 1.0 + 0.1 * jax.random.normal(ks[8], (Co,), jnp.float32)
    be2 = 0.1 * jax.random.normal(ks[9], (Co,), jnp.float32)

    return {
        "w1": jnp.transpose(w1_t, (2, 3, 1, 0)),               # HWIO (3,3,Ci,Ci)
        "b1": b1_t.reshape(1, Ci),
        "w2": jnp.transpose(w2_t, (2, 3, 1, 0)),
        "b2": b2_t.reshape(1, Ci),
        "g1": g1.reshape(1, Ci),
        "be1": be1.reshape(1, Ci),
        "wt": jnp.transpose(wt_t, (2, 3, 0, 1)).reshape(4, Ci, Co),  # tap-major
        "bt": bt_t.reshape(1, Co),
        "g2": g2.reshape(1, Co),
        "be2": be2.reshape(1, Co),
    }


if __name__ == "__main__":
    key = jax.random.PRNGKey(0)
    kx, kp = jax.random.split(key)

    N, Ci, Co, H, W = 2, 8, 4, 16, 16
    x = jax.random.normal(kx, (N, Ci, H, W), jnp.float32)      # NCHW like PyTorch
    params = init_params(kp, Ci, Co)

    out = bridge_up_forward(x, params)
    out = jax.block_until_ready(out)
    assert out.shape == (N, Co, 2 * H, 2 * W), out.shape

    ref = jax.block_until_ready(bridge_up_reference(x, params))
    assert jnp.allclose(out, ref, atol=1e-2, rtol=1e-2), \
        f"max abs diff {jnp.max(jnp.abs(out - ref))}"

    print("KERNEL_OK")
</pallas_src>

<mosaic_0001>
module attributes {stable_mosaic.version = 11 : i64} {
  func.func @_double_conv_kernel(%arg0: i32, %arg1: memref<1x18x18x8xbf16, #tpu.memory_space<vmem>>, %arg2: memref<72x8xbf16, #tpu.memory_space<vmem>>, %arg3: memref<1x8xf32, #tpu.memory_space<vmem>>, %arg4: memref<72x8xbf16, #tpu.memory_space<vmem>>, %arg5: memref<1x8xf32, #tpu.memory_space<vmem>>, %arg6: memref<1x256x8xf32, #tpu.memory_space<vmem>>, %arg7: memref<1x1x16xf32, #tpu.memory_space<vmem>>, %arg8: memref<18x18x8xbf16, #tpu.memory_space<vmem>>) attributes {dimension_semantics = [#tpu.dimension_semantics<parallel>], iteration_bounds = array<i64: 2>, scalar_prefetch = 0 : i64, scratch_operands = 1 : i64, tpu.core_type = #tpu.core_type<tc>, window_params = [{transform_indices = @transform_0, window_bounds = array<i64: 1, 18, 18, 8>}, {pipeline_mode = #tpu.pipeline_mode<synchronous>, transform_indices = @transform_1, window_bounds = array<i64: 72, 8>}, {pipeline_mode = #tpu.pipeline_mode<synchronous>, transform_indices = @transform_2, window_bounds = array<i64: 1, 8>}, {pipeline_mode = #tpu.pipeline_mode<synchronous>, transform_indices = @transform_3, window_bounds = array<i64: 72, 8>}, {pipeline_mode = #tpu.pipeline_mode<synchronous>, transform_indices = @transform_4, window_bounds = array<i64: 1, 8>}, {transform_indices = @transform_5, window_bounds = array<i64: 1, 256, 8>}, {transform_indices = @transform_6, window_bounds = array<i64: 1, 1, 16>}]} {
    %c0 = arith.constant 0 : index
    %c0_0 = arith.constant 0 : index
    %c0_1 = arith.constant 0 : index
    %c0_2 = arith.constant 0 : index
    %0 = vector.load %arg1[%c0, %c0_0, %c0_1, %c0_2] : memref<1x18x18x8xbf16, #tpu.memory_space<vmem>>, vector<1x18x18x8xbf16>
    %1 = vector.shape_cast %0 : vector<1x18x18x8xbf16> to vector<18x18x8xbf16>
    %2 = vector.extract_strided_slice %1 {offsets = [0, 0, 0], sizes = [16, 16, 8], strides = [1, 1, 1]} : vector<18x18x8xbf16> to vector<16x16x8xbf16>
    %3 = vector.extract_strided_slice %1 {offsets = [0, 1, 0], sizes = [16, 16, 8], strides = [1, 1, 1]} : vector<18x18x8xbf16> to vector<16x16x8xbf16>
    %4 = vector.extract_strided_slice %1 {offsets = [0, 2, 0], sizes = [16, 16, 8], strides = [1, 1, 1]} : vector<18x18x8xbf16> to vector<16x16x8xbf16>
    %5 = vector.extract_strided_slice %1 {offsets = [1, 0, 0], sizes = [16, 16, 8], strides = [1, 1, 1]} : vector<18x18x8xbf16> to vector<16x16x8xbf16>
    %6 = vector.extract_strided_slice %1 {offsets = [1, 1, 0], sizes = [16, 16, 8], strides = [1, 1, 1]} : vector<18x18x8xbf16> to vector<16x16x8xbf16>
    %7 = vector.extract_strided_slice %1 {offsets = [1, 2, 0], sizes = [16, 16, 8], strides = [1, 1, 1]} : vector<18x18x8xbf16> to vector<16x16x8xbf16>
    %8 = vector.extract_strided_slice %1 {offsets = [2, 0, 0], sizes = [16, 16, 8], strides = [1, 1, 1]} : vector<18x18x8xbf16> to vector<16x16x8xbf16>
    %9 = vector.extract_strided_slice %1 {offsets = [2, 1, 0], sizes = [16, 16, 8], strides = [1, 1, 1]} : vector<18x18x8xbf16> to vector<16x16x8xbf16>
    %10 = vector.extract_strided_slice %1 {offsets = [2, 2, 0], sizes = [16, 16, 8], strides = [1, 1, 1]} : vector<18x18x8xbf16> to vector<16x16x8xbf16>
    %11 = tpu.concatenate %2, %3, %4, %5, %6, %7, %8, %9, %10 in 2 : vector<16x16x8xbf16>, vector<16x16x8xbf16>, vector<16x16x8xbf16>, vector<16x16x8xbf16>, vector<16x16x8xbf16>, vector<16x16x8xbf16>, vector<16x16x8xbf16>, vector<16x16x8xbf16>, vector<16x16x8xbf16> -> vector<16x16x72xbf16>
    %12 = vector.shape_cast %11 : vector<16x16x72xbf16> to vector<256x72xbf16>
    %c0_3 = arith.constant 0 : index
    %c0_4 = arith.constant 0 : index
    %13 = vector.load %arg2[%c0_3, %c0_4] : memref<72x8xbf16, #tpu.memory_space<vmem>>, vector<72x8xbf16>
    %cst = arith.constant dense<0.000000e+00> : vector<256x8xf32>
    %14 = tpu.matmul %12, %13, %cst {dimension_numbers = #tpu.dot_dimension_numbers<[1], [0], [0], [1], [0, 0, 1, 1], [], []>} : vector<256x72xbf16>, vector<72x8xbf16>, vector<256x8xf32> -> vector<256x8xf32>
    %c0_5 = arith.constant 0 : index
    %c0_6 = arith.constant 0 : index
    %15 = vector.load %arg3[%c0_5, %c0_6] : memref<1x8xf32, #tpu.memory_space<vmem>>, vector<1x8xf32>
    %16 = vector.broadcast %15 : vector<1x8xf32> to vector<256x8xf32>
    %17 = arith.addf %14, %16 : vector<256x8xf32>
    %cst_7 = arith.constant 0.000000e+00 : bf16
    %18 = vector.broadcast %cst_7 : bf16 to vector<18x18x8xbf16>
    %c0_8 = arith.constant 0 : index
    %c0_9 = arith.constant 0 : index
    %c0_10 = arith.constant 0 : index
    %19 = vector.load %arg8[%c0_8, %c0_9, %c0_10] : memref<18x18x8xbf16, #tpu.memory_space<vmem>>, vector<18x18x8xbf16>
    tpu.vector_store %arg8[%c0_8, %c0_9, %c0_10], %18 {strides = array<i32>} : memref<18x18x8xbf16, #tpu.memory_space<vmem>>, vector<18x18x8xbf16>,
    %20 = arith.truncf %17 : vector<256x8xf32> to vector<256x8xbf16>
    %21 = vector.shape_cast %20 : vector<256x8xbf16> to vector<16x16x8xbf16>
    %c1 = arith.constant 1 : index
    %c1_11 = arith.constant 1 : index
    %c0_12 = arith.constant 0 : index
    %22 = vector.load %arg8[%c1, %c1_11, %c0_12] : memref<18x18x8xbf16, #tpu.memory_space<vmem>>, vector<16x16x8xbf16>
    tpu.vector_store %arg8[%c1, %c1_11, %c0_12], %21 {strides = array<i32>} : memref<18x18x8xbf16, #tpu.memory_space<vmem>>, vector<16x16x8xbf16>,
    %c0_13 = arith.constant 0 : index
    %c0_14 = arith.constant 0 : index
    %c0_15 = arith.constant 0 : index
    %23 = vector.load %arg8[%c0_13, %c0_14, %c0_15] : memref<18x18x8xbf16, #tpu.memory_space<vmem>>, vector<18x18x8xbf16>
    %24 = vector.extract_strided_slice %23 {offsets = [0, 0, 0], sizes = [16, 16, 8], strides = [1, 1, 1]} : vector<18x18x8xbf16> to vector<16x16x8xbf16>
    %25 = vector.extract_strided_slice %23 {offsets = [0, 1, 0], sizes = [16, 16, 8], strides = [1, 1, 1]} : vector<18x18x8xbf16> to vector<16x16x8xbf16>
    %26 = vector.extract_strided_slice %23 {offsets = [0, 2, 0], sizes = [16, 16, 8], strides = [1, 1, 1]} : vector<18x18x8xbf16> to vector<16x16x8xbf16>
    %27 = vector.extract_strided_slice %23 {offsets = [1, 0, 0], sizes = [16, 16, 8], strides = [1, 1, 1]} : vector<18x18x8xbf16> to vector<16x16x8xbf16>
    %28 = vector.extract_strided_slice %23 {offsets = [1, 1, 0], sizes = [16, 16, 8], strides = [1, 1, 1]} : vector<18x18x8xbf16> to vector<16x16x8xbf16>
    %29 = vector.extract_strided_slice %23 {offsets = [1, 2, 0], sizes = [16, 16, 8], strides = [1, 1, 1]} : vector<18x18x8xbf16> to vector<16x16x8xbf16>
    %30 = vector.extract_strided_slice %23 {offsets = [2, 0, 0], sizes = [16, 16, 8], strides = [1, 1, 1]} : vector<18x18x8xbf16> to vector<16x16x8xbf16>
    %31 = vector.extract_strided_slice %23 {offsets = [2, 1, 0], sizes = [16, 16, 8], strides = [1, 1, 1]} : vector<18x18x8xbf16> to vector<16x16x8xbf16>
    %32 = vector.extract_strided_slice %23 {offsets = [2, 2, 0], sizes = [16, 16, 8], strides = [1, 1, 1]} : vector<18x18x8xbf16> to vector<16x16x8xbf16>
    %33 = tpu.concatenate %24, %25, %26, %27, %28, %29, %30, %31, %32 in 2 : vector<16x16x8xbf16>, vector<16x16x8xbf16>, vector<16x16x8xbf16>, vector<16x16x8xbf16>, vector<16x16x8xbf16>, vector<16x16x8xbf16>, vector<16x16x8xbf16>, vector<16x16x8xbf16>, vector<16x16x8xbf16> -> vector<16x16x72xbf16>
    %34 = vector.shape_cast %33 : vector<16x16x72xbf16> to vector<256x72xbf16>
    %c0_16 = arith.constant 0 : index
    %c0_17 = arith.constant 0 : index
    %35 = vector.load %arg4[%c0_16, %c0_17] : memref<72x8xbf16, #tpu.memory_space<vmem>>, vector<72x8xbf16>
    %cst_18 = arith.constant dense<0.000000e+00> : vector<256x8xf32>
    %36 = tpu.matmul %34, %35, %cst_18 {dimension_numbers = #tpu.dot_dimension_numbers<[1], [0], [0], [1], [0, 0, 1, 1], [], []>} : vector<256x72xbf16>, vector<72x8xbf16>, vector<256x8xf32> -> vector<256x8xf32>
    %c0_19 = arith.constant 0 : index
    %c0_20 = arith.constant 0 : index
    %37 = vector.load %arg5[%c0_19, %c0_20] : memref<1x8xf32, #tpu.memory_space<vmem>>, vector<1x8xf32>
    %38 = vector.broadcast %37 : vector<1x8xf32> to vector<256x8xf32>
    %39 = arith.addf %36, %38 : vector<256x8xf32>
    %c0_21 = arith.constant 0 : index
    %c0_22 = arith.constant 0 : index
    %c0_23 = arith.constant 0 : index
    %40 = vector.load %arg6[%c0_21, %c0_22, %c0_23] : memref<1x256x8xf32, #tpu.memory_space<vmem>>, vector<1x256x8xf32>
    %41 = vector.shape_cast %40 : vector<1x256x8xf32> to vector<256x8xf32>
    %42 = vector.shape_cast %39 : vector<256x8xf32> to vector<1x256x8xf32>
    tpu.vector_store %arg6[%c0_21, %c0_22, %c0_23], %42 {strides = array<i32>} : memref<1x256x8xf32, #tpu.memory_space<vmem>>, vector<1x256x8xf32>,
    %cst_24 = arith.constant 1.000000e+00 : f32
    %43 = vector.broadcast %cst_24 : f32 to vector<1x256xf32>
    %44 = arith.mulf %39, %39 : vector<256x8xf32>
    %45 = tpu.concatenate %39, %44 in 1 : vector<256x8xf32>, vector<256x8xf32> -> vector<256x16xf32>
    %cst_25 = arith.constant dense<0.000000e+00> : vector<1x16xf32>
    %46 = tpu.matmul %43, %45, %cst_25 {dimension_numbers = #tpu.dot_dimension_numbers<[1], [0], [0], [1], [0, 0, 1, 1], [], []>} : vector<1x256xf32>, vector<256x16xf32>, vector<1x16xf32> -> vector<1x16xf32>
    %c0_26 = arith.constant 0 : index
    %c0_27 = arith.constant 0 : index
    %c0_28 = arith.constant 0 : index
    %47 = vector.load %arg7[%c0_26, %c0_27, %c0_28] : memref<1x1x16xf32, #tpu.memory_space<vmem>>, vector<1x1x16xf32>
    %48 = vector.shape_cast %47 : vector<1x1x16xf32> to vector<1x16xf32>
    %49 = vector.shape_cast %46 : vector<1x16xf32> to vector<1x1x16xf32>
    tpu.vector_store %arg7[%c0_26, %c0_27, %c0_28], %49 {strides = array<i32>} : memref<1x1x16xf32, #tpu.memory_space<vmem>>, vector<1x1x16xf32>,
    return
  }
  func.func @transform_0(%arg0: i32) -> (i32, i32, i32, i32) {
    %c0_i32 = arith.constant 0 : i32
    %c0_i32_0 = arith.constant 0 : i32
    %c0_i32_1 = arith.constant 0 : i32
    %c0_i32_2 = arith.constant 0 : i32
    return %arg0, %c0_i32, %c0_i32_0, %c0_i32_1 : i32, i32, i32, i32
  }
  func.func @transform_1(%arg0: i32) -> (i32, i32) {
    %c0_i32 = arith.constant 0 : i32
    %c0_i32_0 = arith.constant 0 : i32
    %c0_i32_1 = arith.constant 0 : i32
    return %c0_i32, %c0_i32_0 : i32, i32
  }
  func.func @transform_2(%arg0: i32) -> (i32, i32) {
    %c0_i32 = arith.constant 0 : i32
    %c0_i32_0 = arith.constant 0 : i32
    %c0_i32_1 = arith.constant 0 : i32
    return %c0_i32, %c0_i32_0 : i32, i32
  }
  func.func @transform_3(%arg0: i32) -> (i32, i32) {
    %c0_i32 = arith.constant 0 : i32
    %c0_i32_0 = arith.constant 0 : i32
    %c0_i32_1 = arith.constant 0 : i32
    return %c0_i32, %c0_i32_0 : i32, i32
  }
  func.func @transform_4(%arg0: i32) -> (i32, i32) {
    %c0_i32 = arith.constant 0 : i32
    %c0_i32_0 = arith.constant 0 : i32
    %c0_i32_1 = arith.constant 0 : i32
    return %c0_i32, %c0_i32_0 : i32, i32
  }
  func.func @transform_5(%arg0: i32) -> (i32, i32, i32) {
    %c0_i32 = arith.constant 0 : i32
    %c0_i32_0 = arith.constant 0 : i32
    %c0_i32_1 = arith.constant 0 : i32
    return %arg0, %c0_i32, %c0_i32_0 : i32, i32, i32
  }
  func.func @transform_6(%arg0: i32) -> (i32, i32, i32) {
    %c0_i32 = arith.constant 0 : i32
    %c0_i32_0 = arith.constant 0 : i32
    %c0_i32_1 = arith.constant 0 : i32
    return %arg0, %c0_i32, %c0_i32_0 : i32, i32, i32
  }
}

</mosaic_0001>

<llo_original>
// kernel: tpu_custom_call.1
$region0: #{tpu_custom_call.1}
  #allocation0 [shape = 'u32[]', space=smem, size = 0x4, offset = 0x4, fixed_abs, tag = 'smem constant byte address 0x4 - core index']
  #allocation1 [shape = 'u32[144,128]{1,0:T(1,128)}', space=vmem, size = 0x12000, scoped, tag = 'internal scratch']
  #allocation2 [shape = 'bf16[18,18,8]{2,1,0:T(8,128)(2,1)}', space=vmem, size = 0x1b000, scoped, tag = 'scratch operand']
  %s0 = inlined_call_operand.vmem [shape: bf16[2,18,18,8], index: 0, kind: input, shape index: {}]
  %s1 = inlined_call_operand.vmem [shape: bf16[72,8], index: 1, kind: input, shape index: {}]
  %s2 = inlined_call_operand.vmem [shape: f32[1,8], index: 2, kind: input, shape index: {}]
  %s3 = inlined_call_operand.vmem [shape: bf16[72,8], index: 3, kind: input, shape index: {}]
  %s4 = inlined_call_operand.vmem [shape: f32[1,8], index: 4, kind: input, shape index: {}]
  %s5 = inlined_call_operand.vmem [shape: f32[2,256,8], index: 5, kind: output, shape index: {0}]
  %s6 = inlined_call_operand.hbm [shape: f32[2,1,16], index: 6, kind: output, shape index: {1}]
  %7 = xla_tuple %s5, %s6
  %s8 = sld [smem:[#allocation0]]
  $region61: #{tpu_custom_call.1} parent=0
    _
  %s10 = ssub.s32 1, %s8
  %s11 = scalar_select 0, %s10, %s8
  $region1: #{tpu_custom_call.1} parent=0
    #allocation3 [shape = 'u8[1024]{0}', space=vmem, size = 0x400, scoped, tag = 'output window, operand 1']
    #allocation4 [shape = 's32[2]{0}', space=sflag, size = 0x8, scoped, tag = 'scoped memory for tpu_custom_call.1']
    %12 = vsyncpa [#allocation4], 0
    %s13 = scalar_lea.sflag [#allocation4], 1
    %14 = vsyncpa %s13, 0
    loop: start=0, step=1, limit=4
    $region2: #{tpu_custom_call.1} parent=1 // loop_pre_header
      _
    $region3: #{tpu_custom_call.1} parent=1 // loop_header
      %s16 = sphi 0, %s20
      %p17 = scmp.ge.s32.totalorder %s16, 4
      %s26 = sphi 0, %s28
      %s29 = sphi 0, %s26
      %s30 = sphi 0, %s29
      %s46 = sphi 0, %s30
      %s50 = sphi 0, %s50
      %s52 = sphi 0, %s50
      %s53 = sphi 0, %s52
      %s67 = sphi 0, %s53
      %s71 = sphi 0, %s71
      %s73 = sphi 0, %s71
      %s74 = sphi 0, %s73
      %s88 = sphi 0, %s74
      %s92 = sphi 0, %s92
      %s94 = sphi 0, %s92
      %s95 = sphi 0, %s94
      %s109 = sphi 0, %s95
      %s113 = sphi 0, %s113
      %s115 = sphi 0, %s113
      %s116 = sphi 0, %s115
      %s130 = sphi 0, %s116
      %s136 = sphi 0, %s138
      %s139 = sphi 0, %s136
      %s140 = sphi 0, %s139
      %s156 = sphi 0, %s140
      %s162 = sphi 0, %s164
      %s165 = sphi 0, %s162
      %s166 = sphi 0, %s165
      %s182 = sphi 0, %s166
    $region4: #{tpu_custom_call.1} parent=1 // loop_header_branch
      %19 = sbr.rel (%p17) target = $region8
    $region5: #{tpu_custom_call.1} parent=1 // loop_body
      %s21 = ssub.s32 %s16, 1
      %s22 = ssub.s32 %s16, 2
      %s23 = sadd.s32 %s16, 1
      %s24 = ssub.s32 %s16, %s23
      %p25 = scmp.eq.s32.totalorder %s24, 0
      %s27 = sadd.s32 %s26, 1
      %s28 = scalar_select %p25, %s26, %s27
      %p31 = pneg %p25
      %p32 = scmp.eq.s32.totalorder %s16, 1
      %p33 = por %p31, %p32
      %p34 = scmp.ne.s32.totalorder %s26, %s29
      %p35 = scmp.eq.s32.totalorder %s16, 0
      %p36 = por %p34, %p35
      %p37 = scmp.ne.s32.totalorder %s26, %s29
      %p38 = scmp.eq.s32.totalorder %s21, 1
      %p39 = por %p37, %p38
      %p40 = scmp.ne.s32.totalorder %s29, %s30
      %p41 = scmp.eq.s32.totalorder %s21, 0
      %p42 = por %p40, %p41
      %p43 = scmp.ne.s32.totalorder %s29, %s30
      %p44 = scmp.eq.s32.totalorder %s22, 1
      %p45 = por %p43, %p44
      %p47 = scmp.ne.s32.totalorder %s30, %s46
      %p48 = scmp.eq.s32.totalorder %s22, 0
      %p49 = por %p47, %p48
      %s51 = sadd.s32 %s50, 1
      %p54 = scmp.eq.s32.totalorder %s16, 1
      %p55 = scmp.ne.s32.totalorder %s50, %s52
      %p56 = scmp.eq.s32.totalorder %s16, 0
      %p57 = por %p55, %p56
      %p58 = scmp.ne.s32.totalorder %s50, %s52
      %p59 = scmp.eq.s32.totalorder %s21, 1
      %p60 = por %p58, %p59
      %p61 = scmp.ne.s32.totalorder %s52, %s53
      %p62 = scmp.eq.s32.totalorder %s21, 0
      %p63 = por %p61, %p62
      %p64 = scmp.ne.s32.totalorder %s52, %s53
      %p65 = scmp.eq.s32.totalorder %s22, 1
      %p66 = por %p64, %p65
      %p68 = scmp.ne.s32.totalorder %s53, %s67
      %p69 = scmp.eq.s32.totalorder %s22, 0
      %p70 = por %p68, %p69
      %s72 = sadd.s32 %s71, 1
      %p75 = scmp.eq.s32.totalorder %s16, 1
      %p76 = scmp.ne.s32.totalorder %s71, %s73
      %p77 = scmp.eq.s32.totalorder %s16, 0
      %p78 = por %p76, %p77
      %p79 = scmp.ne.s32.totalorder %s71, %s73
      %p80 = scmp.eq.s32.totalorder %s21, 1
      %p81 = por %p79, %p80
      %p82 = scmp.ne.s32.totalorder %s73, %s74
      %p83 = scmp.eq.s32.totalorder %s21, 0
      %p84 = por %p82, %p83
      %p85 = scmp.ne.s32.totalorder %s73, %s74
      %p86 = scmp.eq.s32.totalorder %s22, 1
      %p87 = por %p85, %p86
      %p89 = scmp.ne.s32.totalorder %s74, %s88
      %p90 = scmp.eq.s32.totalorder %s22, 0
      %p91 = por %p89, %p90
      %s93 = sadd.s32 %s92, 1
      %p96 = scmp.eq.s32.totalorder %s16, 1
      %p97 = scmp.ne.s32.totalorder %s92, %s94
      %p98 = scmp.eq.s32.totalorder %s16, 0
      %p99 = por %p97, %p98
      %p100 = scmp.ne.s32.totalorder %s92, %s94
      %p101 = scmp.eq.s32.totalorder %s21, 1
      %p102 = por %p100, %p101
      %p103 = scmp.ne.s32.totalorder %s94, %s95
      %p104 = scmp.eq.s32.totalorder %s21, 0
      %p105 = por %p103, %p104
      %p106 = scmp.ne.s32.totalorder %s94, %s95
      %p107 = scmp.eq.s32.totalorder %s22, 1
      %p108 = por %p106, %p107
      %p110 = scmp.ne.s32.totalorder %s95, %s109
      %p111 = scmp.eq.s32.totalorder %s22, 0
      %p112 = por %p110, %p111
      %s114 = sadd.s32 %s113, 1
      %p117 = scmp.eq.s32.totalorder %s16, 1
      %p118 = scmp.ne.s32.totalorder %s113, %s115
      %p119 = scmp.eq.s32.totalorder %s16, 0
      %p120 = por %p118, %p119
      %p121 = scmp.ne.s32.totalorder %s113, %s115
      %p122 = scmp.eq.s32.totalorder %s21, 1
      %p123 = por %p121, %p122
      %p124 = scmp.ne.s32.totalorder %s115, %s116
      %p125 = scmp.eq.s32.totalorder %s21, 0
      %p126 = por %p124, %p125
      %p127 = scmp.ne.s32.totalorder %s115, %s116
      %p128 = scmp.eq.s32.totalorder %s22, 1
      %p129 = por %p127, %p128
      %p131 = scmp.ne.s32.totalorder %s116, %s130
      %p132 = scmp.eq.s32.totalorder %s22, 0
      %p133 = por %p131, %p132
      %s134 = ssub.s32 %s16, %s23
      %p135 = scmp.eq.s32.totalorder %s134, 0
      %s137 = sadd.s32 %s136, 1
      %s138 = scalar_select %p135, %s136, %s137
      %p141 = pneg %p135
      %p142 = scmp.eq.s32.totalorder %s16, 1
      %p143 = por %p141, %p142
      %p144 = scmp.ne.s32.totalorder %s136, %s139
      %p145 = scmp.eq.s32.totalorder %s16, 0
      %p146 = por %p144, %p145
      %p147 = scmp.ne.s32.totalorder %s136, %s139
      %p148 = scmp.eq.s32.totalorder %s21, 1
      %p149 = por %p147, %p148
      %p150 = scmp.ne.s32.totalorder %s139, %s140
      %p151 = scmp.eq.s32.totalorder %s21, 0
      %p152 = por %p150, %p151
      %p153 = scmp.ne.s32.totalorder %s139, %s140
      %p154 = scmp.eq.s32.totalorder %s22, 1
      %p155 = por %p153, %p154
      %p157 = scmp.ne.s32.totalorder %s140, %s156
      %p158 = scmp.eq.s32.totalorder %s22, 0
      %p159 = por %p157, %p158
      %s160 = ssub.s32 %s16, %s23
      %p161 = scmp.eq.s32.totalorder %s160, 0
      %s163 = sadd.s32 %s162, 1
      %s164 = scalar_select %p161, %s162, %s163
      %p167 = pneg %p161
      %p168 = scmp.eq.s32.totalorder %s16, 1
      %p169 = por %p167, %p168
      %p170 = scmp.ne.s32.totalorder %s162, %s165
      %p171 = scmp.eq.s32.totalorder %s16, 0
      %p172 = por %p170, %p171
      %p173 = scmp.ne.s32.totalorder %s162, %s165
      %p174 = scmp.eq.s32.totalorder %s21, 1
      %p175 = por %p173, %p174
      %p176 = scmp.ne.s32.totalorder %s165, %s166
      %p177 = scmp.eq.s32.totalorder %s21, 0
      %p178 = por %p176, %p177
      %p179 = scmp.ne.s32.totalorder %s165, %s166
      %p180 = scmp.eq.s32.totalorder %s22, 1
      %p181 = por %p179, %p180
      %p183 = scmp.ne.s32.totalorder %s166, %s182
      %p184 = scmp.eq.s32.totalorder %s22, 0
      %p185 = por %p183, %p184
      %p186 = scmp.le.s32.totalorder 1, %s16
      %p187 = scmp.lt.s32.totalorder %s16, 3
      %p188 = pnand %p186, %p187
      %p189 = pneg %p188
      // Predicated region
      $region9: #{tpu_custom_call.1} parent=5 // pred_check
        _
      $region10: #{tpu_custom_call.1} parent=5 // pred_check_branch
        %191 = sbr.rel (%p188) target = $region12
      $region11: #{tpu_custom_call.1} parent=5 // pred_region
        %s192 = ssub.s32 %s16, 1
        // Predicated region
        $region13: #{tpu_custom_call.1} parent=11 // pred_check
          %p193 = pneg %p63
        $region14: #{tpu_custom_call.1} parent=11 // pred_check_branch
          %195 = sbr.rel (%p193) target = $region16
        $region15: #{tpu_custom_call.1} parent=11 // pred_region
          _
        $region16: #{tpu_custom_call.1} parent=11 // pred_fallthru
          _
        // Predicated region
        $region17: #{tpu_custom_call.1} parent=11 // pred_check
          %p196 = pneg %p84
        $region18: #{tpu_custom_call.1} parent=11 // pred_check_branch
          %198 = sbr.rel (%p196) target = $region20
        $region19: #{tpu_custom_call.1} parent=11 // pred_region
          _
        $region20: #{tpu_custom_call.1} parent=11 // pred_fallthru
          _
        // Predicated region
        $region21: #{tpu_custom_call.1} parent=11 // pred_check
          %p199 = pneg %p105
        $region22: #{tpu_custom_call.1} parent=11 // pred_check_branch
          %201 = sbr.rel (%p199) target = $region24
        $region23: #{tpu_custom_call.1} parent=11 // pred_region
          _
        $region24: #{tpu_custom_call.1} parent=11 // pred_fallthru
          _
        // Predicated region
        $region25: #{tpu_custom_call.1} parent=11 // pred_check
          %p202 = pneg %p126
        $region26: #{tpu_custom_call.1} parent=11 // pred_check_branch
          %204 = sbr.rel (%p202) target = $region28
        $region27: #{tpu_custom_call.1} parent=11 // pred_region
          _
        $region28: #{tpu_custom_call.1} parent=11 // pred_fallthru
          _
      $region12: #{tpu_custom_call.1} parent=5 // pred_fallthru
        _
      %p205 = scmp.lt.s32.totalorder %s16, 2
      // Predicated region
      $region29: #{tpu_custom_call.1} parent=5 // pred_check
        %p206 = pneg %p205
      $region30: #{tpu_custom_call.1} parent=5 // pred_check_branch
        %208 = sbr.rel (%p206) target = $region32
      $region31: #{tpu_custom_call.1} parent=5 // pred_region
        // Predicated region
        $region33: #{tpu_custom_call.1} parent=31 // pred_check
          %p209 = pneg %p36
        $region34: #{tpu_custom_call.1} parent=31 // pred_check_branch
          %211 = sbr.rel (%p209) target = $region36
        $region35: #{tpu_custom_call.1} parent=31 // pred_region
          %p212 = scmp.lt.s32.totalorder %s16, 1
          %s213 = scalar_select %p212, %s16, 1
          %s214 = smul.addr %s213, 54
          %s215 = smul.addr %s214, 4
          %s216 = scalar_lea.vmem %s0, %s215
        $region36: #{tpu_custom_call.1} parent=31 // pred_fallthru
          _
      $region32: #{tpu_custom_call.1} parent=5 // pred_fallthru
        _
      %p217 = scmp.le.s32.totalorder 1, %s16
      %p218 = scmp.lt.s32.totalorder %s16, 3
      %p219 = pnand %p217, %p218
      %p220 = pneg %p219
      // Predicated region
      $region37: #{tpu_custom_call.1} parent=5 // pred_check
        _
      $region38: #{tpu_custom_call.1} parent=5 // pred_check_branch
        %222 = sbr.rel (%p219) target = $region40
      $region39: #{tpu_custom_call.1} parent=5 // pred_region
        %s223 = ssub.s32 %s16, 1
        %p224 = scmp.lt.s32.totalorder %s21, 1
        %s225 = scalar_select %p224, %s21, 1
        %s226 = smul.addr %s225, 54
        %s227 = smul.addr %s226, 4
        %s228 = scalar_lea.vmem %s0, %s227
        %p229 = pneg %p42
        %p230 = pneg %p39
        %p231 = pneg %p63
        %p232 = pneg %p60
        %p233 = pneg %p84
        %p234 = pneg %p81
        %p235 = pneg %p105
        %p236 = pneg %p102
        %p237 = pneg %p126
        %p238 = pneg %p123
        %p239 = pneg %p152
        %p240 = pneg %p149
        %p241 = scmp.lt.s32.totalorder %s21, 1
        %s242 = scalar_select %p241, %s21, 1
        %s243 = smul.addr %s242, 32
        %s244 = smul.addr %s243, 8
        %s245 = scalar_lea.vmem %s5, %s244
        %p246 = pneg %p178
        %p247 = pneg %p175
        %s248 = sand.u32 %s165, 1
        %s249 = scalar_lea.sflag [#allocation4], %s248
        %s250 = sand.u32 %s165, 1
        %s251 = scalar_lea.vmem [#allocation3], %s250
        %p252 = scmp.lt.s32.totalorder %s21, 1
        %s253 = scalar_select %p252, %s21, 1
        %s254 = smul.addr %s253, 54
        %s255 = smul.addr %s254, 4
        %s256 = scalar_lea.vmem %s0, %s255
        %p257 = scmp.lt.s32.totalorder %s21, 1
        %s258 = scalar_select %p257, %s21, 1
        %s259 = smul.addr %s258, 32
        %s260 = smul.addr %s259, 8
        %s261 = scalar_lea.vmem %s5, %s260
        %v263 = vld [vmem:[%s256] sm:$0xf]
        %v264 = vld [vmem:[%s256 + $0x4] sm:$0xf]
        %v265 = vld [vmem:[%s256 + $0x8] sm:$0x1]
        %v266 = vld [vmem:[%s256 + $0xc] sm:$0xf]
        %v267 = vld [vmem:[%s256 + $0x10] sm:$0xf]
        %v268 = vld [vmem:[%s256 + $0x14] sm:$0x1]
        %v269 = vld [vmem:[%s256 + $0x18] sm:$0xf]
        %v270 = vld [vmem:[%s256 + $0x1c] sm:$0xf]
        %v271 = vld [vmem:[%s256 + $0x20] sm:$0x1]
        %v272 = vld [vmem:[%s256 + $0x24] sm:$0xf]
        %v273 = vld [vmem:[%s256 + $0x28] sm:$0xf]
        %v274 = vld [vmem:[%s256 + $0x2c] sm:$0x1]
        %v275 = vld [vmem:[%s256 + $0x30] sm:$0xf]
        %v276 = vld [vmem:[%s256 + $0x34] sm:$0xf]
        %v277 = vld [vmem:[%s256 + $0x38] sm:$0x1]
        %v278 = vld [vmem:[%s256 + $0x3c] sm:$0xf]
        %v279 = vld [vmem:[%s256 + $0x40] sm:$0xf]
        %v280 = vld [vmem:[%s256 + $0x44] sm:$0x1]
        %v281 = vld [vmem:[%s256 + $0x48] sm:$0xf]
        %v282 = vld [vmem:[%s256 + $0x4c] sm:$0xf]
        %v283 = vld [vmem:[%s256 + $0x50] sm:$0x1]
        %v284 = vld [vmem:[%s256 + $0x54] sm:$0xf]
        %v285 = vld [vmem:[%s256 + $0x58] sm:$0xf]
        %v286 = vld [vmem:[%s256 + $0x5c] sm:$0x1]
        %v287 = vld [vmem:[%s256 + $0x60] sm:$0xf]
        %v288 = vld [vmem:[%s256 + $0x64] sm:$0xf]
        %v289 = vld [vmem:[%s256 + $0x68] sm:$0x1]
        %v290 = vld [vmem:[%s256 + $0x6c] sm:$0xf]
        %v291 = vld [vmem:[%s256 + $0x70] sm:$0xf]
        %v292 = vld [vmem:[%s256 + $0x74] sm:$0x1]
        %v293 = vld [vmem:[%s256 + $0x78] sm:$0xf]
        %v294 = vld [vmem:[%s256 + $0x7c] sm:$0xf]
        %v295 = vld [vmem:[%s256 + $0x80] sm:$0x1]
        %v296 = vld [vmem:[%s256 + $0x84] sm:$0xf]
        %v297 = vld [vmem:[%s256 + $0x88] sm:$0xf]
        %v298 = vld [vmem:[%s256 + $0x8c] sm:$0x1]
        %v299 = vld [vmem:[%s256 + $0x90] sm:$0xf]
        %v300 = vld [vmem:[%s256 + $0x94] sm:$0xf]
        %v301 = vld [vmem:[%s256 + $0x98] sm:$0x1]
        %v302 = vld [vmem:[%s256 + $0x9c] sm:$0xf]
        %v303 = vld [vmem:[%s256 + $0xa0] sm:$0xf]
        %v304 = vld [vmem:[%s256 + $0xa4] sm:$0x1]
        %v305 = vld [vmem:[%s256 + $0xa8] sm:$0xf]
        %v306 = vld [vmem:[%s256 + $0xac] sm:$0xf]
        %v307 = vld [vmem:[%s256 + $0xb0] sm:$0x1]
        %v308 = vld [vmem:[%s256 + $0xb4] sm:$0xf]
        %v309 = vld [vmem:[%s256 + $0xb8] sm:$0xf]
        %v310 = vld [vmem:[%s256 + $0xbc] sm:$0x1]
        %v311 = vld [vmem:[%s256 + $0xc0] sm:$0xf]
        %v312 = vld [vmem:[%s256 + $0xc4] sm:$0xf]
        %v313 = vld [vmem:[%s256 + $0xc8] sm:$0x1]
        %v314 = vld [vmem:[%s256 + $0xcc] sm:$0xf]
        %v315 = vld [vmem:[%s256 + $0xd0] sm:$0xf]
        %v316 = vld [vmem:[%s256 + $0xd4] sm:$0x1]
        %v349 = vunpack.c.l.b16 %v263
        %v350 = vunpack.c.l.b16 %v264
        %v351 = vunpack.c.l.b16 %v266
        %v352 = vunpack.c.l.b16 %v267
        %v353 = vunpack.c.l.b16 %v269
        %v354 = vunpack.c.l.b16 %v270
        %v355 = vunpack.c.l.b16 %v272
        %v356 = vunpack.c.l.b16 %v273
        %v357 = vunpack.c.l.b16 %v275
        %v358 = vunpack.c.l.b16 %v276
        %v359 = vunpack.c.l.b16 %v278
        %v360 = vunpack.c.l.b16 %v279
        %v361 = vunpack.c.l.b16 %v281
        %v362 = vunpack.c.l.b16 %v282
        %v363 = vunpack.c.l.b16 %v284
        %v364 = vunpack.c.l.b16 %v285
        %v365 = vunpack.c.l.b16 %v287
        %v366 = vunpack.c.l.b16 %v288
        %v367 = vunpack.c.l.b16 %v290
        %v368 = vunpack.c.l.b16 %v291
        %v369 = vunpack.c.l.b16 %v293
        %v370 = vunpack.c.l.b16 %v294
        %v371 = vunpack.c.l.b16 %v296
        %v372 = vunpack.c.l.b16 %v297
        %v373 = vunpack.c.l.b16 %v299
        %v374 = vunpack.c.l.b16 %v300
        %v375 = vunpack.c.l.b16 %v302
        %v376 = vunpack.c.l.b16 %v303
        %v377 = vunpack.c.l.b16 %v305
        %v378 = vunpack.c.l.b16 %v306
        %v379 = vunpack.c.l.b16 %v308
        %v380 = vunpack.c.l.b16 %v309
        %v381 = vpack.c.b16 %v350, %v349
        %v382 = vpack.c.b16 %v352, %v351
        %v383 = vpack.c.b16 %v354, %v353
        %v384 = vpack.c.b16 %v356, %v355
        %v385 = vpack.c.b16 %v358, %v357
        %v386 = vpack.c.b16 %v360, %v359
        %v387 = vpack.c.b16 %v362, %v361
        %v388 = vpack.c.b16 %v364, %v363
        %v389 = vpack.c.b16 %v366, %v365
        %v390 = vpack.c.b16 %v368, %v367
        %v391 = vpack.c.b16 %v370, %v369
        %v392 = vpack.c.b16 %v372, %v371
        %v393 = vpack.c.b16 %v374, %v373
        %v394 = vpack.c.b16 %v376, %v375
        %v395 = vpack.c.b16 %v378, %v377
        %v396 = vpack.c.b16 %v380, %v379
        %v413 = vunpack.c.l.b16 %v265
        %v414 = vunpack.c.l.b16 %v268
        %v415 = vunpack.c.l.b16 %v271
        %v416 = vunpack.c.l.b16 %v274
        %v417 = vunpack.c.l.b16 %v277
        %v418 = vunpack.c.l.b16 %v280
        %v419 = vunpack.c.l.b16 %v283
        %v420 = vunpack.c.l.b16 %v286
        %v421 = vunpack.c.l.b16 %v289
        %v422 = vunpack.c.l.b16 %v292
        %v423 = vunpack.c.l.b16 %v295
        %v424 = vunpack.c.l.b16 %v298
        %v425 = vunpack.c.l.b16 %v301
        %v426 = vunpack.c.l.b16 %v304
        %v427 = vunpack.c.l.b16 %v307
        %v428 = vunpack.c.l.b16 %v310
        %v429 = vpack.c.b16 %v413, %v413
        %v430 = vpack.c.b16 %v414, %v414
        %v431 = vpack.c.b16 %v415, %v415
        %v432 = vpack.c.b16 %v416, %v416
        %v433 = vpack.c.b16 %v417, %v417
        %v434 = vpack.c.b16 %v418, %v418
        %v435 = vpack.c.b16 %v419, %v419
        %v436 = vpack.c.b16 %v420, %v420
        %v437 = vpack.c.b16 %v421, %v421
        %v438 = vpack.c.b16 %v422, %v422
        %v439 = vpack.c.b16 %v423, %v423
        %v440 = vpack.c.b16 %v424, %v424
        %v441 = vpack.c.b16 %v425, %v425
        %v442 = vpack.c.b16 %v426, %v426
        %v443 = vpack.c.b16 %v427, %v427
        %v444 = vpack.c.b16 %v428, %v428
        %vm445 = vsmask.f32 7424
        %v447 = vshrl.u32 %v381, 16
        %v449 = vshll.u32 %v381, 16
        %v451 = vrot.slane %v449, 1
        %v452 = vor.u32 %v447, %v451
        %v454 = vshll.u32 %v429, 16
        %v456 = vrot.slane %v454, 1
        %v457 = vsel %vm445, %v452, %v456
        %v459 = vshrl.u32 %v382, 16
        %v461 = vshll.u32 %v382, 16
        %v463 = vrot.slane %v461, 1
        %v464 = vor.u32 %v459, %v463
        %v466 = vshll.u32 %v430, 16
        %v468 = vrot.slane %v466, 1
        %v469 = vsel %vm445, %v464, %v468
        %v471 = vshrl.u32 %v383, 16
        %v473 = vshll.u32 %v383, 16
        %v475 = vrot.slane %v473, 1
        %v476 = vor.u32 %v471, %v475
        %v478 = vshll.u32 %v431, 16
        %v480 = vrot.slane %v478, 1
        %v481 = vsel %vm445, %v476, %v480
        %v483 = vshrl.u32 %v384, 16
        %v485 = vshll.u32 %v384, 16
        %v487 = vrot.slane %v485, 1
        %v488 = vor.u32 %v483, %v487
        %v490 = vshll.u32 %v432, 16
        %v492 = vrot.slane %v490, 1
        %v493 = vsel %vm445, %v488, %v492
        %v495 = vshrl.u32 %v385, 16
        %v497 = vshll.u32 %v385, 16
        %v499 = vrot.slane %v497, 1
        %v500 = vor.u32 %v495, %v499
        %v502 = vshll.u32 %v433, 16
        %v504 = vrot.slane %v502, 1
        %v505 = vsel %vm445, %v500, %v504
        %v507 = vshrl.u32 %v386, 16
        %v509 = vshll.u32 %v386, 16
        %v511 = vrot.slane %v509, 1
        %v512 = vor.u32 %v507, %v511
        %v514 = vshll.u32 %v434, 16
        %v516 = vrot.slane %v514, 1
        %v517 = vsel %vm445, %v512, %v516
        %v519 = vshrl.u32 %v387, 16
        %v521 = vshll.u32 %v387, 16
        %v523 = vrot.slane %v521, 1
        %v524 = vor.u32 %v519, %v523
        %v526 = vshll.u32 %v435, 16
        %v528 = vrot.slane %v526, 1
        %v529 = vsel %vm445, %v524, %v528
        %v531 = vshrl.u32 %v388, 16
        %v533 = vshll.u32 %v388, 16
        %v535 = vrot.slane %v533, 1
        %v536 = vor.u32 %v531, %v535
        %v538 = vshll.u32 %v436, 16
        %v540 = vrot.slane %v538, 1
        %v541 = vsel %vm445, %v536, %v540
        %v543 = vshrl.u32 %v389, 16
        %v545 = vshll.u32 %v389, 16
        %v547 = vrot.slane %v545, 1
        %v548 = vor.u32 %v543, %v547
        %v550 = vshll.u32 %v437, 16
        %v552 = vrot.slane %v550, 1
        %v553 = vsel %vm445, %v548, %v552
        %v555 = vshrl.u32 %v390, 16
        %v557 = vshll.u32 %v390, 16
        %v559 = vrot.slane %v557, 1
        %v560 = vor.u32 %v555, %v559
        %v562 = vshll.u32 %v438, 16
        %v564 = vrot.slane %v562, 1
        %v565 = vsel %vm445, %v560, %v564
        %v567 = vshrl.u32 %v391, 16
        %v569 = vshll.u32 %v391, 16
        %v571 = vrot.slane %v569, 1
        %v572 = vor.u32 %v567, %v571
        %v574 = vshll.u32 %v439, 16
        %v576 = vrot.slane %v574, 1
        %v577 = vsel %vm445, %v572, %v576
        %v579 = vshrl.u32 %v392, 16
        %v581 = vshll.u32 %v392, 16
        %v583 = vrot.slane %v581, 1
        %v584 = vor.u32 %v579, %v583
        %v586 = vshll.u32 %v440, 16
        %v588 = vrot.slane %v586, 1
        %v589 = vsel %vm445, %v584, %v588
        %v591 = vshrl.u32 %v393, 16
        %v593 = vshll.u32 %v393, 16
        %v595 = vrot.slane %v593, 1
        %v596 = vor.u32 %v591, %v595
        %v598 = vshll.u32 %v441, 16
        %v600 = vrot.slane %v598, 1
        %v601 = vsel %vm445, %v596, %v600
        %v603 = vshrl.u32 %v394, 16
        %v605 = vshll.u32 %v394, 16
        %v607 = vrot.slane %v605, 1
        %v608 = vor.u32 %v603, %v607
        %v610 = vshll.u32 %v442, 16
        %v612 = vrot.slane %v610, 1
        %v613 = vsel %vm445, %v608, %v612
        %v615 = vshrl.u32 %v395, 16
        %v617 = vshll.u32 %v395, 16
        %v619 = vrot.slane %v617, 1
        %v620 = vor.u32 %v615, %v619
        %v622 = vshll.u32 %v443, 16
        %v624 = vrot.slane %v622, 1
        %v625 = vsel %vm445, %v620, %v624
        %v627 = vshrl.u32 %v396, 16
        %v629 = vshll.u32 %v396, 16
        %v631 = vrot.slane %v629, 1
        %v632 = vor.u32 %v627, %v631
        %v634 = vshll.u32 %v444, 16
        %v636 = vrot.slane %v634, 1
        %v637 = vsel %vm445, %v632, %v636
        %638 = vrot.lane.b32.xlu0 %v457, 8
        %v639 = vpop.permute.xlu0 %638
        %640 = vrot.lane.b32.xlu0 %v469, 8
        %v641 = vpop.permute.xlu0 %640
        %642 = vrot.lane.b32.xlu0 %v481, 8
        %v643 = vpop.permute.xlu0 %642
        %644 = vrot.lane.b32.xlu0 %v493, 8
        %v645 = vpop.permute.xlu0 %644
        %646 = vrot.lane.b32.xlu0 %v505, 8
        %v647 = vpop.permute.xlu0 %646
        %648 = vrot.lane.b32.xlu0 %v517, 8
        %v649 = vpop.permute.xlu0 %648
        %650 = vrot.lane.b32.xlu0 %v529, 8
        %v651 = vpop.permute.xlu0 %650
        %652 = vrot.lane.b32.xlu0 %v541, 8
        %v653 = vpop.permute.xlu0 %652
        %654 = vrot.lane.b32.xlu0 %v553, 8
        %v655 = vpop.permute.xlu0 %654
        %656 = vrot.lane.b32.xlu0 %v565, 8
        %v657 = vpop.permute.xlu0 %656
        %658 = vrot.lane.b32.xlu0 %v577, 8
        %v659 = vpop.permute.xlu0 %658
        %660 = vrot.lane.b32.xlu0 %v589, 8
        %v661 = vpop.permute.xlu0 %660
        %662 = vrot.lane.b32.xlu0 %v601, 8
        %v663 = vpop.permute.xlu0 %662
        %664 = vrot.lane.b32.xlu0 %v613, 8
        %v665 = vpop.permute.xlu0 %664
        %666 = vrot.lane.b32.xlu0 %v625, 8
        %v667 = vpop.permute.xlu0 %666
        %668 = vrot.lane.b32.xlu0 %v637, 8
        %v669 = vpop.permute.xlu0 %668
        %vm670 = vcmask 1046528
        %v671 = vrot.slane %v381, 1
        %v672 = vrot.slane %v429, 1
        %v673 = vsel %vm670, %v671, %v672
        %v674 = vrot.slane %v382, 1
        %v675 = vrot.slane %v430, 1
        %v676 = vsel %vm670, %v674, %v675
        %v677 = vrot.slane %v383, 1
        %v678 = vrot.slane %v431, 1
        %v679 = vsel %vm670, %v677, %v678
        %v680 = vrot.slane %v384, 1
        %v681 = vrot.slane %v432, 1
        %v682 = vsel %vm670, %v680, %v681
        %v683 = vrot.slane %v385, 1
        %v684 = vrot.slane %v433, 1
        %v685 = vsel %vm670, %v683, %v684
        %v686 = vrot.slane %v386, 1
        %v687 = vrot.slane %v434, 1
        %v688 = vsel %vm670, %v686, %v687
        %v689 = vrot.slane %v387, 1
        %v690 = vrot.slane %v435, 1
        %v691 = vsel %vm670, %v689, %v690
        %v692 = vrot.slane %v388, 1
        %v693 = vrot.slane %v436, 1
        %v694 = vsel %vm670, %v692, %v693
        %v695 = vrot.slane %v389, 1
        %v696 = vrot.slane %v437, 1
        %v697 = vsel %vm670, %v695, %v696
        %v698 = vrot.slane %v390, 1
        %v699 = vrot.slane %v438, 1
        %v700 = vsel %vm670, %v698, %v699
        %v701 = vrot.slane %v391, 1
        %v702 = vrot.slane %v439, 1
        %v703 = vsel %vm670, %v701, %v702
        %v704 = vrot.slane %v392, 1
        %v705 = vrot.slane %v440, 1
        %v706 = vsel %vm670, %v704, %v705
        %v707 = vrot.slane %v393, 1
        %v708 = vrot.slane %v441, 1
        %v709 = vsel %vm670, %v707, %v708
        %v710 = vrot.slane %v394, 1
        %v711 = vrot.slane %v442, 1
        %v712 = vsel %vm670, %v710, %v711
        %v713 = vrot.slane %v395, 1
        %v714 = vrot.slane %v443, 1
        %v715 = vsel %vm670, %v713, %v714
        %v716 = vrot.slane %v396, 1
        %v717 = vrot.slane %v444, 1
        %v718 = vsel %vm670, %v716, %v717
        %719 = vrot.lane.b32.xlu0 %v673, 16
        %v720 = vpop.permute.xlu0 %719
        %721 = vrot.lane.b32.xlu0 %v676, 16
        %v722 = vpop.permute.xlu0 %721
        %723 = vrot.lane.b32.xlu0 %v679, 16
        %v724 = vpop.permute.xlu0 %723
        %725 = vrot.lane.b32.xlu0 %v682, 16
        %v726 = vpop.permute.xlu0 %725
        %727 = vrot.lane.b32.xlu0 %v685, 16
        %v728 = vpop.permute.xlu0 %727
        %729 = vrot.lane.b32.xlu0 %v688, 16
        %v730 = vpop.permute.xlu0 %729
        %731 = vrot.lane.b32.xlu0 %v691, 16
        %v732 = vpop.permute.xlu0 %731
        %733 = vrot.lane.b32.xlu0 %v694, 16
        %v734 = vpop.permute.xlu0 %733
        %735 = vrot.lane.b32.xlu0 %v697, 16
        %v736 = vpop.permute.xlu0 %735
        %737 = vrot.lane.b32.xlu0 %v700, 16
        %v738 = vpop.permute.xlu0 %737
        %739 = vrot.lane.b32.xlu0 %v703, 16
        %v740 = vpop.permute.xlu0 %739
        %741 = vrot.lane.b32.xlu0 %v706, 16
        %v742 = vpop.permute.xlu0 %741
        %743 = vrot.lane.b32.xlu0 %v709, 16
        %v744 = vpop.permute.xlu0 %743
        %745 = vrot.lane.b32.xlu0 %v712, 16
        %v746 = vpop.permute.xlu0 %745
        %747 = vrot.lane.b32.xlu0 %v715, 16
        %v748 = vpop.permute.xlu0 %747
        %749 = vrot.lane.b32.xlu0 %v718, 16
        %v750 = vpop.permute.xlu0 %749
        %v753 = vunpack.c.l.b16 %v311
        %v754 = vunpack.c.l.b16 %v312
        %v755 = vpack.c.b16 %v754, %v753
        %756 = vrot.lane.b32.xlu0 %v382, 24
        %v757 = vpop.permute.xlu0 %756
        %758 = vrot.lane.b32.xlu0 %v383, 24
        %v759 = vpop.permute.xlu0 %758
        %760 = vrot.lane.b32.xlu0 %v384, 24
        %v761 = vpop.permute.xlu0 %760
        %762 = vrot.lane.b32.xlu0 %v385, 24
        %v763 = vpop.permute.xlu0 %762
        %764 = vrot.lane.b32.xlu0 %v386, 24
        %v765 = vpop.permute.xlu0 %764
        %766 = vrot.lane.b32.xlu0 %v387, 24
        %v767 = vpop.permute.xlu0 %766
        %768 = vrot.lane.b32.xlu0 %v388, 24
        %v769 = vpop.permute.xlu0 %768
        %770 = vrot.lane.b32.xlu0 %v389, 24
        %v771 = vpop.permute.xlu0 %770
        %772 = vrot.lane.b32.xlu0 %v390, 24
        %v773 = vpop.permute.xlu0 %772
        %774 = vrot.lane.b32.xlu0 %v391, 24
        %v775 = vpop.permute.xlu0 %774
        %776 = vrot.lane.b32.xlu0 %v392, 24
        %v777 = vpop.permute.xlu0 %776
        %778 = vrot.lane.b32.xlu0 %v393, 24
        %v779 = vpop.permute.xlu0 %778
        %780 = vrot.lane.b32.xlu0 %v394, 24
        %v781 = vpop.permute.xlu0 %780
        %782 = vrot.lane.b32.xlu0 %v395, 24
        %v783 = vpop.permute.xlu0 %782
        %784 = vrot.lane.b32.xlu0 %v396, 24
        %v785 = vpop.permute.xlu0 %784
        %786 = vrot.lane.b32.xlu0 %v755, 24
        %v787 = vpop.permute.xlu0 %786
        %v789 = vunpack.c.l.b16 %v313
        %v790 = vpack.c.b16 %v789, %v789
        %v792 = vshrl.u32 %v755, 16
        %v794 = vshll.u32 %v755, 16
        %v796 = vrot.slane %v794, 1
        %v797 = vor.u32 %v792, %v796
        %v799 = vshll.u32 %v790, 16
        %v801 = vrot.slane %v799, 1
        %v802 = vsel %vm445, %v797, %v801
        %803 = vrot.lane.b32.xlu0 %v469, 32
        %v804 = vpop.permute.xlu0 %803
        %805 = vrot.lane.b32.xlu0 %v481, 32
        %v806 = vpop.permute.xlu0 %805
        %807 = vrot.lane.b32.xlu0 %v493, 32
        %v808 = vpop.permute.xlu0 %807
        %809 = vrot.lane.b32.xlu0 %v505, 32
        %v810 = vpop.permute.xlu0 %809
        %811 = vrot.lane.b32.xlu0 %v517, 32
        %v812 = vpop.permute.xlu0 %811
        %813 = vrot.lane.b32.xlu0 %v529, 32
        %v814 = vpop.permute.xlu0 %813
        %815 = vrot.lane.b32.xlu0 %v541, 32
        %v816 = vpop.permute.xlu0 %815
        %817 = vrot.lane.b32.xlu0 %v553, 32
        %v818 = vpop.permute.xlu0 %817
        %819 = vrot.lane.b32.xlu0 %v565, 32
        %v820 = vpop.permute.xlu0 %819
        %821 = vrot.lane.b32.xlu0 %v577, 32
        %v822 = vpop.permute.xlu0 %821
        %823 = vrot.lane.b32.xlu0 %v589, 32
        %v824 = vpop.permute.xlu0 %823
        %825 = vrot.lane.b32.xlu0 %v601, 32
        %v826 = vpop.permute.xlu0 %825
        %827 = vrot.lane.b32.xlu0 %v613, 32
        %v828 = vpop.permute.xlu0 %827
        %829 = vrot.lane.b32.xlu0 %v625, 32
        %v830 = vpop.permute.xlu0 %829
        %831 = vrot.lane.b32.xlu0 %v637, 32
        %v832 = vpop.permute.xlu0 %831
        %833 = vrot.lane.b32.xlu0 %v802, 32
        %v834 = vpop.permute.xlu0 %833
        %v835 = vrot.slane %v755, 1
        %v836 = vrot.slane %v790, 1
        %v837 = vsel %vm670, %v835, %v836
        %838 = vrot.lane.b32.xlu0 %v676, 40
        %v839 = vpop.permute.xlu0 %838
        %840 = vrot.lane.b32.xlu0 %v679, 40
        %v841 = vpop.permute.xlu0 %840
        %842 = vrot.lane.b32.xlu0 %v682, 40
        %v843 = vpop.permute.xlu0 %842
        %844 = vrot.lane.b32.xlu0 %v685, 40
        %v845 = vpop.permute.xlu0 %844
        %846 = vrot.lane.b32.xlu0 %v688, 40
        %v847 = vpop.permute.xlu0 %846
        %848 = vrot.lane.b32.xlu0 %v691, 40
        %v849 = vpop.permute.xlu0 %848
        %850 = vrot.lane.b32.xlu0 %v694, 40
        %v851 = vpop.permute.xlu0 %850
        %852 = vrot.lane.b32.xlu0 %v697, 40
        %v853 = vpop.permute.xlu0 %852
        %854 = vrot.lane.b32.xlu0 %v700, 40
        %v855 = vpop.permute.xlu0 %854
        %856 = vrot.lane.b32.xlu0 %v703, 40
        %v857 = vpop.permute.xlu0 %856
        %858 = vrot.lane.b32.xlu0 %v706, 40
        %v859 = vpop.permute.xlu0 %858
        %860 = vrot.lane.b32.xlu0 %v709, 40
        %v861 = vpop.permute.xlu0 %860
        %862 = vrot.lane.b32.xlu0 %v712, 40
        %v863 = vpop.permute.xlu0 %862
        %864 = vrot.lane.b32.xlu0 %v715, 40
        %v865 = vpop.permute.xlu0 %864
        %866 = vrot.lane.b32.xlu0 %v718, 40
        %v867 = vpop.permute.xlu0 %866
        %868 = vrot.lane.b32.xlu0 %v837, 40
        %v869 = vpop.permute.xlu0 %868
        %v872 = vunpack.c.l.b16 %v314
        %v873 = vunpack.c.l.b16 %v315
        %v874 = vpack.c.b16 %v873, %v872
        %875 = vrot.lane.b32.xlu0 %v383, 48
        %v876 = vpop.permute.xlu0 %875
        %877 = vrot.lane.b32.xlu0 %v384, 48
        %v878 = vpop.permute.xlu0 %877
        %879 = vrot.lane.b32.xlu0 %v385, 48
        %v880 = vpop.permute.xlu0 %879
        %881 = vrot.lane.b32.xlu0 %v386, 48
        %v882 = vpop.permute.xlu0 %881
        %883 = vrot.lane.b32.xlu0 %v387, 48
        %v884 = vpop.permute.xlu0 %883
        %885 = vrot.lane.b32.xlu0 %v388, 48
        %v886 = vpop.permute.xlu0 %885
        %887 = vrot.lane.b32.xlu0 %v389, 48
        %v888 = vpop.permute.xlu0 %887
        %889 = vrot.lane.b32.xlu0 %v390, 48
        %v890 = vpop.permute.xlu0 %889
        %891 = vrot.lane.b32.xlu0 %v391, 48
        %v892 = vpop.permute.xlu0 %891
        %893 = vrot.lane.b32.xlu0 %v392, 48
        %v894 = vpop.permute.xlu0 %893
        %895 = vrot.lane.b32.xlu0 %v393, 48
        %v896 = vpop.permute.xlu0 %895
        %897 = vrot.lane.b32.xlu0 %v394, 48
        %v898 = vpop.permute.xlu0 %897
        %899 = vrot.lane.b32.xlu0 %v395, 48
        %v900 = vpop.permute.xlu0 %899
        %901 = vrot.lane.b32.xlu0 %v396, 48
        %v902 = vpop.permute.xlu0 %901
        %903 = vrot.lane.b32.xlu0 %v755, 48
        %v904 = vpop.permute.xlu0 %903
        %905 = vrot.lane.b32.xlu0 %v874, 48
        %v906 = vpop.permute.xlu0 %905
        %v908 = vunpack.c.l.b16 %v316
        %v909 = vpack.c.b16 %v908, %v908
        %v911 = vshrl.u32 %v874, 16
        %v913 = vshll.u32 %v874, 16
        %v915 = vrot.slane %v913, 1
        %v916 = vor.u32 %v911, %v915
        %v918 = vshll.u32 %v909, 16
        %v920 = vrot.slane %v918, 1
        %v921 = vsel %vm445, %v916, %v920
        %922 = vrot.lane.b32.xlu0 %v481, 56
        %v923 = vpop.permute.xlu0 %922
        %924 = vrot.lane.b32.xlu0 %v493, 56
        %v925 = vpop.permute.xlu0 %924
        %926 = vrot.lane.b32.xlu0 %v505, 56
        %v927 = vpop.permute.xlu0 %926
        %928 = vrot.lane.b32.xlu0 %v517, 56
        %v929 = vpop.permute.xlu0 %928
        %930 = vrot.lane.b32.xlu0 %v529, 56
        %v931 = vpop.permute.xlu0 %930
        %932 = vrot.lane.b32.xlu0 %v541, 56
        %v933 = vpop.permute.xlu0 %932
        %934 = vrot.lane.b32.xlu0 %v553, 56
        %v935 = vpop.permute.xlu0 %934
        %936 = vrot.lane.b32.xlu0 %v565, 56
        %v937 = vpop.permute.xlu0 %936
        %938 = vrot.lane.b32.xlu0 %v577, 56
        %v939 = vpop.permute.xlu0 %938
        %940 = vrot.lane.b32.xlu0 %v589, 56
        %v941 = vpop.permute.xlu0 %940
        %942 = vrot.lane.b32.xlu0 %v601, 56
        %v943 = vpop.permute.xlu0 %942
        %944 = vrot.lane.b32.xlu0 %v613, 56
        %v945 = vpop.permute.xlu0 %944
        %946 = vrot.lane.b32.xlu0 %v625, 56
        %v947 = vpop.permute.xlu0 %946
        %948 = vrot.lane.b32.xlu0 %v637, 56
        %v949 = vpop.permute.xlu0 %948
        %950 = vrot.lane.b32.xlu0 %v802, 56
        %v951 = vpop.permute.xlu0 %950
        %952 = vrot.lane.b32.xlu0 %v921, 56
        %v953 = vpop.permute.xlu0 %952
        %v954 = vrot.slane %v874, 1
        %v955 = vrot.slane %v909, 1
        %v956 = vsel %vm670, %v954, %v955
        %957 = vrot.lane.b32.xlu0 %v679, 64
        %v958 = vpop.permute.xlu0 %957
        %959 = vrot.lane.b32.xlu0 %v682, 64
        %v960 = vpop.permute.xlu0 %959
        %961 = vrot.lane.b32.xlu0 %v685, 64
        %v962 = vpop.permute.xlu0 %961
        %963 = vrot.lane.b32.xlu0 %v688, 64
        %v964 = vpop.permute.xlu0 %963
        %965 = vrot.lane.b32.xlu0 %v691, 64
        %v966 = vpop.permute.xlu0 %965
        %967 = vrot.lane.b32.xlu0 %v694, 64
        %v968 = vpop.permute.xlu0 %967
        %969 = vrot.lane.b32.xlu0 %v697, 64
        %v970 = vpop.permute.xlu0 %969
        %971 = vrot.lane.b32.xlu0 %v700, 64
        %v972 = vpop.permute.xlu0 %971
        %973 = vrot.lane.b32.xlu0 %v703, 64
        %v974 = vpop.permute.xlu0 %973
        %975 = vrot.lane.b32.xlu0 %v706, 64
        %v976 = vpop.permute.xlu0 %975
        %977 = vrot.lane.b32.xlu0 %v709, 64
        %v978 = vpop.permute.xlu0 %977
        %979 = vrot.lane.b32.xlu0 %v712, 64
        %v980 = vpop.permute.xlu0 %979
        %981 = vrot.lane.b32.xlu0 %v715, 64
        %v982 = vpop.permute.xlu0 %981
        %983 = vrot.lane.b32.xlu0 %v718, 64
        %v984 = vpop.permute.xlu0 %983
        %985 = vrot.lane.b32.xlu0 %v837, 64
        %v986 = vpop.permute.xlu0 %985
        %987 = vrot.lane.b32.xlu0 %v956, 64
        %v988 = vpop.permute.xlu0 %987
        %vm989 = vcmask 64512
        %v991 = vsel %vm989, %v381, %v639
        %v993 = vsel %vm989, %v382, %v641
        %v995 = vsel %vm989, %v383, %v643
        %v997 = vsel %vm989, %v384, %v645
        %v999 = vsel %vm989, %v385, %v647
        %v1001 = vsel %vm989, %v386, %v649
        %v1003 = vsel %vm989, %v387, %v651
        %v1005 = vsel %vm989, %v388, %v653
        %v1007 = vsel %vm989, %v389, %v655
        %v1009 = vsel %vm989, %v390, %v657
        %v1011 = vsel %vm989, %v391, %v659
        %v1013 = vsel %vm989, %v392, %v661
        %v1015 = vsel %vm989, %v393, %v663
        %v1017 = vsel %vm989, %v394, %v665
        %v1019 = vsel %vm989, %v395, %v667
        %v1021 = vsel %vm989, %v396, %v669
        %vm1022 = vcmask 130048
        %v1024 = vsel %vm1022, %v991, %v720
        %v1026 = vsel %vm1022, %v993, %v722
        %v1028 = vsel %vm1022, %v995, %v724
        %v1030 = vsel %vm1022, %v997, %v726
        %v1032 = vsel %vm1022, %v999, %v728
        %v1034 = vsel %vm1022, %v1001, %v730
        %v1036 = vsel %vm1022, %v1003, %v732
        %v1038 = vsel %vm1022, %v1005, %v734
        %v1040 = vsel %vm1022, %v1007, %v736
        %v1042 = vsel %vm1022, %v1009, %v738
        %v1044 = vsel %vm1022, %v1011, %v740
        %v1046 = vsel %vm1022, %v1013, %v742
        %v1048 = vsel %vm1022, %v1015, %v744
        %v1050 = vsel %vm1022, %v1017, %v746
        %v1052 = vsel %vm1022, %v1019, %v748
        %v1054 = vsel %vm1022, %v1021, %v750
        %vm1055 = vcmask 195584
        %v1057 = vsel %vm1055, %v1024, %v757
        %v1059 = vsel %vm1055, %v1026, %v759
        %v1061 = vsel %vm1055, %v1028, %v761
        %v1063 = vsel %vm1055, %v1030, %v763
        %v1065 = vsel %vm1055, %v1032, %v765
        %v1067 = vsel %vm1055, %v1034, %v767
        %v1069 = vsel %vm1055, %v1036, %v769
        %v1071 = vsel %vm1055, %v1038, %v771
        %v1073 = vsel %vm1055, %v1040, %v773
        %v1075 = vsel %vm1055, %v1042, %v775
        %v1077 = vsel %vm1055, %v1044, %v777
        %v1079 = vsel %vm1055, %v1046, %v779
        %v1081 = vsel %vm1055, %v1048, %v781
        %v1083 = vsel %vm1055, %v1050, %v783
        %v1085 = vsel %vm1055, %v1052, %v785
        %v1087 = vsel %vm1055, %v1054, %v787
        %vm1088 = vcmask 261120
        %v1090 = vsel %vm1088, %v1057, %v804
        %v1092 = vsel %vm1088, %v1059, %v806
        %v1094 = vsel %vm1088, %v1061, %v808
        %v1096 = vsel %vm1088, %v1063, %v810
        %v1098 = vsel %vm1088, %v1065, %v812
        %v1100 = vsel %vm1088, %v1067, %v814
        %v1102 = vsel %vm1088, %v1069, %v816
        %v1104 = vsel %vm1088, %v1071, %v818
        %v1106 = vsel %vm1088, %v1073, %v820
        %v1108 = vsel %vm1088, %v1075, %v822
        %v1110 = vsel %vm1088, %v1077, %v824
        %v1112 = vsel %vm1088, %v1079, %v826
        %v1114 = vsel %vm1088, %v1081, %v828
        %v1116 = vsel %vm1088, %v1083, %v830
        %v1118 = vsel %vm1088, %v1085, %v832
        %v1120 = vsel %vm1088, %v1087, %v834
        %vm1121 = vcmask 326656
        %v1123 = vsel %vm1121, %v1090, %v839
        %v1125 = vsel %vm1121, %v1092, %v841
        %v1127 = vsel %vm1121, %v1094, %v843
        %v1129 = vsel %vm1121, %v1096, %v845
        %v1131 = vsel %vm1121, %v1098, %v847
        %v1133 = vsel %vm1121, %v1100, %v849
        %v1135 = vsel %vm1121, %v1102, %v851
        %v1137 = vsel %vm1121, %v1104, %v853
        %v1139 = vsel %vm1121, %v1106, %v855
        %v1141 = vsel %vm1121, %v1108, %v857
        %v1143 = vsel %vm1121, %v1110, %v859
        %v1145 = vsel %vm1121, %v1112, %v861
        %v1147 = vsel %vm1121, %v1114, %v863
        %v1149 = vsel %vm1121, %v1116, %v865
        %v1151 = vsel %vm1121, %v1118, %v867
        %v1153 = vsel %vm1121, %v1120, %v869
        %vm1154 = vcmask 392192
        %v1156 = vsel %vm1154, %v1123, %v876
        %v1158 = vsel %vm1154, %v1125, %v878
        %v1160 = vsel %vm1154, %v1127, %v880
        %v1162 = vsel %vm1154, %v1129, %v882
        %v1164 = vsel %vm1154, %v1131, %v884
        %v1166 = vsel %vm1154, %v1133, %v886
        %v1168 = vsel %vm1154, %v1135, %v888
        %v1170 = vsel %vm1154, %v1137, %v890
        %v1172 = vsel %vm1154, %v1139, %v892
        %v1174 = vsel %vm1154, %v1141, %v894
        %v1176 = vsel %vm1154, %v1143, %v896
        %v1178 = vsel %vm1154, %v1145, %v898
        %v1180 = vsel %vm1154, %v1147, %v900
        %v1182 = vsel %vm1154, %v1149, %v902
        %v1184 = vsel %vm1154, %v1151, %v904
        %v1186 = vsel %vm1154, %v1153, %v906
        %vm1187 = vcmask 457728
        %v1189 = vsel %vm1187, %v1156, %v923
        %v1191 = vsel %vm1187, %v1158, %v925
        %v1193 = vsel %vm1187, %v1160, %v927
        %v1195 = vsel %vm1187, %v1162, %v929
        %v1197 = vsel %vm1187, %v1164, %v931
        %v1199 = vsel %vm1187, %v1166, %v933
        %v1201 = vsel %vm1187, %v1168, %v935
        %v1203 = vsel %vm1187, %v1170, %v937
        %v1205 = vsel %vm1187, %v1172, %v939
        %v1207 = vsel %vm1187, %v1174, %v941
        %v1209 = vsel %vm1187, %v1176, %v943
        %v1211 = vsel %vm1187, %v1178, %v945
        %v1213 = vsel %vm1187, %v1180, %v947
        %v1215 = vsel %vm1187, %v1182, %v949
        %v1217 = vsel %vm1187, %v1184, %v951
        %v1219 = vsel %vm1187, %v1186, %v953
        %vm1220 = vcmask 523264
        %v1222 = vsel %vm1220, %v1189, %v958
        %v1224 = vsel %vm1220, %v1191, %v960
        %v1226 = vsel %vm1220, %v1193, %v962
        %v1228 = vsel %vm1220, %v1195, %v964
        %v1230 = vsel %vm1220, %v1197, %v966
        %v1232 = vsel %vm1220, %v1199, %v968
        %v1234 = vsel %vm1220, %v1201, %v970
        %v1236 = vsel %vm1220, %v1203, %v972
        %v1238 = vsel %vm1220, %v1205, %v974
        %v1240 = vsel %vm1220, %v1207, %v976
        %v1242 = vsel %vm1220, %v1209, %v978
        %v1244 = vsel %vm1220, %v1211, %v980
        %v1246 = vsel %vm1220, %v1213, %v982
        %v1248 = vsel %vm1220, %v1215, %v984
        %v1250 = vsel %vm1220, %v1217, %v986
        %v1252 = vsel %vm1220, %v1219, %v988
        %v1253 = vld [vmem:[%s1] sm:$0xf]
        %v1254 = vld [vmem:[%s1 + $0x4] sm:$0xf]
        %v1255 = vld [vmem:[%s1 + $0x8] sm:$0xf]
        %v1256 = vld [vmem:[%s1 + $0xc] sm:$0xf]
        %v1257 = vld [vmem:[%s1 + $0x10] sm:$0xf]
        %v1258 = vld [vmem:[%s1 + $0x14] sm:$0xf]
        %v1259 = vld [vmem:[%s1 + $0x18] sm:$0xf]
        %v1260 = vld [vmem:[%s1 + $0x1c] sm:$0xf]
        %v1261 = vld [vmem:[%s1 + $0x20] sm:$0xf]
        %v1262 = vld [vmem:[%s2] sm:$0x1]
        %v1264 = vlaneseq
        %v1265 = vshrl.u32 %v1264, 7
        %v1266 = vsub.s32 0, %v1265
        %v1267 = vrot.slane %v1262, %v1266
        %v1278 = vunpack.c.l.b16 %v1253
        %v1279 = vunpack.c.l.b16 %v1254
        %v1280 = vunpack.c.l.b16 %v1255
        %v1281 = vunpack.c.l.b16 %v1256
        %v1282 = vunpack.c.l.b16 %v1257
        %v1283 = vunpack.c.l.b16 %v1258
        %v1284 = vunpack.c.l.b16 %v1259
        %v1285 = vunpack.c.l.b16 %v1260
        %v1286 = vunpack.c.l.b16 %v1261
        %v1287 = vpack.c.b16 %v1279, %v1278
        %v1288 = vpack.c.b16 %v1281, %v1280
        %v1289 = vpack.c.b16 %v1283, %v1282
        %v1290 = vpack.c.b16 %v1285, %v1284
        %v1291 = vpack.c.b16 %v1286, %v1286
        %vm1296 = vcmask 588800
        %v1297 = vsel %vm1296, %v1222, 0
        %v1299 = vsel %vm1296, %v1224, 0
        %v1301 = vsel %vm1296, %v1226, 0
        %v1303 = vsel %vm1296, %v1228, 0
        %v1305 = vsel %vm1296, %v1230, 0
        %v1307 = vsel %vm1296, %v1232, 0
        %v1309 = vsel %vm1296, %v1234, 0
        %v1311 = vsel %vm1296, %v1236, 0
        %v1313 = vsel %vm1296, %v1238, 0
        %v1315 = vsel %vm1296, %v1240, 0
        %v1317 = vsel %vm1296, %v1242, 0
        %v1319 = vsel %vm1296, %v1244, 0
        %v1321 = vsel %vm1296, %v1246, 0
        %v1323 = vsel %vm1296, %v1248, 0
        %v1325 = vsel %vm1296, %v1250, 0
        %v1327 = vsel %vm1296, %v1252, 0
        %vm1329 = vcmask 1043456
        %v1331 = vsel %vm1329, %v1291, 0
        %1333 = vmatprep.subr.bf16.mxu0 0
        %1334 = vmatpush1.bf16.msra.mxu0 0
        %1335 = vmatprep.subr.bf16.mxu0 0
        %1336 = vmatpush1.bf16.msra.mxu0 0
        %1337 = vmatprep.subr.bf16.mxu0 0
        %1338 = vmatpush1.bf16.msra.mxu0 0
        %1339 = vmatprep.subr.bf16.mxu0 0
        %1340 = vmatpush1.bf16.msra.mxu0 %v1331
        %1341 = vmatprep.subr.bf16.mxu0 0
        %1342 = vmatpush1.bf16.msra.mxu0 %v1290
        %1343 = vmatprep.subr.bf16.mxu0 0
        %1344 = vmatpush1.bf16.msra.mxu0 %v1289
        %1345 = vmatprep.subr.bf16.mxu0 0
        %1346 = vmatpush1.bf16.msra.mxu0 %v1288
        %1347 = vmatprep.subr.bf16.mxu0 0
        %1348 = vmatpush1.bf16.msra.mxu0 %v1287
        %1349 = vmatprep.subr.bf16.mxu0 0
        %1350 = vmatpush2.bf16.msra.mxu0 0
        %1351 = vmatprep.subr.bf16.mxu0 0
        %1352 = vmatpush2.bf16.msra.mxu0 0
        %1353 = vmatprep.subr.bf16.mxu0 0
        %1354 = vmatpush2.bf16.msra.mxu0 0
        %1355 = vmatprep.subr.bf16.mxu0 0
        %1356 = vmatpush2.bf16.msra.mxu0 0
        %1357 = vmatprep.subr.bf16.mxu0 0
        %1358 = vmatpush2.bf16.msra.mxu0 0
        %1359 = vmatprep.subr.bf16.mxu0 0
        %1360 = vmatpush2.bf16.msra.mxu0 0
        %1361 = vmatprep.subr.bf16.mxu0 0
        %1362 = vmatpush2.bf16.msra.mxu0 0
        %1363 = vmatprep.subr.bf16.mxu0 0
        %1364 = vmatpush2.bf16.msra.mxu0 0
        %1365 = vmatprep.mubr.bf16.mxu0 0
        %1366 = vmatmul.mubr.bf16.gmra.mxu0 %v1297
        %v1367 = vpop.f32.mrf.mxu0
        %v1368 = vadd.f32 %v1267, %v1367
        %v1369 = vpop.f32.mrf.mxu0
        %v1370 = vpop.f32.mrf.mxu0
        %v1371 = vadd.f32 %v1267, %v1370
        %v1372 = vpop.f32.mrf.mxu0
        %1373 = vmatprep.mubr.bf16.mxu0 0
        %1374 = vmatmul.mubr.bf16.gmra.mxu0 %v1299
        %v1375 = vpop.f32.mrf.mxu0
        %v1376 = vadd.f32 %v1267, %v1375
        %v1377 = vpop.f32.mrf.mxu0
        %v1378 = vpop.f32.mrf.mxu0
        %v1379 = vadd.f32 %v1267, %v1378
        %v1380 = vpop.f32.mrf.mxu0
        %1381 = vmatprep.mubr.bf16.mxu0 0
        %1382 = vmatmul.mubr.bf16.gmra.mxu0 %v1301
        %v1383 = vpop.f32.mrf.mxu0
        %v1384 = vadd.f32 %v1267, %v1383
        %v1385 = vpop.f32.mrf.mxu0
        %v1386 = vpop.f32.mrf.mxu0
        %v1387 = vadd.f32 %v1267, %v1386
        %v1388 = vpop.f32.mrf.mxu0
        %1389 = vmatprep.mubr.bf16.mxu0 0
        %1390 = vmatmul.mubr.bf16.gmra.mxu0 %v1303
        %v1391 = vpop.f32.mrf.mxu0
        %v1392 = vadd.f32 %v1267, %v1391
        %v1393 = vpop.f32.mrf.mxu0
        %v1394 = vpop.f32.mrf.mxu0
        %v1395 = vadd.f32 %v1267, %v1394
        %v1396 = vpop.f32.mrf.mxu0
        %1397 = vmatprep.mubr.bf16.mxu0 0
        %1398 = vmatmul.mubr.bf16.gmra.mxu0 %v1305
        %v1399 = vpop.f32.mrf.mxu0
        %v1400 = vadd.f32 %v1267, %v1399
        %v1401 = vpop.f32.mrf.mxu0
        %v1402 = vpop.f32.mrf.mxu0
        %v1403 = vadd.f32 %v1267, %v1402
        %v1404 = vpop.f32.mrf.mxu0
        %1405 = vmatprep.mubr.bf16.mxu0 0
        %1406 = vmatmul.mubr.bf16.gmra.mxu0 %v1307
        %v1407 = vpop.f32.mrf.mxu0
        %v1408 = vadd.f32 %v1267, %v1407
        %v1409 = vpop.f32.mrf.mxu0
        %v1410 = vpop.f32.mrf.mxu0
        %v1411 = vadd.f32 %v1267, %v1410
        %v1412 = vpop.f32.mrf.mxu0
        %1413 = vmatprep.mubr.bf16.mxu0 0
        %1414 = vmatmul.mubr.bf16.gmra.mxu0 %v1309
        %v1415 = vpop.f32.mrf.mxu0
        %v1416 = vadd.f32 %v1267, %v1415
        %v1417 = vpop.f32.mrf.mxu0
        %v1418 = vpop.f32.mrf.mxu0
        %v1419 = vadd.f32 %v1267, %v1418
        %v1420 = vpop.f32.mrf.mxu0
        %1421 = vmatprep.mubr.bf16.mxu0 0
        %1422 = vmatmul.mubr.bf16.gmra.mxu0 %v1311
        %v1423 = vpop.f32.mrf.mxu0
        %v1424 = vadd.f32 %v1267, %v1423
        %v1425 = vpop.f32.mrf.mxu0
        %v1426 = vpop.f32.mrf.mxu0
        %v1427 = vadd.f32 %v1267, %v1426
        %v1428 = vpop.f32.mrf.mxu0
        %1429 = vmatprep.mubr.bf16.mxu0 0
        %1430 = vmatmul.mubr.bf16.gmra.mxu0 %v1313
        %v1431 = vpop.f32.mrf.mxu0
        %v1432 = vadd.f32 %v1267, %v1431
        %v1433 = vpop.f32.mrf.mxu0
        %v1434 = vpop.f32.mrf.mxu0
        %v1435 = vadd.f32 %v1267, %v1434
        %v1436 = vpop.f32.mrf.mxu0
        %1437 = vmatprep.mubr.bf16.mxu0 0
        %1438 = vmatmul.mubr.bf16.gmra.mxu0 %v1315
        %v1439 = vpop.f32.mrf.mxu0
        %v1440 = vadd.f32 %v1267, %v1439
        %v1441 = vpop.f32.mrf.mxu0
        %v1442 = vpop.f32.mrf.mxu0
        %v1443 = vadd.f32 %v1267, %v1442
        %v1444 = vpop.f32.mrf.mxu0
        %1445 = vmatprep.mubr.bf16.mxu0 0
        %1446 = vmatmul.mubr.bf16.gmra.mxu0 %v1317
        %v1447 = vpop.f32.mrf.mxu0
        %v1448 = vadd.f32 %v1267, %v1447
        %v1449 = vpop.f32.mrf.mxu0
        %v1450 = vpop.f32.mrf.mxu0
        %v1451 = vadd.f32 %v1267, %v1450
        %v1452 = vpop.f32.mrf.mxu0
        %1453 = vmatprep.mubr.bf16.mxu0 0
        %1454 = vmatmul.mubr.bf16.gmra.mxu0 %v1319
        %v1455 = vpop.f32.mrf.mxu0
        %v1456 = vadd.f32 %v1267, %v1455
        %v1457 = vpop.f32.mrf.mxu0
        %v1458 = vpop.f32.mrf.mxu0
        %v1459 = vadd.f32 %v1267, %v1458
        %v1460 = vpop.f32.mrf.mxu0
        %1461 = vmatprep.mubr.bf16.mxu0 0
        %1462 = vmatmul.mubr.bf16.gmra.mxu0 %v1321
        %v1463 = vpop.f32.mrf.mxu0
        %v1464 = vadd.f32 %v1267, %v1463
        %v1465 = vpop.f32.mrf.mxu0
        %v1466 = vpop.f32.mrf.mxu0
        %v1467 = vadd.f32 %v1267, %v1466
        %v1468 = vpop.f32.mrf.mxu0
        %1469 = vmatprep.mubr.bf16.mxu0 0
        %1470 = vmatmul.mubr.bf16.gmra.mxu0 %v1323
        %v1471 = vpop.f32.mrf.mxu0
        %v1472 = vadd.f32 %v1267, %v1471
        %v1473 = vpop.f32.mrf.mxu0
        %v1474 = vpop.f32.mrf.mxu0
        %v1475 = vadd.f32 %v1267, %v1474
        %v1476 = vpop.f32.mrf.mxu0
        %1477 = vmatprep.mubr.bf16.mxu0 0
        %1478 = vmatmul.mubr.bf16.gmra.mxu0 %v1325
        %v1479 = vpop.f32.mrf.mxu0
        %v1480 = vadd.f32 %v1267, %v1479
        %v1481 = vpop.f32.mrf.mxu0
        %v1482 = vpop.f32.mrf.mxu0
        %v1483 = vadd.f32 %v1267, %v1482
        %v1484 = vpop.f32.mrf.mxu0
        %1485 = vmatprep.mubr.bf16.mxu0 0
        %1486 = vmatmul.mubr.bf16.gmra.mxu0 %v1327
        %v1487 = vpop.f32.mrf.mxu0
        %v1488 = vadd.f32 %v1267, %v1487
        %v1489 = vpop.f32.mrf.mxu0
        %v1490 = vpop.f32.mrf.mxu0
        %v1491 = vadd.f32 %v1267, %v1490
        %v1492 = vpop.f32.mrf.mxu0
        %1493 = vdwg.mxu0
        %vm1494 = vcmask 60416
        %1495 = vst.msk [vmem:[#allocation2] sm:$0xf] %vm1494, 0
        %1496 = vst.msk [vmem:[#allocation2 + $0x4] sm:$0xf] %vm1494, 0
        %vm1497 = vcmask 57344
        %1498 = vst.msk [vmem:[#allocation2 + $0x8] sm:$0x1] %vm1497, 0
        %1499 = vst.msk [vmem:[#allocation2 + $0xc] sm:$0xf] %vm1494, 0
        %1500 = vst.msk [vmem:[#allocation2 + $0x10] sm:$0xf] %vm1494, 0
        %1501 = vst.msk [vmem:[#allocation2 + $0x14] sm:$0x1] %vm1497, 0
        %1502 = vst.msk [vmem:[#allocation2 + $0x18] sm:$0xf] %vm1494, 0
        %1503 = vst.msk [vmem:[#allocation2 + $0x1c] sm:$0xf] %vm1494, 0
        %1504 = vst.msk [vmem:[#allocation2 + $0x20] sm:$0x1] %vm1497, 0
        %1505 = vst.msk [vmem:[#allocation2 + $0x24] sm:$0xf] %vm1494, 0
        %1506 = vst.msk [vmem:[#allocation2 + $0x28] sm:$0xf] %vm1494, 0
        %1507 = vst.msk [vmem:[#allocation2 + $0x2c] sm:$0x1] %vm1497, 0
        %1508 = vst.msk [vmem:[#allocation2 + $0x30] sm:$0xf] %vm1494, 0
        %1509 = vst.msk [vmem:[#allocation2 + $0x34] sm:$0xf] %vm1494, 0
        %1510 = vst.msk [vmem:[#allocation2 + $0x38] sm:$0x1] %vm1497, 0
        %1511 = vst.msk [vmem:[#allocation2 + $0x3c] sm:$0xf] %vm1494, 0
        %1512 = vst.msk [vmem:[#allocation2 + $0x40] sm:$0xf] %vm1494, 0
        %1513 = vst.msk [vmem:[#allocation2 + $0x44] sm:$0x1] %vm1497, 0
        %1514 = vst.msk [vmem:[#allocation2 + $0x48] sm:$0xf] %vm1494, 0
        %1515 = vst.msk [vmem:[#allocation2 + $0x4c] sm:$0xf] %vm1494, 0
        %1516 = vst.msk [vmem:[#allocation2 + $0x50] sm:$0x1] %vm1497, 0
        %1517 = vst.msk [vmem:[#allocation2 + $0x54] sm:$0xf] %vm1494, 0
        %1518 = vst.msk [vmem:[#allocation2 + $0x58] sm:$0xf] %vm1494, 0
        %1519 = vst.msk [vmem:[#allocation2 + $0x5c] sm:$0x1] %vm1497, 0
        %1520 = vst.msk [vmem:[#allocation2 + $0x60] sm:$0xf] %vm1494, 0
        %1521 = vst.msk [vmem:[#allocation2 + $0x64] sm:$0xf] %vm1494, 0
        %1522 = vst.msk [vmem:[#allocation2 + $0x68] sm:$0x1] %vm1497, 0
        %1523 = vst.msk [vmem:[#allocation2 + $0x6c] sm:$0xf] %vm1494, 0
        %1524 = vst.msk [vmem:[#allocation2 + $0x70] sm:$0xf] %vm1494, 0
        %1525 = vst.msk [vmem:[#allocation2 + $0x74] sm:$0x1] %vm1497, 0
        %1526 = vst.msk [vmem:[#allocation2 + $0x78] sm:$0xf] %vm1494, 0
        %1527 = vst.msk [vmem:[#allocation2 + $0x7c] sm:$0xf] %vm1494, 0
        %1528 = vst.msk [vmem:[#allocation2 + $0x80] sm:$0x1] %vm1497, 0
        %1529 = vst.msk [vmem:[#allocation2 + $0x84] sm:$0xf] %vm1494, 0
        %1530 = vst.msk [vmem:[#allocation2 + $0x88] sm:$0xf] %vm1494, 0
        %1531 = vst.msk [vmem:[#allocation2 + $0x8c] sm:$0x1] %vm1497, 0
        %1532 = vst.msk [vmem:[#allocation2 + $0x90] sm:$0xf] %vm1494, 0
        %1533 = vst.msk [vmem:[#allocation2 + $0x94] sm:$0xf] %vm1494, 0
        %1534 = vst.msk [vmem:[#allocation2 + $0x98] sm:$0x1] %vm1497, 0
        %1535 = vst.msk [vmem:[#allocation2 + $0x9c] sm:$0xf] %vm1494, 0
        %1536 = vst.msk [vmem:[#allocation2 + $0xa0] sm:$0xf] %vm1494, 0
        %1537 = vst.msk [vmem:[#allocation2 + $0xa4] sm:$0x1] %vm1497, 0
        %1538 = vst.msk [vmem:[#allocation2 + $0xa8] sm:$0xf] %vm1494, 0
        %1539 = vst.msk [vmem:[#allocation2 + $0xac] sm:$0xf] %vm1494, 0
        %1540 = vst.msk [vmem:[#allocation2 + $0xb0] sm:$0x1] %vm1497, 0
        %1541 = vst.msk [vmem:[#allocation2 + $0xb4] sm:$0xf] %vm1494, 0
        %1542 = vst.msk [vmem:[#allocation2 + $0xb8] sm:$0xf] %vm1494, 0
        %1543 = vst.msk [vmem:[#allocation2 + $0xbc] sm:$0x1] %vm1497, 0
        %1544 = vst.msk [vmem:[#allocation2 + $0xc0] sm:$0xf] %vm1494, 0
        %1545 = vst.msk [vmem:[#allocation2 + $0xc4] sm:$0xf] %vm1494, 0
        %1546 = vst.msk [vmem:[#allocation2 + $0xc8] sm:$0x1] %vm1497, 0
        %1547 = vst.msk [vmem:[#allocation2 + $0xcc] sm:$0xf] %vm1494, 0
        %1548 = vst.msk [vmem:[#allocation2 + $0xd0] sm:$0xf] %vm1494, 0
        %1549 = vst.msk [vmem:[#allocation2 + $0xd4] sm:$0x1] %vm1497, 0
        %v1550 = vpack.c.bf16 %v1371, %v1368
        %v1551 = vpack.c.bf16 %v1379, %v1376
        %v1552 = vpack.c.bf16 %v1387, %v1384
        %v1553 = vpack.c.bf16 %v1395, %v1392
        %v1554 = vpack.c.bf16 %v1403, %v1400
        %v1555 = vpack.c.bf16 %v1411, %v1408
        %v1556 = vpack.c.bf16 %v1419, %v1416
        %v1557 = vpack.c.bf16 %v1427, %v1424
        %v1558 = vpack.c.bf16 %v1435, %v1432
        %v1559 = vpack.c.bf16 %v1443, %v1440
        %v1560 = vpack.c.bf16 %v1451, %v1448
        %v1561 = vpack.c.bf16 %v1459, %v1456
        %v1562 = vpack.c.bf16 %v1467, %v1464
        %v1563 = vpack.c.bf16 %v1475, %v1472
        %v1564 = vpack.c.bf16 %v1483, %v1480
        %v1565 = vpack.c.bf16 %v1491, %v1488
        %v1582 = vunpack.c.l.b16 %v1550
        %v1583 = vunpack.c.h.b16 %v1550
        %v1584 = vunpack.c.l.b16 %v1551
        %v1585 = vunpack.c.h.b16 %v1551
        %v1586 = vunpack.c.l.b16 %v1552
        %v1587 = vunpack.c.h.b16 %v1552
        %v1588 = vunpack.c.l.b16 %v1553
        %v1589 = vunpack.c.h.b16 %v1553
        %v1590 = vunpack.c.l.b16 %v1554
        %v1591 = vunpack.c.h.b16 %v1554
        %v1592 = vunpack.c.l.b16 %v1555
        %v1593 = vunpack.c.h.b16 %v1555
        %v1594 = vunpack.c.l.b16 %v1556
        %v1595 = vunpack.c.h.b16 %v1556
        %v1596 = vunpack.c.l.b16 %v1557
        %v1597 = vunpack.c.h.b16 %v1557
        %v1598 = vunpack.c.l.b16 %v1558
        %v1599 = vunpack.c.h.b16 %v1558
        %v1600 = vunpack.c.l.b16 %v1559
        %v1601 = vunpack.c.h.b16 %v1559
        %v1602 = vunpack.c.l.b16 %v1560
        %v1603 = vunpack.c.h.b16 %v1560
        %v1604 = vunpack.c.l.b16 %v1561
        %v1605 = vunpack.c.h.b16 %v1561
        %v1606 = vunpack.c.l.b16 %v1562
        %v1607 = vunpack.c.h.b16 %v1562
        %v1608 = vunpack.c.l.b16 %v1563
        %v1609 = vunpack.c.h.b16 %v1563
        %v1610 = vunpack.c.l.b16 %v1564
        %v1611 = vunpack.c.h.b16 %v1564
        %v1612 = vunpack.c.l.b16 %v1565
        %v1613 = vunpack.c.h.b16 %v1565
        %v1614 = vpack.c.b16 %v1582, %v1582
        %v1615 = vpack.c.b16 %v1583, %v1583
        %v1616 = vpack.c.b16 %v1584, %v1584
        %v1617 = vpack.c.b16 %v1585, %v1585
        %v1618 = vpack.c.b16 %v1586, %v1586
        %v1619 = vpack.c.b16 %v1587, %v1587
        %v1620 = vpack.c.b16 %v1588, %v1588
        %v1621 = vpack.c.b16 %v1589, %v1589
        %v1622 = vpack.c.b16 %v1590, %v1590
        %v1623 = vpack.c.b16 %v1591, %v1591
        %v1624 = vpack.c.b16 %v1592, %v1592
        %v1625 = vpack.c.b16 %v1593, %v1593
        %v1626 = vpack.c.b16 %v1594, %v1594
        %v1627 = vpack.c.b16 %v1595, %v1595
        %v1628 = vpack.c.b16 %v1596, %v1596
        %v1629 = vpack.c.b16 %v1597, %v1597
        %v1630 = vpack.c.b16 %v1598, %v1598
        %v1631 = vpack.c.b16 %v1599, %v1599
        %v1632 = vpack.c.b16 %v1600, %v1600
        %v1633 = vpack.c.b16 %v1601, %v1601
        %v1634 = vpack.c.b16 %v1602, %v1602
        %v1635 = vpack.c.b16 %v1603, %v1603
        %v1636 = vpack.c.b16 %v1604, %v1604
        %v1637 = vpack.c.b16 %v1605, %v1605
        %v1638 = vpack.c.b16 %v1606, %v1606
        %v1639 = vpack.c.b16 %v1607, %v1607
        %v1640 = vpack.c.b16 %v1608, %v1608
        %v1641 = vpack.c.b16 %v1609, %v1609
        %v1642 = vpack.c.b16 %v1610, %v1610
        %v1643 = vpack.c.b16 %v1611, %v1611
        %v1644 = vpack.c.b16 %v1612, %v1612
        %v1645 = vpack.c.b16 %v1613, %v1613
        %vm1646 = vsmask.f32 256
        %vm1647 = vsmask.f32 4368
        %vm1648 = vmor %vm1646, %vm1647
        %v1650 = vshrl.u32 %v1614, 16
        %v1652 = vrot.slane %v1650, 7
        %v1653 = vshll.u32 %v1614, 16
        %v1655 = vor.u32 %v1652, %v1653
        %v1656 = vrot.slane %v1652, 4
        %v1658 = vshrl.u32 %v1615, 16
        %v1660 = vrot.slane %v1658, 7
        %v1661 = vshll.u32 %v1615, 16
        %v1663 = vor.u32 %v1660, %v1661
        %v1664 = vsel %vm1648, %v1656, %v1663
        %v1665 = vrot.slane %v1660, 4
        %v1667 = vshrl.u32 %v1616, 16
        %v1669 = vrot.slane %v1667, 7
        %v1670 = vshll.u32 %v1616, 16
        %v1672 = vor.u32 %v1669, %v1670
        %v1673 = vrot.slane %v1669, 4
        %v1675 = vshrl.u32 %v1617, 16
        %v1677 = vrot.slane %v1675, 7
        %v1678 = vshll.u32 %v1617, 16
        %v1680 = vor.u32 %v1677, %v1678
        %v1681 = vsel %vm1648, %v1673, %v1680
        %v1682 = vrot.slane %v1677, 4
        %v1684 = vshrl.u32 %v1618, 16
        %v1686 = vrot.slane %v1684, 7
        %v1687 = vshll.u32 %v1618, 16
        %v1689 = vor.u32 %v1686, %v1687
        %v1690 = vrot.slane %v1686, 4
        %v1692 = vshrl.u32 %v1619, 16
        %v1694 = vrot.slane %v1692, 7
        %v1695 = vshll.u32 %v1619, 16
        %v1697 = vor.u32 %v1694, %v1695
        %v1698 = vsel %vm1648, %v1690, %v1697
        %v1699 = vrot.slane %v1694, 4
        %v1701 = vshrl.u32 %v1620, 16
        %v1703 = vrot.slane %v1701, 7
        %v1704 = vshll.u32 %v1620, 16
        %v1706 = vor.u32 %v1703, %v1704
        %v1707 = vrot.slane %v1703, 4
        %v1709 = vshrl.u32 %v1621, 16
        %v1711 = vrot.slane %v1709, 7
        %v1712 = vshll.u32 %v1621, 16
        %v1714 = vor.u32 %v1711, %v1712
        %v1715 = vsel %vm1648, %v1707, %v1714
        %v1716 = vrot.slane %v1711, 4
        %v1718 = vshrl.u32 %v1622, 16
        %v1720 = vrot.slane %v1718, 7
        %v1721 = vshll.u32 %v1622, 16
        %v1723 = vor.u32 %v1720, %v1721
        %v1724 = vrot.slane %v1720, 4
        %v1726 = vshrl.u32 %v1623, 16
        %v1728 = vrot.slane %v1726, 7
        %v1729 = vshll.u32 %v1623, 16
        %v1731 = vor.u32 %v1728, %v1729
        %v1732 = vsel %vm1648, %v1724, %v1731
        %v1733 = vrot.slane %v1728, 4
        %v1735 = vshrl.u32 %v1624, 16
        %v1737 = vrot.slane %v1735, 7
        %v1738 = vshll.u32 %v1624, 16
        %v1740 = vor.u32 %v1737, %v1738
        %v1741 = vrot.slane %v1737, 4
        %v1743 = vshrl.u32 %v1625, 16
        %v1745 = vrot.slane %v1743, 7
        %v1746 = vshll.u32 %v1625, 16
        %v1748 = vor.u32 %v1745, %v1746
        %v1749 = vsel %vm1648, %v1741, %v1748
        %v1750 = vrot.slane %v1745, 4
        %v1752 = vshrl.u32 %v1626, 16
        %v1754 = vrot.slane %v1752, 7
        %v1755 = vshll.u32 %v1626, 16
        %v1757 = vor.u32 %v1754, %v1755
        %v1758 = vrot.slane %v1754, 4
        %v1760 = vshrl.u32 %v1627, 16
        %v1762 = vrot.slane %v1760, 7
        %v1763 = vshll.u32 %v1627, 16
        %v1765 = vor.u32 %v1762, %v1763
        %v1766 = vsel %vm1648, %v1758, %v1765
        %v1767 = vrot.slane %v1762, 4
        %v1769 = vshrl.u32 %v1628, 16
        %v1771 = vrot.slane %v1769, 7
        %v1772 = vshll.u32 %v1628, 16
        %v1774 = vor.u32 %v1771, %v1772
        %v1775 = vrot.slane %v1771, 4
        %v1777 = vshrl.u32 %v1629, 16
        %v1779 = vrot.slane %v1777, 7
        %v1780 = vshll.u32 %v1629, 16
        %v1782 = vor.u32 %v1779, %v1780
        %v1783 = vsel %vm1648, %v1775, %v1782
        %v1784 = vrot.slane %v1779, 4
        %v1786 = vshrl.u32 %v1630, 16
        %v1788 = vrot.slane %v1786, 7
        %v1789 = vshll.u32 %v1630, 16
        %v1791 = vor.u32 %v1788, %v1789
        %v1792 = vrot.slane %v1788, 4
        %v1794 = vshrl.u32 %v1631, 16
        %v1796 = vrot.slane %v1794, 7
        %v1797 = vshll.u32 %v1631, 16
        %v1799 = vor.u32 %v1796, %v1797
        %v1800 = vsel %vm1648, %v1792, %v1799
        %v1801 = vrot.slane %v1796, 4
        %v1803 = vshrl.u32 %v1632, 16
        %v1805 = vrot.slane %v1803, 7
        %v1806 = vshll.u32 %v1632, 16
        %v1808 = vor.u32 %v1805, %v1806
        %v1809 = vrot.slane %v1805, 4
        %v1811 = vshrl.u32 %v1633, 16
        %v1813 = vrot.slane %v1811, 7
        %v1814 = vshll.u32 %v1633, 16
        %v1816 = vor.u32 %v1813, %v1814
        %v1817 = vsel %vm1648, %v1809, %v1816
        %v1818 = vrot.slane %v1813, 4
        %v1820 = vshrl.u32 %v1634, 16
        %v1822 = vrot.slane %v1820, 7
        %v1823 = vshll.u32 %v1634, 16
        %v1825 = vor.u32 %v1822, %v1823
        %v1826 = vrot.slane %v1822, 4
        %v1828 = vshrl.u32 %v1635, 16
        %v1830 = vrot.slane %v1828, 7
        %v1831 = vshll.u32 %v1635, 16
        %v1833 = vor.u32 %v1830, %v1831
        %v1834 = vsel %vm1648, %v1826, %v1833
        %v1835 = vrot.slane %v1830, 4
        %v1837 = vshrl.u32 %v1636, 16
        %v1839 = vrot.slane %v1837, 7
        %v1840 = vshll.u32 %v1636, 16
        %v1842 = vor.u32 %v1839, %v1840
        %v1843 = vrot.slane %v1839, 4
        %v1845 = vshrl.u32 %v1637, 16
        %v1847 = vrot.slane %v1845, 7
        %v1848 = vshll.u32 %v1637, 16
        %v1850 = vor.u32 %v1847, %v1848
        %v1851 = vsel %vm1648, %v1843, %v1850
        %v1852 = vrot.slane %v1847, 4
        %v1854 = vshrl.u32 %v1638, 16
        %v1856 = vrot.slane %v1854, 7
        %v1857 = vshll.u32 %v1638, 16
        %v1859 = vor.u32 %v1856, %v1857
        %v1860 = vrot.slane %v1856, 4
        %v1862 = vshrl.u32 %v1639, 16
        %v1864 = vrot.slane %v1862, 7
        %v1865 = vshll.u32 %v1639, 16
        %v1867 = vor.u32 %v1864, %v1865
        %v1868 = vsel %vm1648, %v1860, %v1867
        %v1869 = vrot.slane %v1864, 4
        %v1871 = vshrl.u32 %v1640, 16
        %v1873 = vrot.slane %v1871, 7
        %v1874 = vshll.u32 %v1640, 16
        %v1876 = vor.u32 %v1873, %v1874
        %v1877 = vrot.slane %v1873, 4
        %v1879 = vshrl.u32 %v1641, 16
        %v1881 = vrot.slane %v1879, 7
        %v1882 = vshll.u32 %v1641, 16
        %v1884 = vor.u32 %v1881, %v1882
        %v1885 = vsel %vm1648, %v1877, %v1884
        %v1886 = vrot.slane %v1881, 4
        %v1888 = vshrl.u32 %v1642, 16
        %v1890 = vrot.slane %v1888, 7
        %v1891 = vshll.u32 %v1642, 16
        %v1893 = vor.u32 %v1890, %v1891
        %v1894 = vrot.slane %v1890, 4
        %v1896 = vshrl.u32 %v1643, 16
        %v1898 = vrot.slane %v1896, 7
        %v1899 = vshll.u32 %v1643, 16
        %v1901 = vor.u32 %v1898, %v1899
        %v1902 = vsel %vm1648, %v1894, %v1901
        %v1903 = vrot.slane %v1898, 4
        %v1905 = vshrl.u32 %v1644, 16
        %v1907 = vrot.slane %v1905, 7
        %v1908 = vshll.u32 %v1644, 16
        %v1910 = vor.u32 %v1907, %v1908
        %v1911 = vrot.slane %v1907, 4
        %v1913 = vshrl.u32 %v1645, 16
        %v1915 = vrot.slane %v1913, 7
        %v1916 = vshll.u32 %v1645, 16
        %v1918 = vor.u32 %v1915, %v1916
        %v1919 = vsel %vm1648, %v1911, %v1918
        %v1920 = vrot.slane %v1915, 4
        %s1969 = scalar_lea.vmem [#allocation2], 12
        %vm1970 = vcmask 60416
        %vm1971 = vsmask.f32 7938
        %vm1972 = vmand %vm1970, %vm1971
        %v1973 = vld [vmem:[%s1969] sm:$0xf]
        %v1974 = vsel %vm1972, %v1655, %v1973
        %1975 = vst [vmem:[%s1969] sm:$0xf] %v1974
        %1976 = vst.msk [vmem:[%s1969 + $0x4] sm:$0xf] %vm1494, %v1664
        %vm1977 = vcmask 57344
        %vm1978 = vmand %vm1977, %vm1646
        %v1979 = vld [vmem:[%s1969 + $0x8] sm:$0x1]
        %v1980 = vsel %vm1978, %v1665, %v1979
        %1981 = vst [vmem:[%s1969 + $0x8] sm:$0x1] %v1980
        %v1982 = vld [vmem:[%s1969 + $0xc] sm:$0xf]
        %v1983 = vsel %vm1972, %v1672, %v1982
        %1984 = vst [vmem:[%s1969 + $0xc] sm:$0xf] %v1983
        %1985 = vst.msk [vmem:[%s1969 + $0x10] sm:$0xf] %vm1494, %v1681
        %v1986 = vld [vmem:[%s1969 + $0x14] sm:$0x1]
        %v1987 = vsel %vm1978, %v1682, %v1986
        %1988 = vst [vmem:[%s1969 + $0x14] sm:$0x1] %v1987
        %v1989 = vld [vmem:[%s1969 + $0x18] sm:$0xf]
        %v1990 = vsel %vm1972, %v1689, %v1989
        %1991 = vst [vmem:[%s1969 + $0x18] sm:$0xf] %v1990
        %1992 = vst.msk [vmem:[%s1969 + $0x1c] sm:$0xf] %vm1494, %v1698
        %v1993 = vld [vmem:[%s1969 + $0x20] sm:$0x1]
        %v1994 = vsel %vm1978, %v1699, %v1993
        %1995 = vst [vmem:[%s1969 + $0x20] sm:$0x1] %v1994
        %v1996 = vld [vmem:[%s1969 + $0x24] sm:$0xf]
        %v1997 = vsel %vm1972, %v1706, %v1996
        %1998 = vst [vmem:[%s1969 + $0x24] sm:$0xf] %v1997
        %1999 = vst.msk [vmem:[%s1969 + $0x28] sm:$0xf] %vm1494, %v1715
        %v2000 = vld [vmem:[%s1969 + $0x2c] sm:$0x1]
        %v2001 = vsel %vm1978, %v1716, %v2000
        %2002 = vst [vmem:[%s1969 + $0x2c] sm:$0x1] %v2001
        %v2003 = vld [vmem:[%s1969 + $0x30] sm:$0xf]
        %v2004 = vsel %vm1972, %v1723, %v2003
        %2005 = vst [vmem:[%s1969 + $0x30] sm:$0xf] %v2004
        %2006 = vst.msk [vmem:[%s1969 + $0x34] sm:$0xf] %vm1494, %v1732
        %v2007 = vld [vmem:[%s1969 + $0x38] sm:$0x1]
        %v2008 = vsel %vm1978, %v1733, %v2007
        %2009 = vst [vmem:[%s1969 + $0x38] sm:$0x1] %v2008
        %v2010 = vld [vmem:[%s1969 + $0x3c] sm:$0xf]
        %v2011 = vsel %vm1972, %v1740, %v2010
        %2012 = vst [vmem:[%s1969 + $0x3c] sm:$0xf] %v2011
        %2013 = vst.msk [vmem:[%s1969 + $0x40] sm:$0xf] %vm1494, %v1749
        %v2014 = vld [vmem:[%s1969 + $0x44] sm:$0x1]
        %v2015 = vsel %vm1978, %v1750, %v2014
        %2016 = vst [vmem:[%s1969 + $0x44] sm:$0x1] %v2015
        %v2017 = vld [vmem:[%s1969 + $0x48] sm:$0xf]
        %v2018 = vsel %vm1972, %v1757, %v2017
        %2019 = vst [vmem:[%s1969 + $0x48] sm:$0xf] %v2018
        %2020 = vst.msk [vmem:[%s1969 + $0x4c] sm:$0xf] %vm1494, %v1766
        %v2021 = vld [vmem:[%s1969 + $0x50] sm:$0x1]
        %v2022 = vsel %vm1978, %v1767, %v2021
        %2023 = vst [vmem:[%s1969 + $0x50] sm:$0x1] %v2022
        %v2024 = vld [vmem:[%s1969 + $0x54] sm:$0xf]
        %v2025 = vsel %vm1972, %v1774, %v2024
        %2026 = vst [vmem:[%s1969 + $0x54] sm:$0xf] %v2025
        %2027 = vst.msk [vmem:[%s1969 + $0x58] sm:$0xf] %vm1494, %v1783
        %v2028 = vld [vmem:[%s1969 + $0x5c] sm:$0x1]
        %v2029 = vsel %vm1978, %v1784, %v2028
        %2030 = vst [vmem:[%s1969 + $0x5c] sm:$0x1] %v2029
        %v2031 = vld [vmem:[%s1969 + $0x60] sm:$0xf]
        %v2032 = vsel %vm1972, %v1791, %v2031
        %2033 = vst [vmem:[%s1969 + $0x60] sm:$0xf] %v2032
        %2034 = vst.msk [vmem:[%s1969 + $0x64] sm:$0xf] %vm1494, %v1800
        %v2035 = vld [vmem:[%s1969 + $0x68] sm:$0x1]
        %v2036 = vsel %vm1978, %v1801, %v2035
        %2037 = vst [vmem:[%s1969 + $0x68] sm:$0x1] %v2036
        %v2038 = vld [vmem:[%s1969 + $0x6c] sm:$0xf]
        %v2039 = vsel %vm1972, %v1808, %v2038
        %2040 = vst [vmem:[%s1969 + $0x6c] sm:$0xf] %v2039
        %2041 = vst.msk [vmem:[%s1969 + $0x70] sm:$0xf] %vm1494, %v1817
        %v2042 = vld [vmem:[%s1969 + $0x74] sm:$0x1]
        %v2043 = vsel %vm1978, %v1818, %v2042
        %2044 = vst [vmem:[%s1969 + $0x74] sm:$0x1] %v2043
        %v2045 = vld [vmem:[%s1969 + $0x78] sm:$0xf]
        %v2046 = vsel %vm1972, %v1825, %v2045
        %2047 = vst [vmem:[%s1969 + $0x78] sm:$0xf] %v2046
        %2048 = vst.msk [vmem:[%s1969 + $0x7c] sm:$0xf] %vm1494, %v1834
        %v2049 = vld [vmem:[%s1969 + $0x80] sm:$0x1]
        %v2050 = vsel %vm1978, %v1835, %v2049
        %2051 = vst [vmem:[%s1969 + $0x80] sm:$0x1] %v2050
        %v2052 = vld [vmem:[%s1969 + $0x84] sm:$0xf]
        %v2053 = vsel %vm1972, %v1842, %v2052
        %2054 = vst [vmem:[%s1969 + $0x84] sm:$0xf] %v2053
        %2055 = vst.msk [vmem:[%s1969 + $0x88] sm:$0xf] %vm1494, %v1851
        %v2056 = vld [vmem:[%s1969 + $0x8c] sm:$0x1]
        %v2057 = vsel %vm1978, %v1852, %v2056
        %2058 = vst [vmem:[%s1969 + $0x8c] sm:$0x1] %v2057
        %v2059 = vld [vmem:[%s1969 + $0x90] sm:$0xf]
        %v2060 = vsel %vm1972, %v1859, %v2059
        %2061 = vst [vmem:[%s1969 + $0x90] sm:$0xf] %v2060
        %2062 = vst.msk [vmem:[%s1969 + $0x94] sm:$0xf] %vm1494, %v1868
        %v2063 = vld [vmem:[%s1969 + $0x98] sm:$0x1]
        %v2064 = vsel %vm1978, %v1869, %v2063
        %2065 = vst [vmem:[%s1969 + $0x98] sm:$0x1] %v2064
        %v2066 = vld [vmem:[%s1969 + $0x9c] sm:$0xf]
        %v2067 = vsel %vm1972, %v1876, %v2066
        %2068 = vst [vmem:[%s1969 + $0x9c] sm:$0xf] %v2067
        %2069 = vst.msk [vmem:[%s1969 + $0xa0] sm:$0xf] %vm1494, %v1885
        %v2070 = vld [vmem:[%s1969 + $0xa4] sm:$0x1]
        %v2071 = vsel %vm1978, %v1886, %v2070
        %2072 = vst [vmem:[%s1969 + $0xa4] sm:$0x1] %v2071
        %v2073 = vld [vmem:[%s1969 + $0xa8] sm:$0xf]
        %v2074 = vsel %vm1972, %v1893, %v2073
        %2075 = vst [vmem:[%s1969 + $0xa8] sm:$0xf] %v2074
        %2076 = vst.msk [vmem:[%s1969 + $0xac] sm:$0xf] %vm1494, %v1902
        %v2077 = vld [vmem:[%s1969 + $0xb0] sm:$0x1]
        %v2078 = vsel %vm1978, %v1903, %v2077
        %2079 = vst [vmem:[%s1969 + $0xb0] sm:$0x1] %v2078
        %v2080 = vld [vmem:[%s1969 + $0xb4] sm:$0xf]
        %v2081 = vsel %vm1972, %v1910, %v2080
        %2082 = vst [vmem:[%s1969 + $0xb4] sm:$0xf] %v2081
        %2083 = vst.msk [vmem:[%s1969 + $0xb8] sm:$0xf] %vm1494, %v1919
        %v2084 = vld [vmem:[%s1969 + $0xbc] sm:$0x1]
        %v2085 = vsel %vm1978, %v1920, %v2084
        %2086 = vst [vmem:[%s1969 + $0xbc] sm:$0x1] %v2085
        %v2087 = vld [vmem:[#allocation2] sm:$0xf]
        %v2088 = vld [vmem:[#allocation2 + $0x4] sm:$0xf]
        %v2089 = vld [vmem:[#allocation2 + $0x8] sm:$0x1]
        %v2090 = vld [vmem:[#allocation2 + $0xc] sm:$0xf]
        %v2091 = vld [vmem:[#allocation2 + $0x10] sm:$0xf]
        %v2092 = vld [vmem:[#allocation2 + $0x14] sm:$0x1]
        %v2093 = vld [vmem:[#allocation2 + $0x18] sm:$0xf]
        %v2094 = vld [vmem:[#allocation2 + $0x1c] sm:$0xf]
        %v2095 = vld [vmem:[#allocation2 + $0x20] sm:$0x1]
        %v2096 = vld [vmem:[#allocation2 + $0x24] sm:$0xf]
        %v2097 = vld [vmem:[#allocation2 + $0x28] sm:$0xf]
        %v2098 = vld [vmem:[#allocation2 + $0x2c] sm:$0x1]
        %v2099 = vld [vmem:[#allocation2 + $0x30] sm:$0xf]
        %v2100 = vld [vmem:[#allocation2 + $0x34] sm:$0xf]
        %v2101 = vld [vmem:[#allocation2 + $0x38] sm:$0x1]
        %v2102 = vld [vmem:[#allocation2 + $0x3c] sm:$0xf]
        %v2103 = vld [vmem:[#allocation2 + $0x40] sm:$0xf]
        %v2104 = vld [vmem:[#allocation2 + $0x44] sm:$0x1]
        %v2105 = vld [vmem:[#allocation2 + $0x48] sm:$0xf]
        %v2106 = vld [vmem:[#allocation2 + $0x4c] sm:$0xf]
        %v2107 = vld [vmem:[#allocation2 + $0x50] sm:$0x1]
        %v2108 = vld [vmem:[#allocation2 + $0x54] sm:$0xf]
        %v2109 = vld [vmem:[#allocation2 + $0x58] sm:$0xf]
        %v2110 = vld [vmem:[#allocation2 + $0x5c] sm:$0x1]
        %v2111 = vld [vmem:[#allocation2 + $0x60] sm:$0xf]
        %v2112 = vld [vmem:[#allocation2 + $0x64] sm:$0xf]
        %v2113 = vld [vmem:[#allocation2 + $0x68] sm:$0x1]
        %v2114 = vld [vmem:[#allocation2 + $0x6c] sm:$0xf]
        %v2115 = vld [vmem:[#allocation2 + $0x70] sm:$0xf]
        %v2116 = vld [vmem:[#allocation2 + $0x74] sm:$0x1]
        %v2117 = vld [vmem:[#allocation2 + $0x78] sm:$0xf]
        %v2118 = vld [vmem:[#allocation2 + $0x7c] sm:$0xf]
        %v2119 = vld [vmem:[#allocation2 + $0x80] sm:$0x1]
        %v2120 = vld [vmem:[#allocation2 + $0x84] sm:$0xf]
        %v2121 = vld [vmem:[#allocation2 + $0x88] sm:$0xf]
        %v2122 = vld [vmem:[#allocation2 + $0x8c] sm:$0x1]
        %v2123 = vld [vmem:[#allocation2 + $0x90] sm:$0xf]
        %v2124 = vld [vmem:[#allocation2 + $0x94] sm:$0xf]
        %v2125 = vld [vmem:[#allocation2 + $0x98] sm:$0x1]
        %v2126 = vld [vmem:[#allocation2 + $0x9c] sm:$0xf]
        %v2127 = vld [vmem:[#allocation2 + $0xa0] sm:$0xf]
        %v2128 = vld [vmem:[#allocation2 + $0xa4] sm:$0x1]
        %v2129 = vld [vmem:[#allocation2 + $0xa8] sm:$0xf]
        %v2130 = vld [vmem:[#allocation2 + $0xac] sm:$0xf]
        %v2131 = vld [vmem:[#allocation2 + $0xb0] sm:$0x1]
        %v2132 = vld [vmem:[#allocation2 + $0xb4] sm:$0xf]
        %v2133 = vld [vmem:[#allocation2 + $0xb8] sm:$0xf]
        %v2134 = vld [vmem:[#allocation2 + $0xbc] sm:$0x1]
        %v2135 = vld [vmem:[#allocation2 + $0xc0] sm:$0xf]
        %v2136 = vld [vmem:[#allocation2 + $0xc4] sm:$0xf]
        %v2137 = vld [vmem:[#allocation2 + $0xc8] sm:$0x1]
        %v2138 = vld [vmem:[#allocation2 + $0xcc] sm:$0xf]
        %v2139 = vld [vmem:[#allocation2 + $0xd0] sm:$0xf]
        %v2140 = vld [vmem:[#allocation2 + $0xd4] sm:$0x1]
        %v2173 = vunpack.c.l.b16 %v2087
        %v2174 = vunpack.c.l.b16 %v2088
        %v2175 = vunpack.c.l.b16 %v2090
        %v2176 = vunpack.c.l.b16 %v2091
        %v2177 = vunpack.c.l.b16 %v2093
        %v2178 = vunpack.c.l.b16 %v2094
        %v2179 = vunpack.c.l.b16 %v2096
        %v2180 = vunpack.c.l.b16 %v2097
        %v2181 = vunpack.c.l.b16 %v2099
        %v2182 = vunpack.c.l.b16 %v2100
        %v2183 = vunpack.c.l.b16 %v2102
        %v2184 = vunpack.c.l.b16 %v2103
        %v2185 = vunpack.c.l.b16 %v2105
        %v2186 = vunpack.c.l.b16 %v2106
        %v2187 = vunpack.c.l.b16 %v2108
        %v2188 = vunpack.c.l.b16 %v2109
        %v2189 = vunpack.c.l.b16 %v2111
        %v2190 = vunpack.c.l.b16 %v2112
        %v2191 = vunpack.c.l.b16 %v2114
        %v2192 = vunpack.c.l.b16 %v2115
        %v2193 = vunpack.c.l.b16 %v2117
        %v2194 = vunpack.c.l.b16 %v2118
        %v2195 = vunpack.c.l.b16 %v2120
        %v2196 = vunpack.c.l.b16 %v2121
        %v2197 = vunpack.c.l.b16 %v2123
        %v2198 = vunpack.c.l.b16 %v2124
        %v2199 = vunpack.c.l.b16 %v2126
        %v2200 = vunpack.c.l.b16 %v2127
        %v2201 = vunpack.c.l.b16 %v2129
        %v2202 = vunpack.c.l.b16 %v2130
        %v2203 = vunpack.c.l.b16 %v2132
        %v2204 = vunpack.c.l.b16 %v2133
        %v2205 = vpack.c.b16 %v2174, %v2173
        %v2206 = vpack.c.b16 %v2176, %v2175
        %v2207 = vpack.c.b16 %v2178, %v2177
        %v2208 = vpack.c.b16 %v2180, %v2179
        %v2209 = vpack.c.b16 %v2182, %v2181
        %v2210 = vpack.c.b16 %v2184, %v2183
        %v2211 = vpack.c.b16 %v2186, %v2185
        %v2212 = vpack.c.b16 %v2188, %v2187
        %v2213 = vpack.c.b16 %v2190, %v2189
        %v2214 = vpack.c.b16 %v2192, %v2191
        %v2215 = vpack.c.b16 %v2194, %v2193
        %v2216 = vpack.c.b16 %v2196, %v2195
        %v2217 = vpack.c.b16 %v2198, %v2197
        %v2218 = vpack.c.b16 %v2200, %v2199
        %v2219 = vpack.c.b16 %v2202, %v2201
        %v2220 = vpack.c.b16 %v2204, %v2203
        %v2237 = vunpack.c.l.b16 %v2089
        %v2238 = vunpack.c.l.b16 %v2092
        %v2239 = vunpack.c.l.b16 %v2095
        %v2240 = vunpack.c.l.b16 %v2098
        %v2241 = vunpack.c.l.b16 %v2101
        %v2242 = vunpack.c.l.b16 %v2104
        %v2243 = vunpack.c.l.b16 %v2107
        %v2244 = vunpack.c.l.b16 %v2110
        %v2245 = vunpack.c.l.b16 %v2113
        %v2246 = vunpack.c.l.b16 %v2116
        %v2247 = vunpack.c.l.b16 %v2119
        %v2248 = vunpack.c.l.b16 %v2122
        %v2249 = vunpack.c.l.b16 %v2125
        %v2250 = vunpack.c.l.b16 %v2128
        %v2251 = vunpack.c.l.b16 %v2131
        %v2252 = vunpack.c.l.b16 %v2134
        %v2253 = vpack.c.b16 %v2237, %v2237
        %v2254 = vpack.c.b16 %v2238, %v2238
        %v2255 = vpack.c.b16 %v2239, %v2239
        %v2256 = vpack.c.b16 %v2240, %v2240
        %v2257 = vpack.c.b16 %v2241, %v2241
        %v2258 = vpack.c.b16 %v2242, %v2242
        %v2259 = vpack.c.b16 %v2243, %v2243
        %v2260 = vpack.c.b16 %v2244, %v2244
        %v2261 = vpack.c.b16 %v2245, %v2245
        %v2262 = vpack.c.b16 %v2246, %v2246
        %v2263 = vpack.c.b16 %v2247, %v2247
        %v2264 = vpack.c.b16 %v2248, %v2248
        %v2265 = vpack.c.b16 %v2249, %v2249
        %v2266 = vpack.c.b16 %v2250, %v2250
        %v2267 = vpack.c.b16 %v2251, %v2251
        %v2268 = vpack.c.b16 %v2252, %v2252
        %v2270 = vshrl.u32 %v2205, 16
        %v2272 = vshll.u32 %v2205, 16
        %v2274 = vrot.slane %v2272, 1
        %v2275 = vor.u32 %v2270, %v2274
        %v2277 = vshll.u32 %v2253, 16
        %v2279 = vrot.slane %v2277, 1
        %v2280 = vsel %vm445, %v2275, %v2279
        %v2282 = vshrl.u32 %v2206, 16
        %v2284 = vshll.u32 %v2206, 16
        %v2286 = vrot.slane %v2284, 1
        %v2287 = vor.u32 %v2282, %v2286
        %v2289 = vshll.u32 %v2254, 16
        %v2291 = vrot.slane %v2289, 1
        %v2292 = vsel %vm445, %v2287, %v2291
        %v2294 = vshrl.u32 %v2207, 16
        %v2296 = vshll.u32 %v2207, 16
        %v2298 = vrot.slane %v2296, 1
        %v2299 = vor.u32 %v2294, %v2298
        %v2301 = vshll.u32 %v2255, 16
        %v2303 = vrot.slane %v2301, 1
        %v2304 = vsel %vm445, %v2299, %v2303
        %v2306 = vshrl.u32 %v2208, 16
        %v2308 = vshll.u32 %v2208, 16
        %v2310 = vrot.slane %v2308, 1
        %v2311 = vor.u32 %v2306, %v2310
        %v2313 = vshll.u32 %v2256, 16
        %v2315 = vrot.slane %v2313, 1
        %v2316 = vsel %vm445, %v2311, %v2315
        %v2318 = vshrl.u32 %v2209, 16
        %v2320 = vshll.u32 %v2209, 16
        %v2322 = vrot.slane %v2320, 1
        %v2323 = vor.u32 %v2318, %v2322
        %v2325 = vshll.u32 %v2257, 16
        %v2327 = vrot.slane %v2325, 1
        %v2328 = vsel %vm445, %v2323, %v2327
        %v2330 = vshrl.u32 %v2210, 16
        %v2332 = vshll.u32 %v2210, 16
        %v2334 = vrot.slane %v2332, 1
        %v2335 = vor.u32 %v2330, %v2334
        %v2337 = vshll.u32 %v2258, 16
        %v2339 = vrot.slane %v2337, 1
        %v2340 = vsel %vm445, %v2335, %v2339
        %v2342 = vshrl.u32 %v2211, 16
        %v2344 = vshll.u32 %v2211, 16
        %v2346 = vrot.slane %v2344, 1
        %v2347 = vor.u32 %v2342, %v2346
        %v2349 = vshll.u32 %v2259, 16
        %v2351 = vrot.slane %v2349, 1
        %v2352 = vsel %vm445, %v2347, %v2351
        %v2354 = vshrl.u32 %v2212, 16
        %v2356 = vshll.u32 %v2212, 16
        %v2358 = vrot.slane %v2356, 1
        %v2359 = vor.u32 %v2354, %v2358
        %v2361 = vshll.u32 %v2260, 16
        %v2363 = vrot.slane %v2361, 1
        %v2364 = vsel %vm445, %v2359, %v2363
        %v2366 = vshrl.u32 %v2213, 16
        %v2368 = vshll.u32 %v2213, 16
        %v2370 = vrot.slane %v2368, 1
        %v2371 = vor.u32 %v2366, %v2370
        %v2373 = vshll.u32 %v2261, 16
        %v2375 = vrot.slane %v2373, 1
        %v2376 = vsel %vm445, %v2371, %v2375
        %v2378 = vshrl.u32 %v2214, 16
        %v2380 = vshll.u32 %v2214, 16
        %v2382 = vrot.slane %v2380, 1
        %v2383 = vor.u32 %v2378, %v2382
        %v2385 = vshll.u32 %v2262, 16
        %v2387 = vrot.slane %v2385, 1
        %v2388 = vsel %vm445, %v2383, %v2387
        %v2390 = vshrl.u32 %v2215, 16
        %v2392 = vshll.u32 %v2215, 16
        %v2394 = vrot.slane %v2392, 1
        %v2395 = vor.u32 %v2390, %v2394
        %v2397 = vshll.u32 %v2263, 16
        %v2399 = vrot.slane %v2397, 1
        %v2400 = vsel %vm445, %v2395, %v2399
        %v2402 = vshrl.u32 %v2216, 16
        %v2404 = vshll.u32 %v2216, 16
        %v2406 = vrot.slane %v2404, 1
        %v2407 = vor.u32 %v2402, %v2406
        %v2409 = vshll.u32 %v2264, 16
        %v2411 = vrot.slane %v2409, 1
        %v2412 = vsel %vm445, %v2407, %v2411
        %v2414 = vshrl.u32 %v2217, 16
        %v2416 = vshll.u32 %v2217, 16
        %v2418 = vrot.slane %v2416, 1
        %v2419 = vor.u32 %v2414, %v2418
        %v2421 = vshll.u32 %v2265, 16
        %v2423 = vrot.slane %v2421, 1
        %v2424 = vsel %vm445, %v2419, %v2423
        %v2426 = vshrl.u32 %v2218, 16
        %v2428 = vshll.u32 %v2218, 16
        %v2430 = vrot.slane %v2428, 1
        %v2431 = vor.u32 %v2426, %v2430
        %v2433 = vshll.u32 %v2266, 16
        %v2435 = vrot.slane %v2433, 1
        %v2436 = vsel %vm445, %v2431, %v2435
        %v2438 = vshrl.u32 %v2219, 16
        %v2440 = vshll.u32 %v2219, 16
        %v2442 = vrot.slane %v2440, 1
        %v2443 = vor.u32 %v2438, %v2442
        %v2445 = vshll.u32 %v2267, 16
        %v2447 = vrot.slane %v2445, 1
        %v2448 = vsel %vm445, %v2443, %v2447
        %v2450 = vshrl.u32 %v2220, 16
        %v2452 = vshll.u32 %v2220, 16
        %v2454 = vrot.slane %v2452, 1
        %v2455 = vor.u32 %v2450, %v2454
        %v2457 = vshll.u32 %v2268, 16
        %v2459 = vrot.slane %v2457, 1
        %v2460 = vsel %vm445, %v2455, %v2459
        %2461 = vrot.lane.b32.xlu0 %v2280, 8
        %v2462 = vpop.permute.xlu0 %2461
        %2463 = vrot.lane.b32.xlu0 %v2292, 8
        %v2464 = vpop.permute.xlu0 %2463
        %2465 = vrot.lane.b32.xlu0 %v2304, 8
        %v2466 = vpop.permute.xlu0 %2465
        %2467 = vrot.lane.b32.xlu0 %v2316, 8
        %v2468 = vpop.permute.xlu0 %2467
        %2469 = vrot.lane.b32.xlu0 %v2328, 8
        %v2470 = vpop.permute.xlu0 %2469
        %2471 = vrot.lane.b32.xlu0 %v2340, 8
        %v2472 = vpop.permute.xlu0 %2471
        %2473 = vrot.lane.b32.xlu0 %v2352, 8
        %v2474 = vpop.permute.xlu0 %2473
        %2475 = vrot.lane.b32.xlu0 %v2364, 8
        %v2476 = vpop.permute.xlu0 %2475
        %2477 = vrot.lane.b32.xlu0 %v2376, 8
        %v2478 = vpop.permute.xlu0 %2477
        %2479 = vrot.lane.b32.xlu0 %v2388, 8
        %v2480 = vpop.permute.xlu0 %2479
        %2481 = vrot.lane.b32.xlu0 %v2400, 8
        %v2482 = vpop.permute.xlu0 %2481
        %2483 = vrot.lane.b32.xlu0 %v2412, 8
        %v2484 = vpop.permute.xlu0 %2483
        %2485 = vrot.lane.b32.xlu0 %v2424, 8
        %v2486 = vpop.permute.xlu0 %2485
        %2487 = vrot.lane.b32.xlu0 %v2436, 8
        %v2488 = vpop.permute.xlu0 %2487
        %2489 = vrot.lane.b32.xlu0 %v2448, 8
        %v2490 = vpop.permute.xlu0 %2489
        %2491 = vrot.lane.b32.xlu0 %v2460, 8
        %v2492 = vpop.permute.xlu0 %2491
        %v2493 = vrot.slane %v2205, 1
        %v2494 = vrot.slane %v2253, 1
        %v2495 = vsel %vm670, %v2493, %v2494
        %v2496 = vrot.slane %v2206, 1
        %v2497 = vrot.slane %v2254, 1
        %v2498 = vsel %vm670, %v2496, %v2497
        %v2499 = vrot.slane %v2207, 1
        %v2500 = vrot.slane %v2255, 1
        %v2501 = vsel %vm670, %v2499, %v2500
        %v2502 = vrot.slane %v2208, 1
        %v2503 = vrot.slane %v2256, 1
        %v2504 = vsel %vm670, %v2502, %v2503
        %v2505 = vrot.slane %v2209, 1
        %v2506 = vrot.slane %v2257, 1
        %v2507 = vsel %vm670, %v2505, %v2506
        %v2508 = vrot.slane %v2210, 1
        %v2509 = vrot.slane %v2258, 1
        %v2510 = vsel %vm670, %v2508, %v2509
        %v2511 = vrot.slane %v2211, 1
        %v2512 = vrot.slane %v2259, 1
        %v2513 = vsel %vm670, %v2511, %v2512
        %v2514 = vrot.slane %v2212, 1
        %v2515 = vrot.slane %v2260, 1
        %v2516 = vsel %vm670, %v2514, %v2515
        %v2517 = vrot.slane %v2213, 1
        %v2518 = vrot.slane %v2261, 1
        %v2519 = vsel %vm670, %v2517, %v2518
        %v2520 = vrot.slane %v2214, 1
        %v2521 = vrot.slane %v2262, 1
        %v2522 = vsel %vm670, %v2520, %v2521
        %v2523 = vrot.slane %v2215, 1
        %v2524 = vrot.slane %v2263, 1
        %v2525 = vsel %vm670, %v2523, %v2524
        %v2526 = vrot.slane %v2216, 1
        %v2527 = vrot.slane %v2264, 1
        %v2528 = vsel %vm670, %v2526, %v2527
        %v2529 = vrot.slane %v2217, 1
        %v2530 = vrot.slane %v2265, 1
        %v2531 = vsel %vm670, %v2529, %v2530
        %v2532 = vrot.slane %v2218, 1
        %v2533 = vrot.slane %v2266, 1
        %v2534 = vsel %vm670, %v2532, %v2533
        %v2535 = vrot.slane %v2219, 1
        %v2536 = vrot.slane %v2267, 1
        %v2537 = vsel %vm670, %v2535, %v2536
        %v2538 = vrot.slane %v2220, 1
        %v2539 = vrot.slane %v2268, 1
        %v2540 = vsel %vm670, %v2538, %v2539
        %2541 = vrot.lane.b32.xlu0 %v2495, 16
        %v2542 = vpop.permute.xlu0 %2541
        %2543 = vrot.lane.b32.xlu0 %v2498, 16
        %v2544 = vpop.permute.xlu0 %2543
        %2545 = vrot.lane.b32.xlu0 %v2501, 16
        %v2546 = vpop.permute.xlu0 %2545
        %2547 = vrot.lane.b32.xlu0 %v2504, 16
        %v2548 = vpop.permute.xlu0 %2547
        %2549 = vrot.lane.b32.xlu0 %v2507, 16
        %v2550 = vpop.permute.xlu0 %2549
        %2551 = vrot.lane.b32.xlu0 %v2510, 16
        %v2552 = vpop.permute.xlu0 %2551
        %2553 = vrot.lane.b32.xlu0 %v2513, 16
        %v2554 = vpop.permute.xlu0 %2553
        %2555 = vrot.lane.b32.xlu0 %v2516, 16
        %v2556 = vpop.permute.xlu0 %2555
        %2557 = vrot.lane.b32.xlu0 %v2519, 16
        %v2558 = vpop.permute.xlu0 %2557
        %2559 = vrot.lane.b32.xlu0 %v2522, 16
        %v2560 = vpop.permute.xlu0 %2559
        %2561 = vrot.lane.b32.xlu0 %v2525, 16
        %v2562 = vpop.permute.xlu0 %2561
        %2563 = vrot.lane.b32.xlu0 %v2528, 16
        %v2564 = vpop.permute.xlu0 %2563
        %2565 = vrot.lane.b32.xlu0 %v2531, 16
        %v2566 = vpop.permute.xlu0 %2565
        %2567 = vrot.lane.b32.xlu0 %v2534, 16
        %v2568 = vpop.permute.xlu0 %2567
        %2569 = vrot.lane.b32.xlu0 %v2537, 16
        %v2570 = vpop.permute.xlu0 %2569
        %2571 = vrot.lane.b32.xlu0 %v2540, 16
        %v2572 = vpop.permute.xlu0 %2571
        %v2575 = vunpack.c.l.b16 %v2135
        %v2576 = vunpack.c.l.b16 %v2136
        %v2577 = vpack.c.b16 %v2576, %v2575
        %2578 = vrot.lane.b32.xlu0 %v2206, 24
        %v2579 = vpop.permute.xlu0 %2578
        %2580 = vrot.lane.b32.xlu0 %v2207, 24
        %v2581 = vpop.permute.xlu0 %2580
        %2582 = vrot.lane.b32.xlu0 %v2208, 24
        %v2583 = vpop.permute.xlu0 %2582
        %2584 = vrot.lane.b32.xlu0 %v2209, 24
        %v2585 = vpop.permute.xlu0 %2584
        %2586 = vrot.lane.b32.xlu0 %v2210, 24
        %v2587 = vpop.permute.xlu0 %2586
        %2588 = vrot.lane.b32.xlu0 %v2211, 24
        %v2589 = vpop.permute.xlu0 %2588
        %2590 = vrot.lane.b32.xlu0 %v2212, 24
        %v2591 = vpop.permute.xlu0 %2590
        %2592 = vrot.lane.b32.xlu0 %v2213, 24
        %v2593 = vpop.permute.xlu0 %2592
        %2594 = vrot.lane.b32.xlu0 %v2214, 24
        %v2595 = vpop.permute.xlu0 %2594
        %2596 = vrot.lane.b32.xlu0 %v2215, 24
        %v2597 = vpop.permute.xlu0 %2596
        %2598 = vrot.lane.b32.xlu0 %v2216, 24
        %v2599 = vpop.permute.xlu0 %2598
        %2600 = vrot.lane.b32.xlu0 %v2217, 24
        %v2601 = vpop.permute.xlu0 %2600
        %2602 = vrot.lane.b32.xlu0 %v2218, 24
        %v2603 = vpop.permute.xlu0 %2602
        %2604 = vrot.lane.b32.xlu0 %v2219, 24
        %v2605 = vpop.permute.xlu0 %2604
        %2606 = vrot.lane.b32.xlu0 %v2220, 24
        %v2607 = vpop.permute.xlu0 %2606
        %2608 = vrot.lane.b32.xlu0 %v2577, 24
        %v2609 = vpop.permute.xlu0 %2608
        %v2611 = vunpack.c.l.b16 %v2137
        %v2612 = vpack.c.b16 %v2611, %v2611
        %v2614 = vshrl.u32 %v2577, 16
        %v2616 = vshll.u32 %v2577, 16
        %v2618 = vrot.slane %v2616, 1
        %v2619 = vor.u32 %v2614, %v2618
        %v2621 = vshll.u32 %v2612, 16
        %v2623 = vrot.slane %v2621, 1
        %v2624 = vsel %vm445, %v2619, %v2623
        %2625 = vrot.lane.b32.xlu0 %v2292, 32
        %v2626 = vpop.permute.xlu0 %2625
        %2627 = vrot.lane.b32.xlu0 %v2304, 32
        %v2628 = vpop.permute.xlu0 %2627
        %2629 = vrot.lane.b32.xlu0 %v2316, 32
        %v2630 = vpop.permute.xlu0 %2629
        %2631 = vrot.lane.b32.xlu0 %v2328, 32
        %v2632 = vpop.permute.xlu0 %2631
        %2633 = vrot.lane.b32.xlu0 %v2340, 32
        %v2634 = vpop.permute.xlu0 %2633
        %2635 = vrot.lane.b32.xlu0 %v2352, 32
        %v2636 = vpop.permute.xlu0 %2635
        %2637 = vrot.lane.b32.xlu0 %v2364, 32
        %v2638 = vpop.permute.xlu0 %2637
        %2639 = vrot.lane.b32.xlu0 %v2376, 32
        %v2640 = vpop.permute.xlu0 %2639
        %2641 = vrot.lane.b32.xlu0 %v2388, 32
        %v2642 = vpop.permute.xlu0 %2641
        %2643 = vrot.lane.b32.xlu0 %v2400, 32
        %v2644 = vpop.permute.xlu0 %2643
        %2645 = vrot.lane.b32.xlu0 %v2412, 32
        %v2646 = vpop.permute.xlu0 %2645
        %2647 = vrot.lane.b32.xlu0 %v2424, 32
        %v2648 = vpop.permute.xlu0 %2647
        %2649 = vrot.lane.b32.xlu0 %v2436, 32
        %v2650 = vpop.permute.xlu0 %2649
        %2651 = vrot.lane.b32.xlu0 %v2448, 32
        %v2652 = vpop.permute.xlu0 %2651
        %2653 = vrot.lane.b32.xlu0 %v2460, 32
        %v2654 = vpop.permute.xlu0 %2653
        %2655 = vrot.lane.b32.xlu0 %v2624, 32
        %v2656 = vpop.permute.xlu0 %2655
        %v2657 = vrot.slane %v2577, 1
        %v2658 = vrot.slane %v2612, 1
        %v2659 = vsel %vm670, %v2657, %v2658
        %2660 = vrot.lane.b32.xlu0 %v2498, 40
        %v2661 = vpop.permute.xlu0 %2660
        %2662 = vrot.lane.b32.xlu0 %v2501, 40
        %v2663 = vpop.permute.xlu0 %2662
        %2664 = vrot.lane.b32.xlu0 %v2504, 40
        %v2665 = vpop.permute.xlu0 %2664
        %2666 = vrot.lane.b32.xlu0 %v2507, 40
        %v2667 = vpop.permute.xlu0 %2666
        %2668 = vrot.lane.b32.xlu0 %v2510, 40
        %v2669 = vpop.permute.xlu0 %2668
        %2670 = vrot.lane.b32.xlu0 %v2513, 40
        %v2671 = vpop.permute.xlu0 %2670
        %2672 = vrot.lane.b32.xlu0 %v2516, 40
        %v2673 = vpop.permute.xlu0 %2672
        %2674 = vrot.lane.b32.xlu0 %v2519, 40
        %v2675 = vpop.permute.xlu0 %2674
        %2676 = vrot.lane.b32.xlu0 %v2522, 40
        %v2677 = vpop.permute.xlu0 %2676
        %2678 = vrot.lane.b32.xlu0 %v2525, 40
        %v2679 = vpop.permute.xlu0 %2678
        %2680 = vrot.lane.b32.xlu0 %v2528, 40
        %v2681 = vpop.permute.xlu0 %2680
        %2682 = vrot.lane.b32.xlu0 %v2531, 40
        %v2683 = vpop.permute.xlu0 %2682
        %2684 = vrot.lane.b32.xlu0 %v2534, 40
        %v2685 = vpop.permute.xlu0 %2684
        %2686 = vrot.lane.b32.xlu0 %v2537, 40
        %v2687 = vpop.permute.xlu0 %2686
        %2688 = vrot.lane.b32.xlu0 %v2540, 40
        %v2689 = vpop.permute.xlu0 %2688
        %2690 = vrot.lane.b32.xlu0 %v2659, 40
        %v2691 = vpop.permute.xlu0 %2690
        %v2694 = vunpack.c.l.b16 %v2138
        %v2695 = vunpack.c.l.b16 %v2139
        %v2696 = vpack.c.b16 %v2695, %v2694
        %2697 = vrot.lane.b32.xlu0 %v2207, 48
        %v2698 = vpop.permute.xlu0 %2697
        %2699 = vrot.lane.b32.xlu0 %v2208, 48
        %v2700 = vpop.permute.xlu0 %2699
        %2701 = vrot.lane.b32.xlu0 %v2209, 48
        %v2702 = vpop.permute.xlu0 %2701
        %2703 = vrot.lane.b32.xlu0 %v2210, 48
        %v2704 = vpop.permute.xlu0 %2703
        %2705 = vrot.lane.b32.xlu0 %v2211, 48
        %v2706 = vpop.permute.xlu0 %2705
        %2707 = vrot.lane.b32.xlu0 %v2212, 48
        %v2708 = vpop.permute.xlu0 %2707
        %2709 = vrot.lane.b32.xlu0 %v2213, 48
        %v2710 = vpop.permute.xlu0 %2709
        %2711 = vrot.lane.b32.xlu0 %v2214, 48
        %v2712 = vpop.permute.xlu0 %2711
        %2713 = vrot.lane.b32.xlu0 %v2215, 48
        %v2714 = vpop.permute.xlu0 %2713
        %2715 = vrot.lane.b32.xlu0 %v2216, 48
        %v2716 = vpop.permute.xlu0 %2715
        %2717 = vrot.lane.b32.xlu0 %v2217, 48
        %v2718 = vpop.permute.xlu0 %2717
        %2719 = vrot.lane.b32.xlu0 %v2218, 48
        %v2720 = vpop.permute.xlu0 %2719
        %2721 = vrot.lane.b32.xlu0 %v2219, 48
        %v2722 = vpop.permute.xlu0 %2721
        %2723 = vrot.lane.b32.xlu0 %v2220, 48
        %v2724 = vpop.permute.xlu0 %2723
        %2725 = vrot.lane.b32.xlu0 %v2577, 48
        %v2726 = vpop.permute.xlu0 %2725
        %2727 = vrot.lane.b32.xlu0 %v2696, 48
        %v2728 = vpop.permute.xlu0 %2727
        %v2730 = vunpack.c.l.b16 %v2140
        %v2731 = vpack.c.b16 %v2730, %v2730
        %v2733 = vshrl.u32 %v2696, 16
        %v2735 = vshll.u32 %v2696, 16
        %v2737 = vrot.slane %v2735, 1
        %v2738 = vor.u32 %v2733, %v2737
        %v2740 = vshll.u32 %v2731, 16
        %v2742 = vrot.slane %v2740, 1
        %v2743 = vsel %vm445, %v2738, %v2742
        %2744 = vrot.lane.b32.xlu0 %v2304, 56
        %v2745 = vpop.permute.xlu0 %2744
        %2746 = vrot.lane.b32.xlu0 %v2316, 56
        %v2747 = vpop.permute.xlu0 %2746
        %2748 = vrot.lane.b32.xlu0 %v2328, 56
        %v2749 = vpop.permute.xlu0 %2748
        %2750 = vrot.lane.b32.xlu0 %v2340, 56
        %v2751 = vpop.permute.xlu0 %2750
        %2752 = vrot.lane.b32.xlu0 %v2352, 56
        %v2753 = vpop.permute.xlu0 %2752
        %2754 = vrot.lane.b32.xlu0 %v2364, 56
        %v2755 = vpop.permute.xlu0 %2754
        %2756 = vrot.lane.b32.xlu0 %v2376, 56
        %v2757 = vpop.permute.xlu0 %2756
        %2758 = vrot.lane.b32.xlu0 %v2388, 56
        %v2759 = vpop.permute.xlu0 %2758
        %2760 = vrot.lane.b32.xlu0 %v2400, 56
        %v2761 = vpop.permute.xlu0 %2760
        %2762 = vrot.lane.b32.xlu0 %v2412, 56
        %v2763 = vpop.permute.xlu0 %2762
        %2764 = vrot.lane.b32.xlu0 %v2424, 56
        %v2765 = vpop.permute.xlu0 %2764
        %2766 = vrot.lane.b32.xlu0 %v2436, 56
        %v2767 = vpop.permute.xlu0 %2766
        %2768 = vrot.lane.b32.xlu0 %v2448, 56
        %v2769 = vpop.permute.xlu0 %2768
        %2770 = vrot.lane.b32.xlu0 %v2460, 56
        %v2771 = vpop.permute.xlu0 %2770
        %2772 = vrot.lane.b32.xlu0 %v2624, 56
        %v2773 = vpop.permute.xlu0 %2772
        %2774 = vrot.lane.b32.xlu0 %v2743, 56
        %v2775 = vpop.permute.xlu0 %2774
        %v2776 = vrot.slane %v2696, 1
        %v2777 = vrot.slane %v2731, 1
        %v2778 = vsel %vm670, %v2776, %v2777
        %2779 = vrot.lane.b32.xlu0 %v2501, 64
        %v2780 = vpop.permute.xlu0 %2779
        %2781 = vrot.lane.b32.xlu0 %v2504, 64
        %v2782 = vpop.permute.xlu0 %2781
        %2783 = vrot.lane.b32.xlu0 %v2507, 64
        %v2784 = vpop.permute.xlu0 %2783
        %2785 = vrot.lane.b32.xlu0 %v2510, 64
        %v2786 = vpop.permute.xlu0 %2785
        %2787 = vrot.lane.b32.xlu0 %v2513, 64
        %v2788 = vpop.permute.xlu0 %2787
        %2789 = vrot.lane.b32.xlu0 %v2516, 64
        %v2790 = vpop.permute.xlu0 %2789
        %2791 = vrot.lane.b32.xlu0 %v2519, 64
        %v2792 = vpop.permute.xlu0 %2791
        %2793 = vrot.lane.b32.xlu0 %v2522, 64
        %v2794 = vpop.permute.xlu0 %2793
        %2795 = vrot.lane.b32.xlu0 %v2525, 64
        %v2796 = vpop.permute.xlu0 %2795
        %2797 = vrot.lane.b32.xlu0 %v2528, 64
        %v2798 = vpop.permute.xlu0 %2797
        %2799 = vrot.lane.b32.xlu0 %v2531, 64
        %v2800 = vpop.permute.xlu0 %2799
        %2801 = vrot.lane.b32.xlu0 %v2534, 64
        %v2802 = vpop.permute.xlu0 %2801
        %2803 = vrot.lane.b32.xlu0 %v2537, 64
        %v2804 = vpop.permute.xlu0 %2803
        %2805 = vrot.lane.b32.xlu0 %v2540, 64
        %v2806 = vpop.permute.xlu0 %2805
        %2807 = vrot.lane.b32.xlu0 %v2659, 64
        %v2808 = vpop.permute.xlu0 %2807
        %2809 = vrot.lane.b32.xlu0 %v2778, 64
        %v2810 = vpop.permute.xlu0 %2809
        %v2812 = vsel %vm989, %v2205, %v2462
        %v2814 = vsel %vm989, %v2206, %v2464
        %v2816 = vsel %vm989, %v2207, %v2466
        %v2818 = vsel %vm989, %v2208, %v2468
        %v2820 = vsel %vm989, %v2209, %v2470
        %v2822 = vsel %vm989, %v2210, %v2472
        %v2824 = vsel %vm989, %v2211, %v2474
        %v2826 = vsel %vm989, %v2212, %v2476
        %v2828 = vsel %vm989, %v2213, %v2478
        %v2830 = vsel %vm989, %v2214, %v2480
        %v2832 = vsel %vm989, %v2215, %v2482
        %v2834 = vsel %vm989, %v2216, %v2484
        %v2836 = vsel %vm989, %v2217, %v2486
        %v2838 = vsel %vm989, %v2218, %v2488
        %v2840 = vsel %vm989, %v2219, %v2490
        %v2842 = vsel %vm989, %v2220, %v2492
        %v2844 = vsel %vm1022, %v2812, %v2542
        %v2846 = vsel %vm1022, %v2814, %v2544
        %v2848 = vsel %vm1022, %v2816, %v2546
        %v2850 = vsel %vm1022, %v2818, %v2548
        %v2852 = vsel %vm1022, %v2820, %v2550
        %v2854 = vsel %vm1022, %v2822, %v2552
        %v2856 = vsel %vm1022, %v2824, %v2554
        %v2858 = vsel %vm1022, %v2826, %v2556
        %v2860 = vsel %vm1022, %v2828, %v2558
        %v2862 = vsel %vm1022, %v2830, %v2560
        %v2864 = vsel %vm1022, %v2832, %v2562
        %v2866 = vsel %vm1022, %v2834, %v2564
        %v2868 = vsel %vm1022, %v2836, %v2566
        %v2870 = vsel %vm1022, %v2838, %v2568
        %v2872 = vsel %vm1022, %v2840, %v2570
        %v2874 = vsel %vm1022, %v2842, %v2572
        %v2876 = vsel %vm1055, %v2844, %v2579
        %v2878 = vsel %vm1055, %v2846, %v2581
        %v2880 = vsel %vm1055, %v2848, %v2583
        %v2882 = vsel %vm1055, %v2850, %v2585
        %v2884 = vsel %vm1055, %v2852, %v2587
        %v2886 = vsel %vm1055, %v2854, %v2589
        %v2888 = vsel %vm1055, %v2856, %v2591
        %v2890 = vsel %vm1055, %v2858, %v2593
        %v2892 = vsel %vm1055, %v2860, %v2595
        %v2894 = vsel %vm1055, %v2862, %v2597
        %v2896 = vsel %vm1055, %v2864, %v2599
        %v2898 = vsel %vm1055, %v2866, %v2601
        %v2900 = vsel %vm1055, %v2868, %v2603
        %v2902 = vsel %vm1055, %v2870, %v2605
        %v2904 = vsel %vm1055, %v2872, %v2607
        %v2906 = vsel %vm1055, %v2874, %v2609
        %v2908 = vsel %vm1088, %v2876, %v2626
        %v2910 = vsel %vm1088, %v2878, %v2628
        %v2912 = vsel %vm1088, %v2880, %v2630
        %v2914 = vsel %vm1088, %v2882, %v2632
        %v2916 = vsel %vm1088, %v2884, %v2634
        %v2918 = vsel %vm1088, %v2886, %v2636
        %v2920 = vsel %vm1088, %v2888, %v2638
        %v2922 = vsel %vm1088, %v2890, %v2640
        %v2924 = vsel %vm1088, %v2892, %v2642
        %v2926 = vsel %vm1088, %v2894, %v2644
        %v2928 = vsel %vm1088, %v2896, %v2646
        %v2930 = vsel %vm1088, %v2898, %v2648
        %v2932 = vsel %vm1088, %v2900, %v2650
        %v2934 = vsel %vm1088, %v2902, %v2652
        %v2936 = vsel %vm1088, %v2904, %v2654
        %v2938 = vsel %vm1088, %v2906, %v2656
        %v2940 = vsel %vm1121, %v2908, %v2661
        %v2942 = vsel %vm1121, %v2910, %v2663
        %v2944 = vsel %vm1121, %v2912, %v2665
        %v2946 = vsel %vm1121, %v2914, %v2667
        %v2948 = vsel %vm1121, %v2916, %v2669
        %v2950 = vsel %vm1121, %v2918, %v2671
        %v2952 = vsel %vm1121, %v2920, %v2673
        %v2954 = vsel %vm1121, %v2922, %v2675
        %v2956 = vsel %vm1121, %v2924, %v2677
        %v2958 = vsel %vm1121, %v2926, %v2679
        %v2960 = vsel %vm1121, %v2928, %v2681
        %v2962 = vsel %vm1121, %v2930, %v2683
        %v2964 = vsel %vm1121, %v2932, %v2685
        %v2966 = vsel %vm1121, %v2934, %v2687
        %v2968 = vsel %vm1121, %v2936, %v2689
        %v2970 = vsel %vm1121, %v2938, %v2691
        %v2972 = vsel %vm1154, %v2940, %v2698
        %v2974 = vsel %vm1154, %v2942, %v2700
        %v2976 = vsel %vm1154, %v2944, %v2702
        %v2978 = vsel %vm1154, %v2946, %v2704
        %v2980 = vsel %vm1154, %v2948, %v2706
        %v2982 = vsel %vm1154, %v2950, %v2708
        %v2984 = vsel %vm1154, %v2952, %v2710
        %v2986 = vsel %vm1154, %v2954, %v2712
        %v2988 = vsel %vm1154, %v2956, %v2714
        %v2990 = vsel %vm1154, %v2958, %v2716
        %v2992 = vsel %vm1154, %v2960, %v2718
        %v2994 = vsel %vm1154, %v2962, %v2720
        %v2996 = vsel %vm1154, %v2964, %v2722
        %v2998 = vsel %vm1154, %v2966, %v2724
        %v3000 = vsel %vm1154, %v2968, %v2726
        %v3002 = vsel %vm1154, %v2970, %v2728
        %v3004 = vsel %vm1187, %v2972, %v2745
        %v3006 = vsel %vm1187, %v2974, %v2747
        %v3008 = vsel %vm1187, %v2976, %v2749
        %v3010 = vsel %vm1187, %v2978, %v2751
        %v3012 = vsel %vm1187, %v2980, %v2753
        %v3014 = vsel %vm1187, %v2982, %v2755
        %v3016 = vsel %vm1187, %v2984, %v2757
        %v3018 = vsel %vm1187, %v2986, %v2759
        %v3020 = vsel %vm1187, %v2988, %v2761
        %v3022 = vsel %vm1187, %v2990, %v2763
        %v3024 = vsel %vm1187, %v2992, %v2765
        %v3026 = vsel %vm1187, %v2994, %v2767
        %v3028 = vsel %vm1187, %v2996, %v2769
        %v3030 = vsel %vm1187, %v2998, %v2771
        %v3032 = vsel %vm1187, %v3000, %v2773
        %v3034 = vsel %vm1187, %v3002, %v2775
        %v3036 = vsel %vm1220, %v3004, %v2780
        %v3038 = vsel %vm1220, %v3006, %v2782
        %v3040 = vsel %vm1220, %v3008, %v2784
        %v3042 = vsel %vm1220, %v3010, %v2786
        %v3044 = vsel %vm1220, %v3012, %v2788
        %v3046 = vsel %vm1220, %v3014, %v2790
        %v3048 = vsel %vm1220, %v3016, %v2792
        %v3050 = vsel %vm1220, %v3018, %v2794
        %v3052 = vsel %vm1220, %v3020, %v2796
        %v3054 = vsel %vm1220, %v3022, %v2798
        %v3056 = vsel %vm1220, %v3024, %v2800
        %v3058 = vsel %vm1220, %v3026, %v2802
        %v3060 = vsel %vm1220, %v3028, %v2804
        %v3062 = vsel %vm1220, %v3030, %v2806
        %v3064 = vsel %vm1220, %v3032, %v2808
        %v3066 = vsel %vm1220, %v3034, %v2810
        %v3067 = vld [vmem:[%s3] sm:$0xf]
        %v3068 = vld [vmem:[%s3 + $0x4] sm:$0xf]
        %v3069 = vld [vmem:[%s3 + $0x8] sm:$0xf]
        %v3070 = vld [vmem:[%s3 + $0xc] sm:$0xf]
        %v3071 = vld [vmem:[%s3 + $0x10] sm:$0xf]
        %v3072 = vld [vmem:[%s3 + $0x14] sm:$0xf]
        %v3073 = vld [vmem:[%s3 + $0x18] sm:$0xf]
        %v3074 = vld [vmem:[%s3 + $0x1c] sm:$0xf]
        %v3075 = vld [vmem:[%s3 + $0x20] sm:$0xf]
        %v3076 = vld [vmem:[%s4] sm:$0x1]
        %v3078 = vlaneseq
        %v3079 = vshrl.u32 %v3078, 7
        %v3080 = vsub.s32 0, %v3079
        %v3081 = vrot.slane %v3076, %v3080
        %v3092 = vunpack.c.l.b16 %v3067
        %v3093 = vunpack.c.l.b16 %v3068
        %v3094 = vunpack.c.l.b16 %v3069
        %v3095 = vunpack.c.l.b16 %v3070
        %v3096 = vunpack.c.l.b16 %v3071
        %v3097 = vunpack.c.l.b16 %v3072
        %v3098 = vunpack.c.l.b16 %v3073
        %v3099 = vunpack.c.l.b16 %v3074
        %v3100 = vunpack.c.l.b16 %v3075
        %v3101 = vpack.c.b16 %v3093, %v3092
        %v3102 = vpack.c.b16 %v3095, %v3094
        %v3103 = vpack.c.b16 %v3097, %v3096
        %v3104 = vpack.c.b16 %v3099, %v3098
        %v3105 = vpack.c.b16 %v3100, %v3100
        %v3110 = vsel %vm1296, %v3036, 0
        %v3112 = vsel %vm1296, %v3038, 0
        %v3114 = vsel %vm1296, %v3040, 0
        %v3116 = vsel %vm1296, %v3042, 0
        %v3118 = vsel %vm1296, %v3044, 0
        %v3120 = vsel %vm1296, %v3046, 0
        %v3122 = vsel %vm1296, %v3048, 0
        %v3124 = vsel %vm1296, %v3050, 0
        %v3126 = vsel %vm1296, %v3052, 0
        %v3128 = vsel %vm1296, %v3054, 0
        %v3130 = vsel %vm1296, %v3056, 0
        %v3132 = vsel %vm1296, %v3058, 0
        %v3134 = vsel %vm1296, %v3060, 0
        %v3136 = vsel %vm1296, %v3062, 0
        %v3138 = vsel %vm1296, %v3064, 0
        %v3140 = vsel %vm1296, %v3066, 0
        %v3143 = vsel %vm1329, %v3105, 0
        %3145 = vmatprep.subr.bf16.mxu0 0
        %3146 = vmatpush1.bf16.msra.mxu0 0
        %3147 = vmatprep.subr.bf16.mxu0 0
        %3148 = vmatpush1.bf16.msra.mxu0 0
        %3149 = vmatprep.subr.bf16.mxu0 0
        %3150 = vmatpush1.bf16.msra.mxu0 0
        %3151 = vmatprep.subr.bf16.mxu0 0
        %3152 = vmatpush1.bf16.msra.mxu0 %v3143
        %3153 = vmatprep.subr.bf16.mxu0 0
        %3154 = vmatpush1.bf16.msra.mxu0 %v3104
        %3155 = vmatprep.subr.bf16.mxu0 0
        %3156 = vmatpush1.bf16.msra.mxu0 %v3103
        %3157 = vmatprep.subr.bf16.mxu0 0
        %3158 = vmatpush1.bf16.msra.mxu0 %v3102
        %3159 = vmatprep.subr.bf16.mxu0 0
        %3160 = vmatpush1.bf16.msra.mxu0 %v3101
        %3161 = vmatprep.subr.bf16.mxu0 0
        %3162 = vmatpush2.bf16.msra.mxu0 0
        %3163 = vmatprep.subr.bf16.mxu0 0
        %3164 = vmatpush2.bf16.msra.mxu0 0
        %3165 = vmatprep.subr.bf16.mxu0 0
        %3166 = vmatpush2.bf16.msra.mxu0 0
        %3167 = vmatprep.subr.bf16.mxu0 0
        %3168 = vmatpush2.bf16.msra.mxu0 0
        %3169 = vmatprep.subr.bf16.mxu0 0
        %3170 = vmatpush2.bf16.msra.mxu0 0
        %3171 = vmatprep.subr.bf16.mxu0 0
        %3172 = vmatpush2.bf16.msra.mxu0 0
        %3173 = vmatprep.subr.bf16.mxu0 0
        %3174 = vmatpush2.bf16.msra.mxu0 0
        %3175 = vmatprep.subr.bf16.mxu0 0
        %3176 = vmatpush2.bf16.msra.mxu0 0
        %3177 = vmatprep.mubr.bf16.mxu0 0
        %3178 = vmatmul.mubr.bf16.gmra.mxu0 %v3110
        %v3179 = vpop.f32.mrf.mxu0
        %v3180 = vadd.f32 %v3081, %v3179
        %v3181 = vpop.f32.mrf.mxu0
        %v3182 = vpop.f32.mrf.mxu0
        %v3183 = vadd.f32 %v3081, %v3182
        %v3184 = vpop.f32.mrf.mxu0
        %3185 = vmatprep.mubr.bf16.mxu0 0
        %3186 = vmatmul.mubr.bf16.gmra.mxu0 %v3112
        %v3187 = vpop.f32.mrf.mxu0
        %v3188 = vadd.f32 %v3081, %v3187
        %v3189 = vpop.f32.mrf.mxu0
        %v3190 = vpop.f32.mrf.mxu0
        %v3191 = vadd.f32 %v3081, %v3190
        %v3192 = vpop.f32.mrf.mxu0
        %3193 = vmatprep.mubr.bf16.mxu0 0
        %3194 = vmatmul.mubr.bf16.gmra.mxu0 %v3114
        %v3195 = vpop.f32.mrf.mxu0
        %v3196 = vadd.f32 %v3081, %v3195
        %v3197 = vpop.f32.mrf.mxu0
        %v3198 = vpop.f32.mrf.mxu0
        %v3199 = vadd.f32 %v3081, %v3198
        %v3200 = vpop.f32.mrf.mxu0
        %3201 = vmatprep.mubr.bf16.mxu0 0
        %3202 = vmatmul.mubr.bf16.gmra.mxu0 %v3116
        %v3203 = vpop.f32.mrf.mxu0
        %v3204 = vadd.f32 %v3081, %v3203
        %v3205 = vpop.f32.mrf.mxu0
        %v3206 = vpop.f32.mrf.mxu0
        %v3207 = vadd.f32 %v3081, %v3206
        %v3208 = vpop.f32.mrf.mxu0
        %3209 = vmatprep.mubr.bf16.mxu0 0
        %3210 = vmatmul.mubr.bf16.gmra.mxu0 %v3118
        %v3211 = vpop.f32.mrf.mxu0
        %v3212 = vadd.f32 %v3081, %v3211
        %v3213 = vpop.f32.mrf.mxu0
        %v3214 = vpop.f32.mrf.mxu0
        %v3215 = vadd.f32 %v3081, %v3214
        %v3216 = vpop.f32.mrf.mxu0
        %3217 = vmatprep.mubr.bf16.mxu0 0
        %3218 = vmatmul.mubr.bf16.gmra.mxu0 %v3120
        %v3219 = vpop.f32.mrf.mxu0
        %v3220 = vadd.f32 %v3081, %v3219
        %v3221 = vpop.f32.mrf.mxu0
        %v3222 = vpop.f32.mrf.mxu0
        %v3223 = vadd.f32 %v3081, %v3222
        %v3224 = vpop.f32.mrf.mxu0
        %3225 = vmatprep.mubr.bf16.mxu0 0
        %3226 = vmatmul.mubr.bf16.gmra.mxu0 %v3122
        %v3227 = vpop.f32.mrf.mxu0
        %v3228 = vadd.f32 %v3081, %v3227
        %v3229 = vpop.f32.mrf.mxu0
        %v3230 = vpop.f32.mrf.mxu0
        %v3231 = vadd.f32 %v3081, %v3230
        %v3232 = vpop.f32.mrf.mxu0
        %3233 = vmatprep.mubr.bf16.mxu0 0
        %3234 = vmatmul.mubr.bf16.gmra.mxu0 %v3124
        %v3235 = vpop.f32.mrf.mxu0
        %v3236 = vadd.f32 %v3081, %v3235
        %v3237 = vpop.f32.mrf.mxu0
        %v3238 = vpop.f32.mrf.mxu0
        %v3239 = vadd.f32 %v3081, %v3238
        %v3240 = vpop.f32.mrf.mxu0
        %3241 = vmatprep.mubr.bf16.mxu0 0
        %3242 = vmatmul.mubr.bf16.gmra.mxu0 %v3126
        %v3243 = vpop.f32.mrf.mxu0
        %v3244 = vadd.f32 %v3081, %v3243
        %v3245 = vpop.f32.mrf.mxu0
        %v3246 = vpop.f32.mrf.mxu0
        %v3247 = vadd.f32 %v3081, %v3246
        %v3248 = vpop.f32.mrf.mxu0
        %3249 = vmatprep.mubr.bf16.mxu0 0
        %3250 = vmatmul.mubr.bf16.gmra.mxu0 %v3128
        %v3251 = vpop.f32.mrf.mxu0
        %v3252 = vadd.f32 %v3081, %v3251
        %v3253 = vpop.f32.mrf.mxu0
        %v3254 = vpop.f32.mrf.mxu0
        %v3255 = vadd.f32 %v3081, %v3254
        %v3256 = vpop.f32.mrf.mxu0
        %3257 = vmatprep.mubr.bf16.mxu0 0
        %3258 = vmatmul.mubr.bf16.gmra.mxu0 %v3130
        %v3259 = vpop.f32.mrf.mxu0
        %v3260 = vadd.f32 %v3081, %v3259
        %v3261 = vpop.f32.mrf.mxu0
        %v3262 = vpop.f32.mrf.mxu0
        %v3263 = vadd.f32 %v3081, %v3262
        %v3264 = vpop.f32.mrf.mxu0
        %3265 = vmatprep.mubr.bf16.mxu0 0
        %3266 = vmatmul.mubr.bf16.gmra.mxu0 %v3132
        %v3267 = vpop.f32.mrf.mxu0
        %v3268 = vadd.f32 %v3081, %v3267
        %v3269 = vpop.f32.mrf.mxu0
        %v3270 = vpop.f32.mrf.mxu0
        %v3271 = vadd.f32 %v3081, %v3270
        %v3272 = vpop.f32.mrf.mxu0
        %3273 = vmatprep.mubr.bf16.mxu0 0
        %3274 = vmatmul.mubr.bf16.gmra.mxu0 %v3134
        %v3275 = vpop.f32.mrf.mxu0
        %v3276 = vadd.f32 %v3081, %v3275
        %v3277 = vpop.f32.mrf.mxu0
        %v3278 = vpop.f32.mrf.mxu0
        %v3279 = vadd.f32 %v3081, %v3278
        %v3280 = vpop.f32.mrf.mxu0
        %3281 = vmatprep.mubr.bf16.mxu0 0
        %3282 = vmatmul.mubr.bf16.gmra.mxu0 %v3136
        %v3283 = vpop.f32.mrf.mxu0
        %v3284 = vadd.f32 %v3081, %v3283
        %v3285 = vpop.f32.mrf.mxu0
        %v3286 = vpop.f32.mrf.mxu0
        %v3287 = vadd.f32 %v3081, %v3286
        %v3288 = vpop.f32.mrf.mxu0
        %3289 = vmatprep.mubr.bf16.mxu0 0
        %3290 = vmatmul.mubr.bf16.gmra.mxu0 %v3138
        %v3291 = vpop.f32.mrf.mxu0
        %v3292 = vadd.f32 %v3081, %v3291
        %v3293 = vpop.f32.mrf.mxu0
        %v3294 = vpop.f32.mrf.mxu0
        %v3295 = vadd.f32 %v3081, %v3294
        %v3296 = vpop.f32.mrf.mxu0
        %3297 = vmatprep.mubr.bf16.mxu0 0
        %3298 = vmatmul.mubr.bf16.gmra.mxu0 %v3140
        %v3299 = vpop.f32.mrf.mxu0
        %v3300 = vadd.f32 %v3081, %v3299
        %v3301 = vpop.f32.mrf.mxu0
        %v3302 = vpop.f32.mrf.mxu0
        %v3303 = vadd.f32 %v3081, %v3302
        %v3304 = vpop.f32.mrf.mxu0
        %3305 = vdwg.mxu0
        %3306 = vst.msk [vmem:[%s261] sm:$0xff] %vm989, %v3180
        %3307 = vst.msk [vmem:[%s261 + $0x8] sm:$0xff] %vm989, %v3183
        %3308 = vst.msk [vmem:[%s261 + $0x10] sm:$0xff] %vm989, %v3188
        %3309 = vst.msk [vmem:[%s261 + $0x18] sm:$0xff] %vm989, %v3191
        %3310 = vst.msk [vmem:[%s261 + $0x20] sm:$0xff] %vm989, %v3196
        %3311 = vst.msk [vmem:[%s261 + $0x28] sm:$0xff] %vm989, %v3199
        %3312 = vst.msk [vmem:[%s261 + $0x30] sm:$0xff] %vm989, %v3204
        %3313 = vst.msk [vmem:[%s261 + $0x38] sm:$0xff] %vm989, %v3207
        %3314 = vst.msk [vmem:[%s261 + $0x40] sm:$0xff] %vm989, %v3212
        %3315 = vst.msk [vmem:[%s261 + $0x48] sm:$0xff] %vm989, %v3215
        %3316 = vst.msk [vmem:[%s261 + $0x50] sm:$0xff] %vm989, %v3220
        %3317 = vst.msk [vmem:[%s261 + $0x58] sm:$0xff] %vm989, %v3223
        %3318 = vst.msk [vmem:[%s261 + $0x60] sm:$0xff] %vm989, %v3228
        %3319 = vst.msk [vmem:[%s261 + $0x68] sm:$0xff] %vm989, %v3231
        %3320 = vst.msk [vmem:[%s261 + $0x70] sm:$0xff] %vm989, %v3236
        %3321 = vst.msk [vmem:[%s261 + $0x78] sm:$0xff] %vm989, %v3239
        %3322 = vst.msk [vmem:[%s261 + $0x80] sm:$0xff] %vm989, %v3244
        %3323 = vst.msk [vmem:[%s261 + $0x88] sm:$0xff] %vm989, %v3247
        %3324 = vst.msk [vmem:[%s261 + $0x90] sm:$0xff] %vm989, %v3252
        %3325 = vst.msk [vmem:[%s261 + $0x98] sm:$0xff] %vm989, %v3255
        %3326 = vst.msk [vmem:[%s261 + $0xa0] sm:$0xff] %vm989, %v3260
        %3327 = vst.msk [vmem:[%s261 + $0xa8] sm:$0xff] %vm989, %v3263
        %3328 = vst.msk [vmem:[%s261 + $0xb0] sm:$0xff] %vm989, %v3268
        %3329 = vst.msk [vmem:[%s261 + $0xb8] sm:$0xff] %vm989, %v3271
        %3330 = vst.msk [vmem:[%s261 + $0xc0] sm:$0xff] %vm989, %v3276
        %3331 = vst.msk [vmem:[%s261 + $0xc8] sm:$0xff] %vm989, %v3279
        %3332 = vst.msk [vmem:[%s261 + $0xd0] sm:$0xff] %vm989, %v3284
        %3333 = vst.msk [vmem:[%s261 + $0xd8] sm:$0xff] %vm989, %v3287
        %3334 = vst.msk [vmem:[%s261 + $0xe0] sm:$0xff] %vm989, %v3292
        %3335 = vst.msk [vmem:[%s261 + $0xe8] sm:$0xff] %vm989, %v3295
        %3336 = vst.msk [vmem:[%s261 + $0xf0] sm:$0xff] %vm989, %v3300
        %3337 = vst.msk [vmem:[%s261 + $0xf8] sm:$0xff] %vm989, %v3303
        %v3338 = vmul.f32 %v3180, %v3180
        %v3339 = vmul.f32 %v3183, %v3183
        %v3340 = vmul.f32 %v3188, %v3188
        %v3341 = vmul.f32 %v3191, %v3191
        %v3342 = vmul.f32 %v3196, %v3196
        %v3343 = vmul.f32 %v3199, %v3199
        %v3344 = vmul.f32 %v3204, %v3204
        %v3345 = vmul.f32 %v3207, %v3207
        %v3346 = vmul.f32 %v3212, %v3212
        %v3347 = vmul.f32 %v3215, %v3215
        %v3348 = vmul.f32 %v3220, %v3220
        %v3349 = vmul.f32 %v3223, %v3223
        %v3350 = vmul.f32 %v3228, %v3228
        %v3351 = vmul.f32 %v3231, %v3231
        %v3352 = vmul.f32 %v3236, %v3236
        %v3353 = vmul.f32 %v3239, %v3239
        %v3354 = vmul.f32 %v3244, %v3244
        %v3355 = vmul.f32 %v3247, %v3247
        %v3356 = vmul.f32 %v3252, %v3252
        %v3357 = vmul.f32 %v3255, %v3255
        %v3358 = vmul.f32 %v3260, %v3260
        %v3359 = vmul.f32 %v3263, %v3263
        %v3360 = vmul.f32 %v3268, %v3268
        %v3361 = vmul.f32 %v3271, %v3271
        %v3362 = vmul.f32 %v3276, %v3276
        %v3363 = vmul.f32 %v3279, %v3279
        %v3364 = vmul.f32 %v3284, %v3284
        %v3365 = vmul.f32 %v3287, %v3287
        %v3366 = vmul.f32 %v3292, %v3292
        %v3367 = vmul.f32 %v3295, %v3295
        %v3368 = vmul.f32 %v3300, %v3300
        %v3369 = vmul.f32 %v3303, %v3303
        %3402 = vrot.lane.b32.xlu0 %v3338, 8
        %v3403 = vpop.permute.xlu0 %3402
        %3404 = vrot.lane.b32.xlu0 %v3339, 8
        %v3405 = vpop.permute.xlu0 %3404
        %3406 = vrot.lane.b32.xlu0 %v3340, 8
        %v3407 = vpop.permute.xlu0 %3406
        %3408 = vrot.lane.b32.xlu0 %v3341, 8
        %v3409 = vpop.permute.xlu0 %3408
        %3410 = vrot.lane.b32.xlu0 %v3342, 8
        %v3411 = vpop.permute.xlu0 %3410
        %3412 = vrot.lane.b32.xlu0 %v3343, 8
        %v3413 = vpop.permute.xlu0 %3412
        %3414 = vrot.lane.b32.xlu0 %v3344, 8
        %v3415 = vpop.permute.xlu0 %3414
        %3416 = vrot.lane.b32.xlu0 %v3345, 8
        %v3417 = vpop.permute.xlu0 %3416
        %3418 = vrot.lane.b32.xlu0 %v3346, 8
        %v3419 = vpop.permute.xlu0 %3418
        %3420 = vrot.lane.b32.xlu0 %v3347, 8
        %v3421 = vpop.permute.xlu0 %3420
        %3422 = vrot.lane.b32.xlu0 %v3348, 8
        %v3423 = vpop.permute.xlu0 %3422
        %3424 = vrot.lane.b32.xlu0 %v3349, 8
        %v3425 = vpop.permute.xlu0 %3424
        %3426 = vrot.lane.b32.xlu0 %v3350, 8
        %v3427 = vpop.permute.xlu0 %3426
        %3428 = vrot.lane.b32.xlu0 %v3351, 8
        %v3429 = vpop.permute.xlu0 %3428
        %3430 = vrot.lane.b32.xlu0 %v3352, 8
        %v3431 = vpop.permute.xlu0 %3430
        %3432 = vrot.lane.b32.xlu0 %v3353, 8
        %v3433 = vpop.permute.xlu0 %3432
        %3434 = vrot.lane.b32.xlu0 %v3354, 8
        %v3435 = vpop.permute.xlu0 %3434
        %3436 = vrot.lane.b32.xlu0 %v3355, 8
        %v3437 = vpop.permute.xlu0 %3436
        %3438 = vrot.lane.b32.xlu0 %v3356, 8
        %v3439 = vpop.permute.xlu0 %3438
        %3440 = vrot.lane.b32.xlu0 %v3357, 8
        %v3441 = vpop.permute.xlu0 %3440
        %3442 = vrot.lane.b32.xlu0 %v3358, 8
        %v3443 = vpop.permute.xlu0 %3442
        %3444 = vrot.lane.b32.xlu0 %v3359, 8
        %v3445 = vpop.permute.xlu0 %3444
        %3446 = vrot.lane.b32.xlu0 %v3360, 8
        %v3447 = vpop.permute.xlu0 %3446
        %3448 = vrot.lane.b32.xlu0 %v3361, 8
        %v3449 = vpop.permute.xlu0 %3448
        %3450 = vrot.lane.b32.xlu0 %v3362, 8
        %v3451 = vpop.permute.xlu0 %3450
        %3452 = vrot.lane.b32.xlu0 %v3363, 8
        %v3453 = vpop.permute.xlu0 %3452
        %3454 = vrot.lane.b32.xlu0 %v3364, 8
        %v3455 = vpop.permute.xlu0 %3454
        %3456 = vrot.lane.b32.xlu0 %v3365, 8
        %v3457 = vpop.permute.xlu0 %3456
        %3458 = vrot.lane.b32.xlu0 %v3366, 8
        %v3459 = vpop.permute.xlu0 %3458
        %3460 = vrot.lane.b32.xlu0 %v3367, 8
        %v3461 = vpop.permute.xlu0 %3460
        %3462 = vrot.lane.b32.xlu0 %v3368, 8
        %v3463 = vpop.permute.xlu0 %3462
        %3464 = vrot.lane.b32.xlu0 %v3369, 8
        %v3465 = vpop.permute.xlu0 %3464
        %v3498 = vsel %vm989, %v3180, %v3403
        %v3499 = vsel %vm989, %v3183, %v3405
        %v3500 = vsel %vm989, %v3188, %v3407
        %v3501 = vsel %vm989, %v3191, %v3409
        %v3502 = vsel %vm989, %v3196, %v3411
        %v3503 = vsel %vm989, %v3199, %v3413
        %v3504 = vsel %vm989, %v3204, %v3415
        %v3505 = vsel %vm989, %v3207, %v3417
        %v3506 = vsel %vm989, %v3212, %v3419
        %v3507 = vsel %vm989, %v3215, %v3421
        %v3508 = vsel %vm989, %v3220, %v3423
        %v3509 = vsel %vm989, %v3223, %v3425
        %v3510 = vsel %vm989, %v3228, %v3427
        %v3511 = vsel %vm989, %v3231, %v3429
        %v3512 = vsel %vm989, %v3236, %v3431
        %v3513 = vsel %vm989, %v3239, %v3433
        %v3514 = vsel %vm989, %v3244, %v3435
        %v3515 = vsel %vm989, %v3247, %v3437
        %v3516 = vsel %vm989, %v3252, %v3439
        %v3517 = vsel %vm989, %v3255, %v3441
        %v3518 = vsel %vm989, %v3260, %v3443
        %v3519 = vsel %vm989, %v3263, %v3445
        %v3520 = vsel %vm989, %v3268, %v3447
        %v3521 = vsel %vm989, %v3271, %v3449
        %v3522 = vsel %vm989, %v3276, %v3451
        %v3523 = vsel %vm989, %v3279, %v3453
        %v3524 = vsel %vm989, %v3284, %v3455
        %v3525 = vsel %vm989, %v3287, %v3457
        %v3526 = vsel %vm989, %v3292, %v3459
        %v3527 = vsel %vm989, %v3295, %v3461
        %v3528 = vsel %vm989, %v3300, %v3463
        %v3529 = vsel %vm989, %v3303, %v3465
        %3530 = vmatprep.subr.mxu0 0.0
        %3531 = vmatpush1.msra.mxu0 %v3513
        %3532 = vmatprep.subr.mxu0 0.0
        %3533 = vmatpush1.msra.mxu0 %v3512
        %3534 = vmatprep.subr.mxu0 0.0
        %3535 = vmatpush1.msra.mxu0 %v3511
        %3536 = vmatprep.subr.mxu0 0.0
        %3537 = vmatpush1.msra.mxu0 %v3510
        %3538 = vmatprep.subr.mxu0 0.0
        %3539 = vmatpush1.msra.mxu0 %v3509
        %3540 = vmatprep.subr.mxu0 0.0
        %3541 = vmatpush1.msra.mxu0 %v3508
        %3542 = vmatprep.subr.mxu0 0.0
        %3543 = vmatpush1.msra.mxu0 %v3507
        %3544 = vmatprep.subr.mxu0 0.0
        %3545 = vmatpush1.msra.mxu0 %v3506
        %3546 = vmatprep.subr.mxu0 0.0
        %3547 = vmatpush1.msra.mxu0 %v3505
        %3548 = vmatprep.subr.mxu0 0.0
        %3549 = vmatpush1.msra.mxu0 %v3504
        %3550 = vmatprep.subr.mxu0 0.0
        %3551 = vmatpush1.msra.mxu0 %v3503
        %3552 = vmatprep.subr.mxu0 0.0
        %3553 = vmatpush1.msra.mxu0 %v3502
        %3554 = vmatprep.subr.mxu0 0.0
        %3555 = vmatpush1.msra.mxu0 %v3501
        %3556 = vmatprep.subr.mxu0 0.0
        %3557 = vmatpush1.msra.mxu0 %v3500
        %3558 = vmatprep.subr.mxu0 0.0
        %3559 = vmatpush1.msra.mxu0 %v3499
        %3560 = vmatprep.subr.mxu0 0.0
        %3561 = vmatpush1.msra.mxu0 %v3498
        %3562 = vmatprep.subr.mxu0 0.0
        %3563 = vmatpush2.msra.mxu0 %v3529
        %3564 = vmatprep.subr.mxu0 0.0
        %3565 = vmatpush2.msra.mxu0 %v3528
        %3566 = vmatprep.subr.mxu0 0.0
        %3567 = vmatpush2.msra.mxu0 %v3527
        %3568 = vmatprep.subr.mxu0 0.0
        %3569 = vmatpush2.msra.mxu0 %v3526
        %3570 = vmatprep.subr.mxu0 0.0
        %3571 = vmatpush2.msra.mxu0 %v3525
        %3572 = vmatprep.subr.mxu0 0.0
        %3573 = vmatpush2.msra.mxu0 %v3524
        %3574 = vmatprep.subr.mxu0 0.0
        %3575 = vmatpush2.msra.mxu0 %v3523
        %3576 = vmatprep.subr.mxu0 0.0
        %3577 = vmatpush2.msra.mxu0 %v3522
        %3578 = vmatprep.subr.mxu0 0.0
        %3579 = vmatpush2.msra.mxu0 %v3521
        %3580 = vmatprep.subr.mxu0 0.0
        %3581 = vmatpush2.msra.mxu0 %v3520
        %3582 = vmatprep.subr.mxu0 0.0
        %3583 = vmatpush2.msra.mxu0 %v3519
        %3584 = vmatprep.subr.mxu0 0.0
        %3585 = vmatpush2.msra.mxu0 %v3518
        %3586 = vmatprep.subr.mxu0 0.0
        %3587 = vmatpush2.msra.mxu0 %v3517
        %3588 = vmatprep.subr.mxu0 0.0
        %3589 = vmatpush2.msra.mxu0 %v3516
        %3590 = vmatprep.subr.mxu0 0.0
        %3591 = vmatpush2.msra.mxu0 %v3515
        %3592 = vmatprep.subr.mxu0 0.0
        %3593 = vmatpush2.msra.mxu0 %v3514
        %3594 = vmatprep.mubr.f32.mxu0 1.0
        %3595 = vmatmul.mubr.f32.gmra.mxu0 1.0
        %v3596 = vpop.f32.mrf.mxu0
        %v3597 = vadd.f32 0.0, %v3596
        %v3598 = vpop.f32.mrf.mxu0
        %3599 = vdwg.mxu0
        %vm3600 = vcmask 122880
        %3601 = vst.msk [vmem:[%s251] sm:$0x1] %vm3600, %v3597
        %p3602 = scmp.lt.s32.totalorder %s21, 1
        %s3603 = scalar_select %p3602, %s21, 1
        %s3604 = smul.addr %s3603, 32
        %s3605 = smul.addr %s3604, 8
        %s3606 = scalar_lea.vmem %s5, %s3605
        %s3607 = sand.u32 %s165, 1
        %s3608 = scalar_lea.sflag [#allocation4], %s3607
        %s3609 = sand.u32 %s165, 1
        %s3610 = scalar_lea.vmem [#allocation3], %s3609
        // Predicated region
        $region41: #{tpu_custom_call.1} parent=39 // pred_check
          %p3611 = pneg %p149
        $region42: #{tpu_custom_call.1} parent=39 // pred_check_branch
          %3613 = sbr.rel (%p3611) target = $region44
        $region43: #{tpu_custom_call.1} parent=39 // pred_region
          _
        $region44: #{tpu_custom_call.1} parent=39 // pred_fallthru
          _
        // Predicated region
        $region45: #{tpu_custom_call.1} parent=39 // pred_check
          %p3614 = pneg %p175
        $region46: #{tpu_custom_call.1} parent=39 // pred_check_branch
          %3616 = sbr.rel (%p3614) target = $region48
        $region47: #{tpu_custom_call.1} parent=39 // pred_region
          %s3618 = ssub.s32 16, 16
          %3619 = vsyncadd %s3608, %s3618
          %s3620 = smul.addr %s21, 16
          %s3621 = scalar_lea.hbm %s6, %s3620
          %s3623 = sshll.u32 %s3610, 4
          %s3624 = int_to_ptr.vmem [resolvable:$true] %s3623
          %3626 = dma.vmem_to_hbm [thread:$0]  %s3624, 16, %s3621, %s3608
        $region48: #{tpu_custom_call.1} parent=39 // pred_fallthru
          _
      $region40: #{tpu_custom_call.1} parent=5 // pred_fallthru
        _
      %p3627 = scmp.le.s32.totalorder 2, %s16
      // Predicated region
      $region49: #{tpu_custom_call.1} parent=5 // pred_check
        %p3628 = pneg %p3627
      $region50: #{tpu_custom_call.1} parent=5 // pred_check_branch
        %3630 = sbr.rel (%p3628) target = $region52
      $region51: #{tpu_custom_call.1} parent=5 // pred_region
        %s3631 = ssub.s32 %s16, 2
        // Predicated region
        $region53: #{tpu_custom_call.1} parent=51 // pred_check
          %p3632 = pneg %p155
        $region54: #{tpu_custom_call.1} parent=51 // pred_check_branch
          %3634 = sbr.rel (%p3632) target = $region56
        $region55: #{tpu_custom_call.1} parent=51 // pred_region
          %p3635 = scmp.lt.s32.totalorder %s22, 1
          %s3636 = scalar_select %p3635, %s22, 1
          %s3637 = smul.addr %s3636, 32
          %s3638 = smul.addr %s3637, 8
          %s3639 = scalar_lea.vmem %s5, %s3638
        $region56: #{tpu_custom_call.1} parent=51 // pred_fallthru
          _
        // Predicated region
        $region57: #{tpu_custom_call.1} parent=51 // pred_check
          %p3640 = pneg %p181
        $region58: #{tpu_custom_call.1} parent=51 // pred_check_branch
          %3642 = sbr.rel (%p3640) target = $region60
        $region59: #{tpu_custom_call.1} parent=51 // pred_region
          %s3643 = sand.u32 %s166, 1
          %s3644 = scalar_lea.sflag [#allocation4], %s3643
          %s3645 = sand.u32 %s166, 1
          %s3646 = scalar_lea.vmem [#allocation3], %s3645
          %3647 = dma.done %s3644, 16
        $region60: #{tpu_custom_call.1} parent=51 // pred_fallthru
          _
      $region52: #{tpu_custom_call.1} parent=5 // pred_fallthru
        _
    $region6: #{tpu_custom_call.1} parent=1 // loop_footer
      %s20 = sadd.s32 1, %s16
    $region7: #{tpu_custom_call.1} parent=1 // loop_footer_branch
      %15 = sbr.rel target = $region3
    $region8: #{tpu_custom_call.1} parent=1 // loop_exit
      _
    %3648 = vsyncpa [#allocation4], 1
    %s3649 = scalar_lea.sflag [#allocation4], 1
    %3650 = vsyncpa %s3649, 1

</llo_original>
